<compile_context>
chip_gen: v7x
topology: tpu7x:2x2x1
jax: 0.10.0
libtpu: 0.0.40
codegen_flags: <defaults>
</compile_context>

<pallas_src>
import functools

import jax
import jax.numpy as jnp
from jax.experimental import pallas as pl
from jax.experimental.pallas import tpu as pltpu

# ----------------------------- model config -----------------------------
VOCAB = 128
HIDDEN = 64
NUM_HEADS = 4
HEAD_DIM = HIDDEN // NUM_HEADS
INTERMEDIATE = 128
NUM_LAYERS = 2
ROPE_THETA = 10000.0
LN_EPS = 1e-5
NEG_INF = -1e9  # f32-safe large negative for the additive attention mask


# ----------------------------- fused Pallas kernel -----------------------------
def _layernorm(x):
    # OLMo LayerNorm: non-parametric (no weight / bias), eps=1e-5, fp32.
    mu = jnp.mean(x, axis=-1, keepdims=True)
    var = jnp.mean(jnp.square(x - mu), axis=-1, keepdims=True)
    return (x - mu) * jax.lax.rsqrt(var + LN_EPS)


def _olmo_fused_kernel(ids_ref, mask_ref, labels_ref,
                       embed_ref, lm_head_ref,
                       wqkv_ref, wo_ref, wgu_ref, wd_ref,
                       cos_ref, sin_ref, rot_ref,
                       sel_last_ref, sel_ans_ref,
                       nll_ref, ans_ref,
                       attn_scr,
                       *, B, S, NH, D):
    H = NH * D
    scale = 1.0 / (D ** 0.5)

    # ---- embedding: one-hot built in-kernel from iota compare, gather on the MXU ----
    ids = ids_ref[...]                                                # (B*S, 1) int32
    vcol = jax.lax.broadcasted_iota(jnp.int32, (B * S, VOCAB), 1)
    onehot = (vcol == ids).astype(jnp.float32)                        # (B*S, V)
    x = jnp.dot(onehot, embed_ref[...],
                preferred_element_type=jnp.float32)                   # (B*S, H)

    cos = cos_ref[...]                                                # (B*S, H)
    sin = sin_ref[...]                                                # (B*S, H)
    rot = rot_ref[...]                                                # (H, H)
    mask = mask_ref[...]                                              # (B, S) f32

    # causal mask (shared across batches), built in-kernel
    rr = jax.lax.broadcasted_iota(jnp.int32, (S, S), 0)
    cc = jax.lax.broadcasted_iota(jnp.int32, (S, S), 1)
    causal = rr >= cc

    for l in range(NUM_LAYERS):
        # --- self-attention block ---
        h = _layernorm(x)
        qkv = jnp.dot(h, wqkv_ref[l],
                      preferred_element_type=jnp.float32)             # (B*S, 3H)
        q = qkv[:, 0:H]
        k = qkv[:, H:2 * H]
        v = qkv[:, 2 * H:3 * H]

        # RoPE: x*cos + rotate_half(x)*sin, with rotate_half (incl. sign) expressed
        # as a block-diagonal permutation matmul so no cross-head lane roll is needed.
        qr = q * cos + jnp.dot(q, rot, preferred_element_type=jnp.float32) * sin
        kr = k * cos + jnp.dot(k, rot, preferred_element_type=jnp.float32) * sin

        for b in range(B):
            maskb = mask[b:b + 1, :] > 0.0                            # (1, S)
            bias = jnp.where(jnp.logical_and(causal, maskb), 0.0, NEG_INF)
            r0, r1 = b * S, (b + 1) * S
            for hd in range(NH):
                c0, c1 = hd * D, (hd + 1) * D
                qh = qr[r0:r1, c0:c1]                                 # (S, D)
                kh = kr[r0:r1, c0:c1]
                vh = v[r0:r1, c0:c1]
                s = jax.lax.dot_general(
                    qh, kh, (((1,), (1,)), ((), ())),
                    preferred_element_type=jnp.float32) * scale + bias
                m = jnp.max(s, axis=-1, keepdims=True)
                p = jnp.exp(s - m)
                # NOTE: a fully-masked (left-padded) query row comes out uniform over
                # its keys; harmless because that position is never read downstream.
                p = p * pl.reciprocal(jnp.sum(p, axis=-1, keepdims=True), approx=True)
                attn_scr[r0:r1, c0:c1] = jnp.dot(
                    p, vh, preferred_element_type=jnp.float32)

        # o-projection with fused residual add
        x = x + jnp.dot(attn_scr[...], wo_ref[l],
                        preferred_element_type=jnp.float32)

        # --- SwiGLU MLP block (gate/up merged; residual fused) ---
        h = _layernorm(x)
        gu = jnp.dot(h, wgu_ref[l],
                     preferred_element_type=jnp.float32)              # (B*S, 2I)
        g = gu[:, :INTERMEDIATE]
        u = gu[:, INTERMEDIATE:]
        act = (g * jax.nn.sigmoid(g)) * u                             # SiLU(gate)*up
        x = x + jnp.dot(act, wd_ref[l], preferred_element_type=jnp.float32)

    # --- tail: last-token select -> final LN -> tied LM head -> CE + answer gather ---
    last = jnp.dot(sel_last_ref[...], x,
                   preferred_element_type=jnp.float32)                # (B, H)
    hl = _layernorm(last)
    logits = jnp.dot(hl, lm_head_ref[...],
                     preferred_element_type=jnp.float32)              # (B, V)

    m = jnp.max(logits, axis=-1, keepdims=True)
    lse = m + jnp.log(jnp.sum(jnp.exp(logits - m), axis=-1, keepdims=True))
    lab = labels_ref[...]                                             # (B, 1) int32
    labcol = jax.lax.broadcasted_iota(jnp.int32, (B, VOCAB), 1)
    tgt = jnp.sum(jnp.where(labcol == lab, logits, 0.0), axis=-1, keepdims=True)
    nll_ref[...] = lse - tgt                                          # per-row NLL

    # answer-token gather via a static one-hot selection matmul
    ans_ref[...] = jnp.dot(logits, sel_ans_ref[...],
                           preferred_element_type=jnp.float32)        # (B, n_ans)


# ----------------------------- wrapper -----------------------------
def init_params(key):
    scale = 0.02
    n_per_layer = 7
    keys = jax.random.split(key, 1 + NUM_LAYERS * n_per_layer)
    embed = scale * jax.random.normal(keys[0], (VOCAB, HIDDEN), jnp.float32)
    wqkv, wo, wgu, wd = [], [], [], []
    for l in range(NUM_LAYERS):
        k = keys[1 + l * n_per_layer: 1 + (l + 1) * n_per_layer]
        wq = scale * jax.random.normal(k[0], (HIDDEN, HIDDEN), jnp.float32)
        wk = scale * jax.random.normal(k[1], (HIDDEN, HIDDEN), jnp.float32)
        wv = scale * jax.random.normal(k[2], (HIDDEN, HIDDEN), jnp.float32)
        wqkv.append(jnp.concatenate([wq, wk, wv], axis=1))            # (H, 3H)
        wo.append(scale * jax.random.normal(k[3], (HIDDEN, HIDDEN), jnp.float32))
        wg = scale * jax.random.normal(k[4], (HIDDEN, INTERMEDIATE), jnp.float32)
        wu = scale * jax.random.normal(k[5], (HIDDEN, INTERMEDIATE), jnp.float32)
        wgu.append(jnp.concatenate([wg, wu], axis=1))                 # (H, 2I)
        wd.append(scale * jax.random.normal(k[6], (INTERMEDIATE, HIDDEN), jnp.float32))
    return {
        "embed": embed,                 # (V, H)
        "lm_head": embed.T,             # tied embeddings, (H, V)
        "w_qkv": jnp.stack(wqkv),       # (L, H, 3H)
        "w_o": jnp.stack(wo),           # (L, H, H)
        "w_gu": jnp.stack(wgu),         # (L, H, 2I)
        "w_d": jnp.stack(wd),           # (L, I, H)
    }


def olmo_forward(params, input_ids, attention_mask, labels, token_indexes):
    B, S = input_ids.shape
    H, NH, D, V = HIDDEN, NUM_HEADS, HEAD_DIM, VOCAB
    n_ans = len(token_indexes)

    # RoPE tables, tiled per head and per batch so they apply to the (B*S, H) slab.
    inv_freq = 1.0 / (ROPE_THETA ** (jnp.arange(0, D, 2, dtype=jnp.float32) / D))
    pos = jnp.arange(S, dtype=jnp.float32)
    freqs = pos[:, None] * inv_freq[None, :]                          # (S, D/2)
    emb = jnp.concatenate([freqs, freqs], axis=-1)                    # (S, D)
    cos_all = jnp.tile(jnp.cos(emb), (B, NH))                         # (B*S, H)
    sin_all = jnp.tile(jnp.sin(emb), (B, NH))

    # rotate_half as a per-head permutation/sign matrix, block-diagonal over heads.
    half = D // 2
    r_head = jnp.zeros((D, D), jnp.float32)
    r_head = r_head.at[jnp.arange(half) + half, jnp.arange(half)].set(-1.0)
    r_head = r_head.at[jnp.arange(half), jnp.arange(half) + half].set(1.0)
    rot = jnp.kron(jnp.eye(NH, dtype=jnp.float32), r_head)            # (H, H)

    # last-token row selector and answer-token column selector (static one-hots).
    sel_last = jnp.zeros((B, B * S), jnp.float32)
    sel_last = sel_last.at[jnp.arange(B), jnp.arange(B) * S + (S - 1)].set(1.0)
    sel_ans = jnp.zeros((V, n_ans), jnp.float32)
    sel_ans = sel_ans.at[jnp.asarray(token_indexes), jnp.arange(n_ans)].set(1.0)

    ids2d = input_ids.reshape(B * S, 1).astype(jnp.int32)
    mask_f = attention_mask.astype(jnp.float32)
    have_labels = labels is not None
    lab_src = labels if have_labels else jnp.zeros((B,), jnp.int32)
    lab2d = lab_src.reshape(B, 1).astype(jnp.int32)

    kernel = functools.partial(_olmo_fused_kernel, B=B, S=S, NH=NH, D=D)
    inputs = (ids2d, mask_f, lab2d,
              params["embed"], params["lm_head"],
              params["w_qkv"], params["w_o"], params["w_gu"], params["w_d"],
              cos_all, sin_all, rot, sel_last, sel_ans)

    in_specs = [pl.BlockSpec(a.shape, lambda i, nd=a.ndim: (0,) * nd) for a in inputs]
    out_shape = (jax.ShapeDtypeStruct((B, 1), jnp.float32),
                 jax.ShapeDtypeStruct((B, n_ans), jnp.float32))
    out_specs = (pl.BlockSpec((B, 1), lambda i: (0, 0)),
                 pl.BlockSpec((B, n_ans), lambda i: (0, 0)))

    nll, answer_logits = pl.pallas_call(
        kernel,
        grid=(1,),
        in_specs=in_specs,
        out_specs=out_specs,
        out_shape=out_shape,
        scratch_shapes=[pltpu.VMEM((B * S, H), jnp.float32)],
        compiler_params=pltpu.CompilerParams(dimension_semantics=("arbitrary",)),
    )(*inputs)

    loss = jnp.mean(nll) if have_labels else None                     # CE (mean)
    return loss, answer_logits


# ----------------------------- driver -----------------------------
if __name__ == "__main__":
    key = jax.random.PRNGKey(0)
    pkey, ikey, lkey = jax.random.split(key, 3)

    params = init_params(pkey)

    B, S = 2, 8
    input_ids = jax.random.randint(ikey, (B, S), 0, VOCAB, dtype=jnp.int32)
    attention_mask = jnp.ones((B, S), jnp.int32).at[1, 0].set(0)   # one left-padded token
    labels = jax.random.randint(lkey, (B,), 0, VOCAB, dtype=jnp.int32)
    token_indexes = [3, 17, 42]  # stand-in for tokenizer.encode(answer_token)[-1]

    loss, answer_logits = olmo_forward(params, input_ids, attention_mask,
                                       labels, token_indexes)
    jax.block_until_ready((loss, answer_logits))

    assert answer_logits.shape == (B, len(token_indexes))
    assert bool(jnp.isfinite(loss))
    print("KERNEL_OK")
</pallas_src>

<mosaic_0001>
module attributes {stable_mosaic.version = 11 : i64} {
  func.func @_olmo_fused_kernel(%arg0: i32, %arg1: memref<16x1xi32, #tpu.memory_space<vmem>>, %arg2: memref<2x8xf32, #tpu.memory_space<vmem>>, %arg3: memref<2x1xi32, #tpu.memory_space<vmem>>, %arg4: memref<128x64xf32, #tpu.memory_space<vmem>>, %arg5: memref<64x128xf32, #tpu.memory_space<vmem>>, %arg6: memref<2x64x192xf32, #tpu.memory_space<vmem>>, %arg7: memref<2x64x64xf32, #tpu.memory_space<vmem>>, %arg8: memref<2x64x256xf32, #tpu.memory_space<vmem>>, %arg9: memref<2x128x64xf32, #tpu.memory_space<vmem>>, %arg10: memref<16x64xf32, #tpu.memory_space<vmem>>, %arg11: memref<16x64xf32, #tpu.memory_space<vmem>>, %arg12: memref<64x64xf32, #tpu.memory_space<vmem>>, %arg13: memref<2x16xf32, #tpu.memory_space<vmem>>, %arg14: memref<128x3xf32, #tpu.memory_space<vmem>>, %arg15: memref<2x1xf32, #tpu.memory_space<vmem>>, %arg16: memref<2x3xf32, #tpu.memory_space<vmem>>, %arg17: memref<16x64xf32, #tpu.memory_space<vmem>>) attributes {dimension_semantics = [#tpu.dimension_semantics<arbitrary>], iteration_bounds = array<i64: 1>, scalar_prefetch = 0 : i64, scratch_operands = 1 : i64, tpu.core_type = #tpu.core_type<tc>, window_params = [{pipeline_mode = #tpu.pipeline_mode<synchronous>, transform_indices = @transform_0, window_bounds = array<i64: 16, 1>}, {pipeline_mode = #tpu.pipeline_mode<synchronous>, transform_indices = @transform_1, window_bounds = array<i64: 2, 8>}, {pipeline_mode = #tpu.pipeline_mode<synchronous>, transform_indices = @transform_2, window_bounds = array<i64: 2, 1>}, {pipeline_mode = #tpu.pipeline_mode<synchronous>, transform_indices = @transform_3, window_bounds = array<i64: 128, 64>}, {pipeline_mode = #tpu.pipeline_mode<synchronous>, transform_indices = @transform_4, window_bounds = array<i64: 64, 128>}, {pipeline_mode = #tpu.pipeline_mode<synchronous>, transform_indices = @transform_5, window_bounds = array<i64: 2, 64, 192>}, {pipeline_mode = #tpu.pipeline_mode<synchronous>, transform_indices = @transform_6, window_bounds = array<i64: 2, 64, 64>}, {pipeline_mode = #tpu.pipeline_mode<synchronous>, transform_indices = @transform_7, window_bounds = array<i64: 2, 64, 256>}, {pipeline_mode = #tpu.pipeline_mode<synchronous>, transform_indices = @transform_8, window_bounds = array<i64: 2, 128, 64>}, {pipeline_mode = #tpu.pipeline_mode<synchronous>, transform_indices = @transform_9, window_bounds = array<i64: 16, 64>}, {pipeline_mode = #tpu.pipeline_mode<synchronous>, transform_indices = @transform_10, window_bounds = array<i64: 16, 64>}, {pipeline_mode = #tpu.pipeline_mode<synchronous>, transform_indices = @transform_11, window_bounds = array<i64: 64, 64>}, {pipeline_mode = #tpu.pipeline_mode<synchronous>, transform_indices = @transform_12, window_bounds = array<i64: 2, 16>}, {pipeline_mode = #tpu.pipeline_mode<synchronous>, transform_indices = @transform_13, window_bounds = array<i64: 128, 3>}, {pipeline_mode = #tpu.pipeline_mode<synchronous>, transform_indices = @transform_14, window_bounds = array<i64: 2, 1>}, {pipeline_mode = #tpu.pipeline_mode<synchronous>, transform_indices = @transform_15, window_bounds = array<i64: 2, 3>}]} {
    %c0 = arith.constant 0 : index
    %c0_0 = arith.constant 0 : index
    %0 = vector.load %arg1[%c0, %c0_0] : memref<16x1xi32, #tpu.memory_space<vmem>>, vector<16x1xi32>
    %1 = tpu.iota {dimensions = array<i32: 1>} : vector<16x128xi32>
    %2 = vector.broadcast %0 : vector<16x1xi32> to vector<16x128xi32>
    %3 = arith.cmpi eq, %1, %2 : vector<16x128xi32>
    %4 = arith.extui %3 : vector<16x128xi1> to vector<16x128xi32>
    %5 = arith.sitofp %4 : vector<16x128xi32> to vector<16x128xf32>
    %c0_1 = arith.constant 0 : index
    %c0_2 = arith.constant 0 : index
    %6 = vector.load %arg4[%c0_1, %c0_2] : memref<128x64xf32, #tpu.memory_space<vmem>>, vector<128x64xf32>
    %cst = arith.constant dense<0.000000e+00> : vector<16x64xf32>
    %7 = tpu.matmul %5, %6, %cst {dimension_numbers = #tpu.dot_dimension_numbers<[1], [0], [0], [1], [0, 0, 1, 1], [], []>} : vector<16x128xf32>, vector<128x64xf32>, vector<16x64xf32> -> vector<16x64xf32>
    %c0_3 = arith.constant 0 : index
    %c0_4 = arith.constant 0 : index
    %8 = vector.load %arg10[%c0_3, %c0_4] : memref<16x64xf32, #tpu.memory_space<vmem>>, vector<16x64xf32>
    %c0_5 = arith.constant 0 : index
    %c0_6 = arith.constant 0 : index
    %9 = vector.load %arg11[%c0_5, %c0_6] : memref<16x64xf32, #tpu.memory_space<vmem>>, vector<16x64xf32>
    %c0_7 = arith.constant 0 : index
    %c0_8 = arith.constant 0 : index
    %10 = vector.load %arg12[%c0_7, %c0_8] : memref<64x64xf32, #tpu.memory_space<vmem>>, vector<64x64xf32>
    %c0_9 = arith.constant 0 : index
    %c0_10 = arith.constant 0 : index
    %11 = vector.load %arg2[%c0_9, %c0_10] : memref<2x8xf32, #tpu.memory_space<vmem>>, vector<2x8xf32>
    %12 = tpu.iota {dimensions = array<i32: 0>} : vector<8x8xi32>
    %13 = tpu.iota {dimensions = array<i32: 1>} : vector<8x8xi32>
    %14 = arith.cmpi sge, %12, %13 : vector<8x8xi32>
    %cst_11 = arith.constant dense<0.000000e+00> : vector<16xf32>
    %15 = vector.multi_reduction <add>, %7, %cst_11 [1] : vector<16x64xf32> to vector<16xf32>
    %16 = vector.shape_cast %15 : vector<16xf32> to vector<16x1xf32>
    %cst_12 = arith.constant 6.400000e+01 : f32
    %17 = vector.broadcast %cst_12 : f32 to vector<16x1xf32>
    %18 = arith.divf %16, %17 : vector<16x1xf32>
    %19 = vector.broadcast %18 : vector<16x1xf32> to vector<16x64xf32>
    %20 = arith.subf %7, %19 : vector<16x64xf32>
    %21 = arith.mulf %20, %20 : vector<16x64xf32>
    %cst_13 = arith.constant dense<0.000000e+00> : vector<16xf32>
    %22 = vector.multi_reduction <add>, %21, %cst_13 [1] : vector<16x64xf32> to vector<16xf32>
    %23 = vector.shape_cast %22 : vector<16xf32> to vector<16x1xf32>
    %cst_14 = arith.constant 6.400000e+01 : f32
    %24 = vector.broadcast %cst_14 : f32 to vector<16x1xf32>
    %25 = arith.divf %23, %24 : vector<16x1xf32>
    %26 = vector.broadcast %18 : vector<16x1xf32> to vector<16x64xf32>
    %27 = arith.subf %7, %26 : vector<16x64xf32>
    %cst_15 = arith.constant 9.99999974E-6 : f32
    %28 = vector.broadcast %cst_15 : f32 to vector<16x1xf32>
    %29 = arith.addf %25, %28 : vector<16x1xf32>
    %30 = math.rsqrt %29 : vector<16x1xf32>
    %31 = vector.broadcast %30 : vector<16x1xf32> to vector<16x64xf32>
    %32 = arith.mulf %27, %31 : vector<16x64xf32>
    %c0_16 = arith.constant 0 : index
    %c0_17 = arith.constant 0 : index
    %c0_18 = arith.constant 0 : index
    %33 = vector.load %arg6[%c0_16, %c0_17, %c0_18] : memref<2x64x192xf32, #tpu.memory_space<vmem>>, vector<1x64x192xf32>
    %34 = vector.shape_cast %33 : vector<1x64x192xf32> to vector<64x192xf32>
    %cst_19 = arith.constant dense<0.000000e+00> : vector<16x192xf32>
    %35 = tpu.matmul %32, %34, %cst_19 {dimension_numbers = #tpu.dot_dimension_numbers<[1], [0], [0], [1], [0, 0, 1, 1], [], []>} : vector<16x64xf32>, vector<64x192xf32>, vector<16x192xf32> -> vector<16x192xf32>
    %36 = vector.extract_strided_slice %35 {offsets = [0, 0], sizes = [16, 64], strides = [1, 1]} : vector<16x192xf32> to vector<16x64xf32>
    %37 = vector.extract_strided_slice %35 {offsets = [0, 64], sizes = [16, 64], strides = [1, 1]} : vector<16x192xf32> to vector<16x64xf32>
    %38 = vector.extract_strided_slice %35 {offsets = [0, 128], sizes = [16, 64], strides = [1, 1]} : vector<16x192xf32> to vector<16x64xf32>
    %39 = arith.mulf %36, %8 : vector<16x64xf32>
    %cst_20 = arith.constant dense<0.000000e+00> : vector<16x64xf32>
    %40 = tpu.matmul %36, %10, %cst_20 {dimension_numbers = #tpu.dot_dimension_numbers<[1], [0], [0], [1], [0, 0, 1, 1], [], []>} : vector<16x64xf32>, vector<64x64xf32>, vector<16x64xf32> -> vector<16x64xf32>
    %41 = arith.mulf %40, %9 : vector<16x64xf32>
    %42 = arith.addf %39, %41 : vector<16x64xf32>
    %43 = arith.mulf %37, %8 : vector<16x64xf32>
    %cst_21 = arith.constant dense<0.000000e+00> : vector<16x64xf32>
    %44 = tpu.matmul %37, %10, %cst_21 {dimension_numbers = #tpu.dot_dimension_numbers<[1], [0], [0], [1], [0, 0, 1, 1], [], []>} : vector<16x64xf32>, vector<64x64xf32>, vector<16x64xf32> -> vector<16x64xf32>
    %45 = arith.mulf %44, %9 : vector<16x64xf32>
    %46 = arith.addf %43, %45 : vector<16x64xf32>
    %47 = vector.extract_strided_slice %11 {offsets = [0, 0], sizes = [1, 8], strides = [1, 1]} : vector<2x8xf32> to vector<1x8xf32>
    %cst_22 = arith.constant 0.000000e+00 : f32
    %48 = vector.broadcast %cst_22 : f32 to vector<1x8xf32>
    %49 = arith.cmpf ogt, %47, %48 : vector<1x8xf32>
    %50 = vector.broadcast %49 : vector<1x8xi1> to vector<8x8xi1>
    %51 = arith.andi %14, %50 : vector<8x8xi1>
    %cst_23 = arith.constant 0.000000e+00 : f32
    %cst_24 = arith.constant -1.000000e+09 : f32
    %52 = vector.broadcast %cst_23 : f32 to vector<8x8xf32>
    %53 = vector.broadcast %cst_24 : f32 to vector<8x8xf32>
    %54 = arith.select %51, %52, %53 : vector<8x8xi1>, vector<8x8xf32>
    %55 = vector.extract_strided_slice %42 {offsets = [0, 0], sizes = [8, 16], strides = [1, 1]} : vector<16x64xf32> to vector<8x16xf32>
    %56 = vector.extract_strided_slice %46 {offsets = [0, 0], sizes = [8, 16], strides = [1, 1]} : vector<16x64xf32> to vector<8x16xf32>
    %57 = vector.extract_strided_slice %38 {offsets = [0, 0], sizes = [8, 16], strides = [1, 1]} : vector<16x64xf32> to vector<8x16xf32>
    %cst_25 = arith.constant dense<0.000000e+00> : vector<8x8xf32>
    %58 = tpu.matmul %55, %56, %cst_25 {dimension_numbers = #tpu.dot_dimension_numbers<[1], [1], [0], [0], [0, 0, 1, 0], [], []>} : vector<8x16xf32>, vector<8x16xf32>, vector<8x8xf32> -> vector<8x8xf32>
    %cst_26 = arith.constant 2.500000e-01 : f32
    %59 = vector.broadcast %cst_26 : f32 to vector<8x8xf32>
    %60 = arith.mulf %58, %59 : vector<8x8xf32>
    %61 = arith.addf %60, %54 : vector<8x8xf32>
    %cst_27 = arith.constant dense<0xFF800000> : vector<8xf32>
    %62 = vector.multi_reduction <maximumf>, %61, %cst_27 [1] : vector<8x8xf32> to vector<8xf32>
    %63 = vector.shape_cast %62 : vector<8xf32> to vector<8x1xf32>
    %64 = vector.broadcast %63 : vector<8x1xf32> to vector<8x8xf32>
    %65 = arith.subf %61, %64 : vector<8x8xf32>
    %66 = math.exp %65 : vector<8x8xf32>
    %cst_28 = arith.constant dense<0.000000e+00> : vector<8xf32>
    %67 = vector.multi_reduction <add>, %66, %cst_28 [1] : vector<8x8xf32> to vector<8xf32>
    %68 = vector.shape_cast %67 : vector<8xf32> to vector<8x1xf32>
    %69 = tpu.reciprocal %68 {approx = true} : vector<8x1xf32> -> vector<8x1xf32>
    %70 = vector.broadcast %69 : vector<8x1xf32> to vector<8x8xf32>
    %71 = arith.mulf %66, %70 : vector<8x8xf32>
    %cst_29 = arith.constant dense<0.000000e+00> : vector<8x16xf32>
    %72 = tpu.matmul %71, %57, %cst_29 {dimension_numbers = #tpu.dot_dimension_numbers<[1], [0], [0], [1], [0, 0, 1, 1], [], []>} : vector<8x8xf32>, vector<8x16xf32>, vector<8x16xf32> -> vector<8x16xf32>
    %c0_30 = arith.constant 0 : index
    %c0_31 = arith.constant 0 : index
    %73 = vector.load %arg17[%c0_30, %c0_31] : memref<16x64xf32, #tpu.memory_space<vmem>>, vector<8x16xf32>
    tpu.vector_store %arg17[%c0_30, %c0_31], %72 {strides = array<i32>} : memref<16x64xf32, #tpu.memory_space<vmem>>, vector<8x16xf32>,
    %74 = vector.extract_strided_slice %42 {offsets = [0, 16], sizes = [8, 16], strides = [1, 1]} : vector<16x64xf32> to vector<8x16xf32>
    %75 = vector.extract_strided_slice %46 {offsets = [0, 16], sizes = [8, 16], strides = [1, 1]} : vector<16x64xf32> to vector<8x16xf32>
    %76 = vector.extract_strided_slice %38 {offsets = [0, 16], sizes = [8, 16], strides = [1, 1]} : vector<16x64xf32> to vector<8x16xf32>
    %cst_32 = arith.constant dense<0.000000e+00> : vector<8x8xf32>
    %77 = tpu.matmul %74, %75, %cst_32 {dimension_numbers = #tpu.dot_dimension_numbers<[1], [1], [0], [0], [0, 0, 1, 0], [], []>} : vector<8x16xf32>, vector<8x16xf32>, vector<8x8xf32> -> vector<8x8xf32>
    %cst_33 = arith.constant 2.500000e-01 : f32
    %78 = vector.broadcast %cst_33 : f32 to vector<8x8xf32>
    %79 = arith.mulf %77, %78 : vector<8x8xf32>
    %80 = arith.addf %79, %54 : vector<8x8xf32>
    %cst_34 = arith.constant dense<0xFF800000> : vector<8xf32>
    %81 = vector.multi_reduction <maximumf>, %80, %cst_34 [1] : vector<8x8xf32> to vector<8xf32>
    %82 = vector.shape_cast %81 : vector<8xf32> to vector<8x1xf32>
    %83 = vector.broadcast %82 : vector<8x1xf32> to vector<8x8xf32>
    %84 = arith.subf %80, %83 : vector<8x8xf32>
    %85 = math.exp %84 : vector<8x8xf32>
    %cst_35 = arith.constant dense<0.000000e+00> : vector<8xf32>
    %86 = vector.multi_reduction <add>, %85, %cst_35 [1] : vector<8x8xf32> to vector<8xf32>
    %87 = vector.shape_cast %86 : vector<8xf32> to vector<8x1xf32>
    %88 = tpu.reciprocal %87 {approx = true} : vector<8x1xf32> -> vector<8x1xf32>
    %89 = vector.broadcast %88 : vector<8x1xf32> to vector<8x8xf32>
    %90 = arith.mulf %85, %89 : vector<8x8xf32>
    %cst_36 = arith.constant dense<0.000000e+00> : vector<8x16xf32>
    %91 = tpu.matmul %90, %76, %cst_36 {dimension_numbers = #tpu.dot_dimension_numbers<[1], [0], [0], [1], [0, 0, 1, 1], [], []>} : vector<8x8xf32>, vector<8x16xf32>, vector<8x16xf32> -> vector<8x16xf32>
    %c0_37 = arith.constant 0 : index
    %c16 = arith.constant 16 : index
    %92 = vector.load %arg17[%c0_37, %c16] : memref<16x64xf32, #tpu.memory_space<vmem>>, vector<8x16xf32>
    tpu.vector_store %arg17[%c0_37, %c16], %91 {strides = array<i32>} : memref<16x64xf32, #tpu.memory_space<vmem>>, vector<8x16xf32>,
    %93 = vector.extract_strided_slice %42 {offsets = [0, 32], sizes = [8, 16], strides = [1, 1]} : vector<16x64xf32> to vector<8x16xf32>
    %94 = vector.extract_strided_slice %46 {offsets = [0, 32], sizes = [8, 16], strides = [1, 1]} : vector<16x64xf32> to vector<8x16xf32>
    %95 = vector.extract_strided_slice %38 {offsets = [0, 32], sizes = [8, 16], strides = [1, 1]} : vector<16x64xf32> to vector<8x16xf32>
    %cst_38 = arith.constant dense<0.000000e+00> : vector<8x8xf32>
    %96 = tpu.matmul %93, %94, %cst_38 {dimension_numbers = #tpu.dot_dimension_numbers<[1], [1], [0], [0], [0, 0, 1, 0], [], []>} : vector<8x16xf32>, vector<8x16xf32>, vector<8x8xf32> -> vector<8x8xf32>
    %cst_39 = arith.constant 2.500000e-01 : f32
    %97 = vector.broadcast %cst_39 : f32 to vector<8x8xf32>
    %98 = arith.mulf %96, %97 : vector<8x8xf32>
    %99 = arith.addf %98, %54 : vector<8x8xf32>
    %cst_40 = arith.constant dense<0xFF800000> : vector<8xf32>
    %100 = vector.multi_reduction <maximumf>, %99, %cst_40 [1] : vector<8x8xf32> to vector<8xf32>
    %101 = vector.shape_cast %100 : vector<8xf32> to vector<8x1xf32>
    %102 = vector.broadcast %101 : vector<8x1xf32> to vector<8x8xf32>
    %103 = arith.subf %99, %102 : vector<8x8xf32>
    %104 = math.exp %103 : vector<8x8xf32>
    %cst_41 = arith.constant dense<0.000000e+00> : vector<8xf32>
    %105 = vector.multi_reduction <add>, %104, %cst_41 [1] : vector<8x8xf32> to vector<8xf32>
    %106 = vector.shape_cast %105 : vector<8xf32> to vector<8x1xf32>
    %107 = tpu.reciprocal %106 {approx = true} : vector<8x1xf32> -> vector<8x1xf32>
    %108 = vector.broadcast %107 : vector<8x1xf32> to vector<8x8xf32>
    %109 = arith.mulf %104, %108 : vector<8x8xf32>
    %cst_42 = arith.constant dense<0.000000e+00> : vector<8x16xf32>
    %110 = tpu.matmul %109, %95, %cst_42 {dimension_numbers = #tpu.dot_dimension_numbers<[1], [0], [0], [1], [0, 0, 1, 1], [], []>} : vector<8x8xf32>, vector<8x16xf32>, vector<8x16xf32> -> vector<8x16xf32>
    %c0_43 = arith.constant 0 : index
    %c32 = arith.constant 32 : index
    %111 = vector.load %arg17[%c0_43, %c32] : memref<16x64xf32, #tpu.memory_space<vmem>>, vector<8x16xf32>
    tpu.vector_store %arg17[%c0_43, %c32], %110 {strides = array<i32>} : memref<16x64xf32, #tpu.memory_space<vmem>>, vector<8x16xf32>,
    %112 = vector.extract_strided_slice %42 {offsets = [0, 48], sizes = [8, 16], strides = [1, 1]} : vector<16x64xf32> to vector<8x16xf32>
    %113 = vector.extract_strided_slice %46 {offsets = [0, 48], sizes = [8, 16], strides = [1, 1]} : vector<16x64xf32> to vector<8x16xf32>
    %114 = vector.extract_strided_slice %38 {offsets = [0, 48], sizes = [8, 16], strides = [1, 1]} : vector<16x64xf32> to vector<8x16xf32>
    %cst_44 = arith.constant dense<0.000000e+00> : vector<8x8xf32>
    %115 = tpu.matmul %112, %113, %cst_44 {dimension_numbers = #tpu.dot_dimension_numbers<[1], [1], [0], [0], [0, 0, 1, 0], [], []>} : vector<8x16xf32>, vector<8x16xf32>, vector<8x8xf32> -> vector<8x8xf32>
    %cst_45 = arith.constant 2.500000e-01 : f32
    %116 = vector.broadcast %cst_45 : f32 to vector<8x8xf32>
    %117 = arith.mulf %115, %116 : vector<8x8xf32>
    %118 = arith.addf %117, %54 : vector<8x8xf32>
    %cst_46 = arith.constant dense<0xFF800000> : vector<8xf32>
    %119 = vector.multi_reduction <maximumf>, %118, %cst_46 [1] : vector<8x8xf32> to vector<8xf32>
    %120 = vector.shape_cast %119 : vector<8xf32> to vector<8x1xf32>
    %121 = vector.broadcast %120 : vector<8x1xf32> to vector<8x8xf32>
    %122 = arith.subf %118, %121 : vector<8x8xf32>
    %123 = math.exp %122 : vector<8x8xf32>
    %cst_47 = arith.constant dense<0.000000e+00> : vector<8xf32>
    %124 = vector.multi_reduction <add>, %123, %cst_47 [1] : vector<8x8xf32> to vector<8xf32>
    %125 = vector.shape_cast %124 : vector<8xf32> to vector<8x1xf32>
    %126 = tpu.reciprocal %125 {approx = true} : vector<8x1xf32> -> vector<8x1xf32>
    %127 = vector.broadcast %126 : vector<8x1xf32> to vector<8x8xf32>
    %128 = arith.mulf %123, %127 : vector<8x8xf32>
    %cst_48 = arith.constant dense<0.000000e+00> : vector<8x16xf32>
    %129 = tpu.matmul %128, %114, %cst_48 {dimension_numbers = #tpu.dot_dimension_numbers<[1], [0], [0], [1], [0, 0, 1, 1], [], []>} : vector<8x8xf32>, vector<8x16xf32>, vector<8x16xf32> -> vector<8x16xf32>
    %c0_49 = arith.constant 0 : index
    %c48 = arith.constant 48 : index
    %130 = vector.load %arg17[%c0_49, %c48] : memref<16x64xf32, #tpu.memory_space<vmem>>, vector<8x16xf32>
    tpu.vector_store %arg17[%c0_49, %c48], %129 {strides = array<i32>} : memref<16x64xf32, #tpu.memory_space<vmem>>, vector<8x16xf32>,
    %131 = vector.extract_strided_slice %11 {offsets = [1, 0], sizes = [1, 8], strides = [1, 1]} : vector<2x8xf32> to vector<1x8xf32>
    %cst_50 = arith.constant 0.000000e+00 : f32
    %132 = vector.broadcast %cst_50 : f32 to vector<1x8xf32>
    %133 = arith.cmpf ogt, %131, %132 : vector<1x8xf32>
    %134 = vector.broadcast %133 : vector<1x8xi1> to vector<8x8xi1>
    %135 = arith.andi %14, %134 : vector<8x8xi1>
    %cst_51 = arith.constant 0.000000e+00 : f32
    %cst_52 = arith.constant -1.000000e+09 : f32
    %136 = vector.broadcast %cst_51 : f32 to vector<8x8xf32>
    %137 = vector.broadcast %cst_52 : f32 to vector<8x8xf32>
    %138 = arith.select %135, %136, %137 : vector<8x8xi1>, vector<8x8xf32>
    %139 = vector.extract_strided_slice %42 {offsets = [8, 0], sizes = [8, 16], strides = [1, 1]} : vector<16x64xf32> to vector<8x16xf32>
    %140 = vector.extract_strided_slice %46 {offsets = [8, 0], sizes = [8, 16], strides = [1, 1]} : vector<16x64xf32> to vector<8x16xf32>
    %141 = vector.extract_strided_slice %38 {offsets = [8, 0], sizes = [8, 16], strides = [1, 1]} : vector<16x64xf32> to vector<8x16xf32>
    %cst_53 = arith.constant dense<0.000000e+00> : vector<8x8xf32>
    %142 = tpu.matmul %139, %140, %cst_53 {dimension_numbers = #tpu.dot_dimension_numbers<[1], [1], [0], [0], [0, 0, 1, 0], [], []>} : vector<8x16xf32>, vector<8x16xf32>, vector<8x8xf32> -> vector<8x8xf32>
    %cst_54 = arith.constant 2.500000e-01 : f32
    %143 = vector.broadcast %cst_54 : f32 to vector<8x8xf32>
    %144 = arith.mulf %142, %143 : vector<8x8xf32>
    %145 = arith.addf %144, %138 : vector<8x8xf32>
    %cst_55 = arith.constant dense<0xFF800000> : vector<8xf32>
    %146 = vector.multi_reduction <maximumf>, %145, %cst_55 [1] : vector<8x8xf32> to vector<8xf32>
    %147 = vector.shape_cast %146 : vector<8xf32> to vector<8x1xf32>
    %148 = vector.broadcast %147 : vector<8x1xf32> to vector<8x8xf32>
    %149 = arith.subf %145, %148 : vector<8x8xf32>
    %150 = math.exp %149 : vector<8x8xf32>
    %cst_56 = arith.constant dense<0.000000e+00> : vector<8xf32>
    %151 = vector.multi_reduction <add>, %150, %cst_56 [1] : vector<8x8xf32> to vector<8xf32>
    %152 = vector.shape_cast %151 : vector<8xf32> to vector<8x1xf32>
    %153 = tpu.reciprocal %152 {approx = true} : vector<8x1xf32> -> vector<8x1xf32>
    %154 = vector.broadcast %153 : vector<8x1xf32> to vector<8x8xf32>
    %155 = arith.mulf %150, %154 : vector<8x8xf32>
    %cst_57 = arith.constant dense<0.000000e+00> : vector<8x16xf32>
    %156 = tpu.matmul %155, %141, %cst_57 {dimension_numbers = #tpu.dot_dimension_numbers<[1], [0], [0], [1], [0, 0, 1, 1], [], []>} : vector<8x8xf32>, vector<8x16xf32>, vector<8x16xf32> -> vector<8x16xf32>
    %c8 = arith.constant 8 : index
    %c0_58 = arith.constant 0 : index
    %157 = vector.load %arg17[%c8, %c0_58] : memref<16x64xf32, #tpu.memory_space<vmem>>, vector<8x16xf32>
    tpu.vector_store %arg17[%c8, %c0_58], %156 {strides = array<i32>} : memref<16x64xf32, #tpu.memory_space<vmem>>, vector<8x16xf32>,
    %158 = vector.extract_strided_slice %42 {offsets = [8, 16], sizes = [8, 16], strides = [1, 1]} : vector<16x64xf32> to vector<8x16xf32>
    %159 = vector.extract_strided_slice %46 {offsets = [8, 16], sizes = [8, 16], strides = [1, 1]} : vector<16x64xf32> to vector<8x16xf32>
    %160 = vector.extract_strided_slice %38 {offsets = [8, 16], sizes = [8, 16], strides = [1, 1]} : vector<16x64xf32> to vector<8x16xf32>
    %cst_59 = arith.constant dense<0.000000e+00> : vector<8x8xf32>
    %161 = tpu.matmul %158, %159, %cst_59 {dimension_numbers = #tpu.dot_dimension_numbers<[1], [1], [0], [0], [0, 0, 1, 0], [], []>} : vector<8x16xf32>, vector<8x16xf32>, vector<8x8xf32> -> vector<8x8xf32>
    %cst_60 = arith.constant 2.500000e-01 : f32
    %162 = vector.broadcast %cst_60 : f32 to vector<8x8xf32>
    %163 = arith.mulf %161, %162 : vector<8x8xf32>
    %164 = arith.addf %163, %138 : vector<8x8xf32>
    %cst_61 = arith.constant dense<0xFF800000> : vector<8xf32>
    %165 = vector.multi_reduction <maximumf>, %164, %cst_61 [1] : vector<8x8xf32> to vector<8xf32>
    %166 = vector.shape_cast %165 : vector<8xf32> to vector<8x1xf32>
    %167 = vector.broadcast %166 : vector<8x1xf32> to vector<8x8xf32>
    %168 = arith.subf %164, %167 : vector<8x8xf32>
    %169 = math.exp %168 : vector<8x8xf32>
    %cst_62 = arith.constant dense<0.000000e+00> : vector<8xf32>
    %170 = vector.multi_reduction <add>, %169, %cst_62 [1] : vector<8x8xf32> to vector<8xf32>
    %171 = vector.shape_cast %170 : vector<8xf32> to vector<8x1xf32>
    %172 = tpu.reciprocal %171 {approx = true} : vector<8x1xf32> -> vector<8x1xf32>
    %173 = vector.broadcast %172 : vector<8x1xf32> to vector<8x8xf32>
    %174 = arith.mulf %169, %173 : vector<8x8xf32>
    %cst_63 = arith.constant dense<0.000000e+00> : vector<8x16xf32>
    %175 = tpu.matmul %174, %160, %cst_63 {dimension_numbers = #tpu.dot_dimension_numbers<[1], [0], [0], [1], [0, 0, 1, 1], [], []>} : vector<8x8xf32>, vector<8x16xf32>, vector<8x16xf32> -> vector<8x16xf32>
    %c8_64 = arith.constant 8 : index
    %c16_65 = arith.constant 16 : index
    %176 = vector.load %arg17[%c8_64, %c16_65] : memref<16x64xf32, #tpu.memory_space<vmem>>, vector<8x16xf32>
    tpu.vector_store %arg17[%c8_64, %c16_65], %175 {strides = array<i32>} : memref<16x64xf32, #tpu.memory_space<vmem>>, vector<8x16xf32>,
    %177 = vector.extract_strided_slice %42 {offsets = [8, 32], sizes = [8, 16], strides = [1, 1]} : vector<16x64xf32> to vector<8x16xf32>
    %178 = vector.extract_strided_slice %46 {offsets = [8, 32], sizes = [8, 16], strides = [1, 1]} : vector<16x64xf32> to vector<8x16xf32>
    %179 = vector.extract_strided_slice %38 {offsets = [8, 32], sizes = [8, 16], strides = [1, 1]} : vector<16x64xf32> to vector<8x16xf32>
    %cst_66 = arith.constant dense<0.000000e+00> : vector<8x8xf32>
    %180 = tpu.matmul %177, %178, %cst_66 {dimension_numbers = #tpu.dot_dimension_numbers<[1], [1], [0], [0], [0, 0, 1, 0], [], []>} : vector<8x16xf32>, vector<8x16xf32>, vector<8x8xf32> -> vector<8x8xf32>
    %cst_67 = arith.constant 2.500000e-01 : f32
    %181 = vector.broadcast %cst_67 : f32 to vector<8x8xf32>
    %182 = arith.mulf %180, %181 : vector<8x8xf32>
    %183 = arith.addf %182, %138 : vector<8x8xf32>
    %cst_68 = arith.constant dense<0xFF800000> : vector<8xf32>
    %184 = vector.multi_reduction <maximumf>, %183, %cst_68 [1] : vector<8x8xf32> to vector<8xf32>
    %185 = vector.shape_cast %184 : vector<8xf32> to vector<8x1xf32>
    %186 = vector.broadcast %185 : vector<8x1xf32> to vector<8x8xf32>
    %187 = arith.subf %183, %186 : vector<8x8xf32>
    %188 = math.exp %187 : vector<8x8xf32>
    %cst_69 = arith.constant dense<0.000000e+00> : vector<8xf32>
    %189 = vector.multi_reduction <add>, %188, %cst_69 [1] : vector<8x8xf32> to vector<8xf32>
    %190 = vector.shape_cast %189 : vector<8xf32> to vector<8x1xf32>
    %191 = tpu.reciprocal %190 {approx = true} : vector<8x1xf32> -> vector<8x1xf32>
    %192 = vector.broadcast %191 : vector<8x1xf32> to vector<8x8xf32>
    %193 = arith.mulf %188, %192 : vector<8x8xf32>
    %cst_70 = arith.constant dense<0.000000e+00> : vector<8x16xf32>
    %194 = tpu.matmul %193, %179, %cst_70 {dimension_numbers = #tpu.dot_dimension_numbers<[1], [0], [0], [1], [0, 0, 1, 1], [], []>} : vector<8x8xf32>, vector<8x16xf32>, vector<8x16xf32> -> vector<8x16xf32>
    %c8_71 = arith.constant 8 : index
    %c32_72 = arith.constant 32 : index
    %195 = vector.load %arg17[%c8_71, %c32_72] : memref<16x64xf32, #tpu.memory_space<vmem>>, vector<8x16xf32>
    tpu.vector_store %arg17[%c8_71, %c32_72], %194 {strides = array<i32>} : memref<16x64xf32, #tpu.memory_space<vmem>>, vector<8x16xf32>,
    %196 = vector.extract_strided_slice %42 {offsets = [8, 48], sizes = [8, 16], strides = [1, 1]} : vector<16x64xf32> to vector<8x16xf32>
    %197 = vector.extract_strided_slice %46 {offsets = [8, 48], sizes = [8, 16], strides = [1, 1]} : vector<16x64xf32> to vector<8x16xf32>
    %198 = vector.extract_strided_slice %38 {offsets = [8, 48], sizes = [8, 16], strides = [1, 1]} : vector<16x64xf32> to vector<8x16xf32>
    %cst_73 = arith.constant dense<0.000000e+00> : vector<8x8xf32>
    %199 = tpu.matmul %196, %197, %cst_73 {dimension_numbers = #tpu.dot_dimension_numbers<[1], [1], [0], [0], [0, 0, 1, 0], [], []>} : vector<8x16xf32>, vector<8x16xf32>, vector<8x8xf32> -> vector<8x8xf32>
    %cst_74 = arith.constant 2.500000e-01 : f32
    %200 = vector.broadcast %cst_74 : f32 to vector<8x8xf32>
    %201 = arith.mulf %199, %200 : vector<8x8xf32>
    %202 = arith.addf %201, %138 : vector<8x8xf32>
    %cst_75 = arith.constant dense<0xFF800000> : vector<8xf32>
    %203 = vector.multi_reduction <maximumf>, %202, %cst_75 [1] : vector<8x8xf32> to vector<8xf32>
    %204 = vector.shape_cast %203 : vector<8xf32> to vector<8x1xf32>
    %205 = vector.broadcast %204 : vector<8x1xf32> to vector<8x8xf32>
    %206 = arith.subf %202, %205 : vector<8x8xf32>
    %207 = math.exp %206 : vector<8x8xf32>
    %cst_76 = arith.constant dense<0.000000e+00> : vector<8xf32>
    %208 = vector.multi_reduction <add>, %207, %cst_76 [1] : vector<8x8xf32> to vector<8xf32>
    %209 = vector.shape_cast %208 : vector<8xf32> to vector<8x1xf32>
    %210 = tpu.reciprocal %209 {approx = true} : vector<8x1xf32> -> vector<8x1xf32>
    %211 = vector.broadcast %210 : vector<8x1xf32> to vector<8x8xf32>
    %212 = arith.mulf %207, %211 : vector<8x8xf32>
    %cst_77 = arith.constant dense<0.000000e+00> : vector<8x16xf32>
    %213 = tpu.matmul %212, %198, %cst_77 {dimension_numbers = #tpu.dot_dimension_numbers<[1], [0], [0], [1], [0, 0, 1, 1], [], []>} : vector<8x8xf32>, vector<8x16xf32>, vector<8x16xf32> -> vector<8x16xf32>
    %c8_78 = arith.constant 8 : index
    %c48_79 = arith.constant 48 : index
    %214 = vector.load %arg17[%c8_78, %c48_79] : memref<16x64xf32, #tpu.memory_space<vmem>>, vector<8x16xf32>
    tpu.vector_store %arg17[%c8_78, %c48_79], %213 {strides = array<i32>} : memref<16x64xf32, #tpu.memory_space<vmem>>, vector<8x16xf32>,
    %c0_80 = arith.constant 0 : index
    %c0_81 = arith.constant 0 : index
    %215 = vector.load %arg17[%c0_80, %c0_81] : memref<16x64xf32, #tpu.memory_space<vmem>>, vector<16x64xf32>
    %c0_82 = arith.constant 0 : index
    %c0_83 = arith.constant 0 : index
    %c0_84 = arith.constant 0 : index
    %216 = vector.load %arg7[%c0_82, %c0_83, %c0_84] : memref<2x64x64xf32, #tpu.memory_space<vmem>>, vector<1x64x64xf32>
    %217 = vector.shape_cast %216 : vector<1x64x64xf32> to vector<64x64xf32>
    %cst_85 = arith.constant dense<0.000000e+00> : vector<16x64xf32>
    %218 = tpu.matmul %215, %217, %cst_85 {dimension_numbers = #tpu.dot_dimension_numbers<[1], [0], [0], [1], [0, 0, 1, 1], [], []>} : vector<16x64xf32>, vector<64x64xf32>, vector<16x64xf32> -> vector<16x64xf32>
    %219 = arith.addf %7, %218 : vector<16x64xf32>
    %cst_86 = arith.constant dense<0.000000e+00> : vector<16xf32>
    %220 = vector.multi_reduction <add>, %219, %cst_86 [1] : vector<16x64xf32> to vector<16xf32>
    %221 = vector.shape_cast %220 : vector<16xf32> to vector<16x1xf32>
    %cst_87 = arith.constant 6.400000e+01 : f32
    %222 = vector.broadcast %cst_87 : f32 to vector<16x1xf32>
    %223 = arith.divf %221, %222 : vector<16x1xf32>
    %224 = vector.broadcast %223 : vector<16x1xf32> to vector<16x64xf32>
    %225 = arith.subf %219, %224 : vector<16x64xf32>
    %226 = arith.mulf %225, %225 : vector<16x64xf32>
    %cst_88 = arith.constant dense<0.000000e+00> : vector<16xf32>
    %227 = vector.multi_reduction <add>, %226, %cst_88 [1] : vector<16x64xf32> to vector<16xf32>
    %228 = vector.shape_cast %227 : vector<16xf32> to vector<16x1xf32>
    %cst_89 = arith.constant 6.400000e+01 : f32
    %229 = vector.broadcast %cst_89 : f32 to vector<16x1xf32>
    %230 = arith.divf %228, %229 : vector<16x1xf32>
    %231 = vector.broadcast %223 : vector<16x1xf32> to vector<16x64xf32>
    %232 = arith.subf %219, %231 : vector<16x64xf32>
    %cst_90 = arith.constant 9.99999974E-6 : f32
    %233 = vector.broadcast %cst_90 : f32 to vector<16x1xf32>
    %234 = arith.addf %230, %233 : vector<16x1xf32>
    %235 = math.rsqrt %234 : vector<16x1xf32>
    %236 = vector.broadcast %235 : vector<16x1xf32> to vector<16x64xf32>
    %237 = arith.mulf %232, %236 : vector<16x64xf32>
    %c0_91 = arith.constant 0 : index
    %c0_92 = arith.constant 0 : index
    %c0_93 = arith.constant 0 : index
    %238 = vector.load %arg8[%c0_91, %c0_92, %c0_93] : memref<2x64x256xf32, #tpu.memory_space<vmem>>, vector<1x64x256xf32>
    %239 = vector.shape_cast %238 : vector<1x64x256xf32> to vector<64x256xf32>
    %cst_94 = arith.constant dense<0.000000e+00> : vector<16x256xf32>
    %240 = tpu.matmul %237, %239, %cst_94 {dimension_numbers = #tpu.dot_dimension_numbers<[1], [0], [0], [1], [0, 0, 1, 1], [], []>} : vector<16x64xf32>, vector<64x256xf32>, vector<16x256xf32> -> vector<16x256xf32>
    %241 = vector.extract_strided_slice %240 {offsets = [0, 0], sizes = [16, 128], strides = [1, 1]} : vector<16x256xf32> to vector<16x128xf32>
    %242 = vector.extract_strided_slice %240 {offsets = [0, 128], sizes = [16, 128], strides = [1, 1]} : vector<16x256xf32> to vector<16x128xf32>
    %243 = arith.negf %241 : vector<16x128xf32>
    %244 = math.exp %243 : vector<16x128xf32>
    %cst_95 = arith.constant 1.000000e+00 : f32
    %245 = vector.broadcast %cst_95 : f32 to vector<16x128xf32>
    %246 = arith.addf %245, %244 : vector<16x128xf32>
    %247 = arith.divf %245, %246 : vector<16x128xf32>
    %248 = arith.mulf %241, %247 : vector<16x128xf32>
    %249 = arith.mulf %248, %242 : vector<16x128xf32>
    %c0_96 = arith.constant 0 : index
    %c0_97 = arith.constant 0 : index
    %c0_98 = arith.constant 0 : index
    %250 = vector.load %arg9[%c0_96, %c0_97, %c0_98] : memref<2x128x64xf32, #tpu.memory_space<vmem>>, vector<1x128x64xf32>
    %251 = vector.shape_cast %250 : vector<1x128x64xf32> to vector<128x64xf32>
    %cst_99 = arith.constant dense<0.000000e+00> : vector<16x64xf32>
    %252 = tpu.matmul %249, %251, %cst_99 {dimension_numbers = #tpu.dot_dimension_numbers<[1], [0], [0], [1], [0, 0, 1, 1], [], []>} : vector<16x128xf32>, vector<128x64xf32>, vector<16x64xf32> -> vector<16x64xf32>
    %253 = arith.addf %219, %252 : vector<16x64xf32>
    %cst_100 = arith.constant dense<0.000000e+00> : vector<16xf32>
    %254 = vector.multi_reduction <add>, %253, %cst_100 [1] : vector<16x64xf32> to vector<16xf32>
    %255 = vector.shape_cast %254 : vector<16xf32> to vector<16x1xf32>
    %cst_101 = arith.constant 6.400000e+01 : f32
    %256 = vector.broadcast %cst_101 : f32 to vector<16x1xf32>
    %257 = arith.divf %255, %256 : vector<16x1xf32>
    %258 = vector.broadcast %257 : vector<16x1xf32> to vector<16x64xf32>
    %259 = arith.subf %253, %258 : vector<16x64xf32>
    %260 = arith.mulf %259, %259 : vector<16x64xf32>
    %cst_102 = arith.constant dense<0.000000e+00> : vector<16xf32>
    %261 = vector.multi_reduction <add>, %260, %cst_102 [1] : vector<16x64xf32> to vector<16xf32>
    %262 = vector.shape_cast %261 : vector<16xf32> to vector<16x1xf32>
    %cst_103 = arith.constant 6.400000e+01 : f32
    %263 = vector.broadcast %cst_103 : f32 to vector<16x1xf32>
    %264 = arith.divf %262, %263 : vector<16x1xf32>
    %265 = vector.broadcast %257 : vector<16x1xf32> to vector<16x64xf32>
    %266 = arith.subf %253, %265 : vector<16x64xf32>
    %cst_104 = arith.constant 9.99999974E-6 : f32
    %267 = vector.broadcast %cst_104 : f32 to vector<16x1xf32>
    %268 = arith.addf %264, %267 : vector<16x1xf32>
    %269 = math.rsqrt %268 : vector<16x1xf32>
    %270 = vector.broadcast %269 : vector<16x1xf32> to vector<16x64xf32>
    %271 = arith.mulf %266, %270 : vector<16x64xf32>
    %c1 = arith.constant 1 : index
    %c0_105 = arith.constant 0 : index
    %c0_106 = arith.constant 0 : index
    %272 = vector.load %arg6[%c1, %c0_105, %c0_106] : memref<2x64x192xf32, #tpu.memory_space<vmem>>, vector<1x64x192xf32>
    %273 = vector.shape_cast %272 : vector<1x64x192xf32> to vector<64x192xf32>
    %cst_107 = arith.constant dense<0.000000e+00> : vector<16x192xf32>
    %274 = tpu.matmul %271, %273, %cst_107 {dimension_numbers = #tpu.dot_dimension_numbers<[1], [0], [0], [1], [0, 0, 1, 1], [], []>} : vector<16x64xf32>, vector<64x192xf32>, vector<16x192xf32> -> vector<16x192xf32>
    %275 = vector.extract_strided_slice %274 {offsets = [0, 0], sizes = [16, 64], strides = [1, 1]} : vector<16x192xf32> to vector<16x64xf32>
    %276 = vector.extract_strided_slice %274 {offsets = [0, 64], sizes = [16, 64], strides = [1, 1]} : vector<16x192xf32> to vector<16x64xf32>
    %277 = vector.extract_strided_slice %274 {offsets = [0, 128], sizes = [16, 64], strides = [1, 1]} : vector<16x192xf32> to vector<16x64xf32>
    %278 = arith.mulf %275, %8 : vector<16x64xf32>
    %cst_108 = arith.constant dense<0.000000e+00> : vector<16x64xf32>
    %279 = tpu.matmul %275, %10, %cst_108 {dimension_numbers = #tpu.dot_dimension_numbers<[1], [0], [0], [1], [0, 0, 1, 1], [], []>} : vector<16x64xf32>, vector<64x64xf32>, vector<16x64xf32> -> vector<16x64xf32>
    %280 = arith.mulf %279, %9 : vector<16x64xf32>
    %281 = arith.addf %278, %280 : vector<16x64xf32>
    %282 = arith.mulf %276, %8 : vector<16x64xf32>
    %cst_109 = arith.constant dense<0.000000e+00> : vector<16x64xf32>
    %283 = tpu.matmul %276, %10, %cst_109 {dimension_numbers = #tpu.dot_dimension_numbers<[1], [0], [0], [1], [0, 0, 1, 1], [], []>} : vector<16x64xf32>, vector<64x64xf32>, vector<16x64xf32> -> vector<16x64xf32>
    %284 = arith.mulf %283, %9 : vector<16x64xf32>
    %285 = arith.addf %282, %284 : vector<16x64xf32>
    %286 = vector.extract_strided_slice %11 {offsets = [0, 0], sizes = [1, 8], strides = [1, 1]} : vector<2x8xf32> to vector<1x8xf32>
    %cst_110 = arith.constant 0.000000e+00 : f32
    %287 = vector.broadcast %cst_110 : f32 to vector<1x8xf32>
    %288 = arith.cmpf ogt, %286, %287 : vector<1x8xf32>
    %289 = vector.broadcast %288 : vector<1x8xi1> to vector<8x8xi1>
    %290 = arith.andi %14, %289 : vector<8x8xi1>
    %cst_111 = arith.constant 0.000000e+00 : f32
    %cst_112 = arith.constant -1.000000e+09 : f32
    %291 = vector.broadcast %cst_111 : f32 to vector<8x8xf32>
    %292 = vector.broadcast %cst_112 : f32 to vector<8x8xf32>
    %293 = arith.select %290, %291, %292 : vector<8x8xi1>, vector<8x8xf32>
    %294 = vector.extract_strided_slice %281 {offsets = [0, 0], sizes = [8, 16], strides = [1, 1]} : vector<16x64xf32> to vector<8x16xf32>
    %295 = vector.extract_strided_slice %285 {offsets = [0, 0], sizes = [8, 16], strides = [1, 1]} : vector<16x64xf32> to vector<8x16xf32>
    %296 = vector.extract_strided_slice %277 {offsets = [0, 0], sizes = [8, 16], strides = [1, 1]} : vector<16x64xf32> to vector<8x16xf32>
    %cst_113 = arith.constant dense<0.000000e+00> : vector<8x8xf32>
    %297 = tpu.matmul %294, %295, %cst_113 {dimension_numbers = #tpu.dot_dimension_numbers<[1], [1], [0], [0], [0, 0, 1, 0], [], []>} : vector<8x16xf32>, vector<8x16xf32>, vector<8x8xf32> -> vector<8x8xf32>
    %cst_114 = arith.constant 2.500000e-01 : f32
    %298 = vector.broadcast %cst_114 : f32 to vector<8x8xf32>
    %299 = arith.mulf %297, %298 : vector<8x8xf32>
    %300 = arith.addf %299, %293 : vector<8x8xf32>
    %cst_115 = arith.constant dense<0xFF800000> : vector<8xf32>
    %301 = vector.multi_reduction <maximumf>, %300, %cst_115 [1] : vector<8x8xf32> to vector<8xf32>
    %302 = vector.shape_cast %301 : vector<8xf32> to vector<8x1xf32>
    %303 = vector.broadcast %302 : vector<8x1xf32> to vector<8x8xf32>
    %304 = arith.subf %300, %303 : vector<8x8xf32>
    %305 = math.exp %304 : vector<8x8xf32>
    %cst_116 = arith.constant dense<0.000000e+00> : vector<8xf32>
    %306 = vector.multi_reduction <add>, %305, %cst_116 [1] : vector<8x8xf32> to vector<8xf32>
    %307 = vector.shape_cast %306 : vector<8xf32> to vector<8x1xf32>
    %308 = tpu.reciprocal %307 {approx = true} : vector<8x1xf32> -> vector<8x1xf32>
    %309 = vector.broadcast %308 : vector<8x1xf32> to vector<8x8xf32>
    %310 = arith.mulf %305, %309 : vector<8x8xf32>
    %cst_117 = arith.constant dense<0.000000e+00> : vector<8x16xf32>
    %311 = tpu.matmul %310, %296, %cst_117 {dimension_numbers = #tpu.dot_dimension_numbers<[1], [0], [0], [1], [0, 0, 1, 1], [], []>} : vector<8x8xf32>, vector<8x16xf32>, vector<8x16xf32> -> vector<8x16xf32>
    %c0_118 = arith.constant 0 : index
    %c0_119 = arith.constant 0 : index
    %312 = vector.load %arg17[%c0_118, %c0_119] : memref<16x64xf32, #tpu.memory_space<vmem>>, vector<8x16xf32>
    tpu.vector_store %arg17[%c0_118, %c0_119], %311 {strides = array<i32>} : memref<16x64xf32, #tpu.memory_space<vmem>>, vector<8x16xf32>,
    %313 = vector.extract_strided_slice %281 {offsets = [0, 16], sizes = [8, 16], strides = [1, 1]} : vector<16x64xf32> to vector<8x16xf32>
    %314 = vector.extract_strided_slice %285 {offsets = [0, 16], sizes = [8, 16], strides = [1, 1]} : vector<16x64xf32> to vector<8x16xf32>
    %315 = vector.extract_strided_slice %277 {offsets = [0, 16], sizes = [8, 16], strides = [1, 1]} : vector<16x64xf32> to vector<8x16xf32>
    %cst_120 = arith.constant dense<0.000000e+00> : vector<8x8xf32>
    %316 = tpu.matmul %313, %314, %cst_120 {dimension_numbers = #tpu.dot_dimension_numbers<[1], [1], [0], [0], [0, 0, 1, 0], [], []>} : vector<8x16xf32>, vector<8x16xf32>, vector<8x8xf32> -> vector<8x8xf32>
    %cst_121 = arith.constant 2.500000e-01 : f32
    %317 = vector.broadcast %cst_121 : f32 to vector<8x8xf32>
    %318 = arith.mulf %316, %317 : vector<8x8xf32>
    %319 = arith.addf %318, %293 : vector<8x8xf32>
    %cst_122 = arith.constant dense<0xFF800000> : vector<8xf32>
    %320 = vector.multi_reduction <maximumf>, %319, %cst_122 [1] : vector<8x8xf32> to vector<8xf32>
    %321 = vector.shape_cast %320 : vector<8xf32> to vector<8x1xf32>
    %322 = vector.broadcast %321 : vector<8x1xf32> to vector<8x8xf32>
    %323 = arith.subf %319, %322 : vector<8x8xf32>
    %324 = math.exp %323 : vector<8x8xf32>
    %cst_123 = arith.constant dense<0.000000e+00> : vector<8xf32>
    %325 = vector.multi_reduction <add>, %324, %cst_123 [1] : vector<8x8xf32> to vector<8xf32>
    %326 = vector.shape_cast %325 : vector<8xf32> to vector<8x1xf32>
    %327 = tpu.reciprocal %326 {approx = true} : vector<8x1xf32> -> vector<8x1xf32>
    %328 = vector.broadcast %327 : vector<8x1xf32> to vector<8x8xf32>
    %329 = arith.mulf %324, %328 : vector<8x8xf32>
    %cst_124 = arith.constant dense<0.000000e+00> : vector<8x16xf32>
    %330 = tpu.matmul %329, %315, %cst_124 {dimension_numbers = #tpu.dot_dimension_numbers<[1], [0], [0], [1], [0, 0, 1, 1], [], []>} : vector<8x8xf32>, vector<8x16xf32>, vector<8x16xf32> -> vector<8x16xf32>
    %c0_125 = arith.constant 0 : index
    %c16_126 = arith.constant 16 : index
    %331 = vector.load %arg17[%c0_125, %c16_126] : memref<16x64xf32, #tpu.memory_space<vmem>>, vector<8x16xf32>
    tpu.vector_store %arg17[%c0_125, %c16_126], %330 {strides = array<i32>} : memref<16x64xf32, #tpu.memory_space<vmem>>, vector<8x16xf32>,
    %332 = vector.extract_strided_slice %281 {offsets = [0, 32], sizes = [8, 16], strides = [1, 1]} : vector<16x64xf32> to vector<8x16xf32>
    %333 = vector.extract_strided_slice %285 {offsets = [0, 32], sizes = [8, 16], strides = [1, 1]} : vector<16x64xf32> to vector<8x16xf32>
    %334 = vector.extract_strided_slice %277 {offsets = [0, 32], sizes = [8, 16], strides = [1, 1]} : vector<16x64xf32> to vector<8x16xf32>
    %cst_127 = arith.constant dense<0.000000e+00> : vector<8x8xf32>
    %335 = tpu.matmul %332, %333, %cst_127 {dimension_numbers = #tpu.dot_dimension_numbers<[1], [1], [0], [0], [0, 0, 1, 0], [], []>} : vector<8x16xf32>, vector<8x16xf32>, vector<8x8xf32> -> vector<8x8xf32>
    %cst_128 = arith.constant 2.500000e-01 : f32
    %336 = vector.broadcast %cst_128 : f32 to vector<8x8xf32>
    %337 = arith.mulf %335, %336 : vector<8x8xf32>
    %338 = arith.addf %337, %293 : vector<8x8xf32>
    %cst_129 = arith.constant dense<0xFF800000> : vector<8xf32>
    %339 = vector.multi_reduction <maximumf>, %338, %cst_129 [1] : vector<8x8xf32> to vector<8xf32>
    %340 = vector.shape_cast %339 : vector<8xf32> to vector<8x1xf32>
    %341 = vector.broadcast %340 : vector<8x1xf32> to vector<8x8xf32>
    %342 = arith.subf %338, %341 : vector<8x8xf32>
    %343 = math.exp %342 : vector<8x8xf32>
    %cst_130 = arith.constant dense<0.000000e+00> : vector<8xf32>
    %344 = vector.multi_reduction <add>, %343, %cst_130 [1] : vector<8x8xf32> to vector<8xf32>
    %345 = vector.shape_cast %344 : vector<8xf32> to vector<8x1xf32>
    %346 = tpu.reciprocal %345 {approx = true} : vector<8x1xf32> -> vector<8x1xf32>
    %347 = vector.broadcast %346 : vector<8x1xf32> to vector<8x8xf32>
    %348 = arith.mulf %343, %347 : vector<8x8xf32>
    %cst_131 = arith.constant dense<0.000000e+00> : vector<8x16xf32>
    %349 = tpu.matmul %348, %334, %cst_131 {dimension_numbers = #tpu.dot_dimension_numbers<[1], [0], [0], [1], [0, 0, 1, 1], [], []>} : vector<8x8xf32>, vector<8x16xf32>, vector<8x16xf32> -> vector<8x16xf32>
    %c0_132 = arith.constant 0 : index
    %c32_133 = arith.constant 32 : index
    %350 = vector.load %arg17[%c0_132, %c32_133] : memref<16x64xf32, #tpu.memory_space<vmem>>, vector<8x16xf32>
    tpu.vector_store %arg17[%c0_132, %c32_133], %349 {strides = array<i32>} : memref<16x64xf32, #tpu.memory_space<vmem>>, vector<8x16xf32>,
    %351 = vector.extract_strided_slice %281 {offsets = [0, 48], sizes = [8, 16], strides = [1, 1]} : vector<16x64xf32> to vector<8x16xf32>
    %352 = vector.extract_strided_slice %285 {offsets = [0, 48], sizes = [8, 16], strides = [1, 1]} : vector<16x64xf32> to vector<8x16xf32>
    %353 = vector.extract_strided_slice %277 {offsets = [0, 48], sizes = [8, 16], strides = [1, 1]} : vector<16x64xf32> to vector<8x16xf32>
    %cst_134 = arith.constant dense<0.000000e+00> : vector<8x8xf32>
    %354 = tpu.matmul %351, %352, %cst_134 {dimension_numbers = #tpu.dot_dimension_numbers<[1], [1], [0], [0], [0, 0, 1, 0], [], []>} : vector<8x16xf32>, vector<8x16xf32>, vector<8x8xf32> -> vector<8x8xf32>
    %cst_135 = arith.constant 2.500000e-01 : f32
    %355 = vector.broadcast %cst_135 : f32 to vector<8x8xf32>
    %356 = arith.mulf %354, %355 : vector<8x8xf32>
    %357 = arith.addf %356, %293 : vector<8x8xf32>
    %cst_136 = arith.constant dense<0xFF800000> : vector<8xf32>
    %358 = vector.multi_reduction <maximumf>, %357, %cst_136 [1] : vector<8x8xf32> to vector<8xf32>
    %359 = vector.shape_cast %358 : vector<8xf32> to vector<8x1xf32>
    %360 = vector.broadcast %359 : vector<8x1xf32> to vector<8x8xf32>
    %361 = arith.subf %357, %360 : vector<8x8xf32>
    %362 = math.exp %361 : vector<8x8xf32>
    %cst_137 = arith.constant dense<0.000000e+00> : vector<8xf32>
    %363 = vector.multi_reduction <add>, %362, %cst_137 [1] : vector<8x8xf32> to vector<8xf32>
    %364 = vector.shape_cast %363 : vector<8xf32> to vector<8x1xf32>
    %365 = tpu.reciprocal %364 {approx = true} : vector<8x1xf32> -> vector<8x1xf32>
    %366 = vector.broadcast %365 : vector<8x1xf32> to vector<8x8xf32>
    %367 = arith.mulf %362, %366 : vector<8x8xf32>
    %cst_138 = arith.constant dense<0.000000e+00> : vector<8x16xf32>
    %368 = tpu.matmul %367, %353, %cst_138 {dimension_numbers = #tpu.dot_dimension_numbers<[1], [0], [0], [1], [0, 0, 1, 1], [], []>} : vector<8x8xf32>, vector<8x16xf32>, vector<8x16xf32> -> vector<8x16xf32>
    %c0_139 = arith.constant 0 : index
    %c48_140 = arith.constant 48 : index
    %369 = vector.load %arg17[%c0_139, %c48_140] : memref<16x64xf32, #tpu.memory_space<vmem>>, vector<8x16xf32>
    tpu.vector_store %arg17[%c0_139, %c48_140], %368 {strides = array<i32>} : memref<16x64xf32, #tpu.memory_space<vmem>>, vector<8x16xf32>,
    %370 = vector.extract_strided_slice %11 {offsets = [1, 0], sizes = [1, 8], strides = [1, 1]} : vector<2x8xf32> to vector<1x8xf32>
    %cst_141 = arith.constant 0.000000e+00 : f32
    %371 = vector.broadcast %cst_141 : f32 to vector<1x8xf32>
    %372 = arith.cmpf ogt, %370, %371 : vector<1x8xf32>
    %373 = vector.broadcast %372 : vector<1x8xi1> to vector<8x8xi1>
    %374 = arith.andi %14, %373 : vector<8x8xi1>
    %cst_142 = arith.constant 0.000000e+00 : f32
    %cst_143 = arith.constant -1.000000e+09 : f32
    %375 = vector.broadcast %cst_142 : f32 to vector<8x8xf32>
    %376 = vector.broadcast %cst_143 : f32 to vector<8x8xf32>
    %377 = arith.select %374, %375, %376 : vector<8x8xi1>, vector<8x8xf32>
    %378 = vector.extract_strided_slice %281 {offsets = [8, 0], sizes = [8, 16], strides = [1, 1]} : vector<16x64xf32> to vector<8x16xf32>
    %379 = vector.extract_strided_slice %285 {offsets = [8, 0], sizes = [8, 16], strides = [1, 1]} : vector<16x64xf32> to vector<8x16xf32>
    %380 = vector.extract_strided_slice %277 {offsets = [8, 0], sizes = [8, 16], strides = [1, 1]} : vector<16x64xf32> to vector<8x16xf32>
    %cst_144 = arith.constant dense<0.000000e+00> : vector<8x8xf32>
    %381 = tpu.matmul %378, %379, %cst_144 {dimension_numbers = #tpu.dot_dimension_numbers<[1], [1], [0], [0], [0, 0, 1, 0], [], []>} : vector<8x16xf32>, vector<8x16xf32>, vector<8x8xf32> -> vector<8x8xf32>
    %cst_145 = arith.constant 2.500000e-01 : f32
    %382 = vector.broadcast %cst_145 : f32 to vector<8x8xf32>
    %383 = arith.mulf %381, %382 : vector<8x8xf32>
    %384 = arith.addf %383, %377 : vector<8x8xf32>
    %cst_146 = arith.constant dense<0xFF800000> : vector<8xf32>
    %385 = vector.multi_reduction <maximumf>, %384, %cst_146 [1] : vector<8x8xf32> to vector<8xf32>
    %386 = vector.shape_cast %385 : vector<8xf32> to vector<8x1xf32>
    %387 = vector.broadcast %386 : vector<8x1xf32> to vector<8x8xf32>
    %388 = arith.subf %384, %387 : vector<8x8xf32>
    %389 = math.exp %388 : vector<8x8xf32>
    %cst_147 = arith.constant dense<0.000000e+00> : vector<8xf32>
    %390 = vector.multi_reduction <add>, %389, %cst_147 [1] : vector<8x8xf32> to vector<8xf32>
    %391 = vector.shape_cast %390 : vector<8xf32> to vector<8x1xf32>
    %392 = tpu.reciprocal %391 {approx = true} : vector<8x1xf32> -> vector<8x1xf32>
    %393 = vector.broadcast %392 : vector<8x1xf32> to vector<8x8xf32>
    %394 = arith.mulf %389, %393 : vector<8x8xf32>
    %cst_148 = arith.constant dense<0.000000e+00> : vector<8x16xf32>
    %395 = tpu.matmul %394, %380, %cst_148 {dimension_numbers = #tpu.dot_dimension_numbers<[1], [0], [0], [1], [0, 0, 1, 1], [], []>} : vector<8x8xf32>, vector<8x16xf32>, vector<8x16xf32> -> vector<8x16xf32>
    %c8_149 = arith.constant 8 : index
    %c0_150 = arith.constant 0 : index
    %396 = vector.load %arg17[%c8_149, %c0_150] : memref<16x64xf32, #tpu.memory_space<vmem>>, vector<8x16xf32>
    tpu.vector_store %arg17[%c8_149, %c0_150], %395 {strides = array<i32>} : memref<16x64xf32, #tpu.memory_space<vmem>>, vector<8x16xf32>,
    %397 = vector.extract_strided_slice %281 {offsets = [8, 16], sizes = [8, 16], strides = [1, 1]} : vector<16x64xf32> to vector<8x16xf32>
    %398 = vector.extract_strided_slice %285 {offsets = [8, 16], sizes = [8, 16], strides = [1, 1]} : vector<16x64xf32> to vector<8x16xf32>
    %399 = vector.extract_strided_slice %277 {offsets = [8, 16], sizes = [8, 16], strides = [1, 1]} : vector<16x64xf32> to vector<8x16xf32>
    %cst_151 = arith.constant dense<0.000000e+00> : vector<8x8xf32>
    %400 = tpu.matmul %397, %398, %cst_151 {dimension_numbers = #tpu.dot_dimension_numbers<[1], [1], [0], [0], [0, 0, 1, 0], [], []>} : vector<8x16xf32>, vector<8x16xf32>, vector<8x8xf32> -> vector<8x8xf32>
    %cst_152 = arith.constant 2.500000e-01 : f32
    %401 = vector.broadcast %cst_152 : f32 to vector<8x8xf32>
    %402 = arith.mulf %400, %401 : vector<8x8xf32>
    %403 = arith.addf %402, %377 : vector<8x8xf32>
    %cst_153 = arith.constant dense<0xFF800000> : vector<8xf32>
    %404 = vector.multi_reduction <maximumf>, %403, %cst_153 [1] : vector<8x8xf32> to vector<8xf32>
    %405 = vector.shape_cast %404 : vector<8xf32> to vector<8x1xf32>
    %406 = vector.broadcast %405 : vector<8x1xf32> to vector<8x8xf32>
    %407 = arith.subf %403, %406 : vector<8x8xf32>
    %408 = math.exp %407 : vector<8x8xf32>
    %cst_154 = arith.constant dense<0.000000e+00> : vector<8xf32>
    %409 = vector.multi_reduction <add>, %408, %cst_154 [1] : vector<8x8xf32> to vector<8xf32>
    %410 = vector.shape_cast %409 : vector<8xf32> to vector<8x1xf32>
    %411 = tpu.reciprocal %410 {approx = true} : vector<8x1xf32> -> vector<8x1xf32>
    %412 = vector.broadcast %411 : vector<8x1xf32> to vector<8x8xf32>
    %413 = arith.mulf %408, %412 : vector<8x8xf32>
    %cst_155 = arith.constant dense<0.000000e+00> : vector<8x16xf32>
    %414 = tpu.matmul %413, %399, %cst_155 {dimension_numbers = #tpu.dot_dimension_numbers<[1], [0], [0], [1], [0, 0, 1, 1], [], []>} : vector<8x8xf32>, vector<8x16xf32>, vector<8x16xf32> -> vector<8x16xf32>
    %c8_156 = arith.constant 8 : index
    %c16_157 = arith.constant 16 : index
    %415 = vector.load %arg17[%c8_156, %c16_157] : memref<16x64xf32, #tpu.memory_space<vmem>>, vector<8x16xf32>
    tpu.vector_store %arg17[%c8_156, %c16_157], %414 {strides = array<i32>} : memref<16x64xf32, #tpu.memory_space<vmem>>, vector<8x16xf32>,
    %416 = vector.extract_strided_slice %281 {offsets = [8, 32], sizes = [8, 16], strides = [1, 1]} : vector<16x64xf32> to vector<8x16xf32>
    %417 = vector.extract_strided_slice %285 {offsets = [8, 32], sizes = [8, 16], strides = [1, 1]} : vector<16x64xf32> to vector<8x16xf32>
    %418 = vector.extract_strided_slice %277 {offsets = [8, 32], sizes = [8, 16], strides = [1, 1]} : vector<16x64xf32> to vector<8x16xf32>
    %cst_158 = arith.constant dense<0.000000e+00> : vector<8x8xf32>
    %419 = tpu.matmul %416, %417, %cst_158 {dimension_numbers = #tpu.dot_dimension_numbers<[1], [1], [0], [0], [0, 0, 1, 0], [], []>} : vector<8x16xf32>, vector<8x16xf32>, vector<8x8xf32> -> vector<8x8xf32>
    %cst_159 = arith.constant 2.500000e-01 : f32
    %420 = vector.broadcast %cst_159 : f32 to vector<8x8xf32>
    %421 = arith.mulf %419, %420 : vector<8x8xf32>
    %422 = arith.addf %421, %377 : vector<8x8xf32>
    %cst_160 = arith.constant dense<0xFF800000> : vector<8xf32>
    %423 = vector.multi_reduction <maximumf>, %422, %cst_160 [1] : vector<8x8xf32> to vector<8xf32>
    %424 = vector.shape_cast %423 : vector<8xf32> to vector<8x1xf32>
    %425 = vector.broadcast %424 : vector<8x1xf32> to vector<8x8xf32>
    %426 = arith.subf %422, %425 : vector<8x8xf32>
    %427 = math.exp %426 : vector<8x8xf32>
    %cst_161 = arith.constant dense<0.000000e+00> : vector<8xf32>
    %428 = vector.multi_reduction <add>, %427, %cst_161 [1] : vector<8x8xf32> to vector<8xf32>
    %429 = vector.shape_cast %428 : vector<8xf32> to vector<8x1xf32>
    %430 = tpu.reciprocal %429 {approx = true} : vector<8x1xf32> -> vector<8x1xf32>
    %431 = vector.broadcast %430 : vector<8x1xf32> to vector<8x8xf32>
    %432 = arith.mulf %427, %431 : vector<8x8xf32>
    %cst_162 = arith.constant dense<0.000000e+00> : vector<8x16xf32>
    %433 = tpu.matmul %432, %418, %cst_162 {dimension_numbers = #tpu.dot_dimension_numbers<[1], [0], [0], [1], [0, 0, 1, 1], [], []>} : vector<8x8xf32>, vector<8x16xf32>, vector<8x16xf32> -> vector<8x16xf32>
    %c8_163 = arith.constant 8 : index
    %c32_164 = arith.constant 32 : index
    %434 = vector.load %arg17[%c8_163, %c32_164] : memref<16x64xf32, #tpu.memory_space<vmem>>, vector<8x16xf32>
    tpu.vector_store %arg17[%c8_163, %c32_164], %433 {strides = array<i32>} : memref<16x64xf32, #tpu.memory_space<vmem>>, vector<8x16xf32>,
    %435 = vector.extract_strided_slice %281 {offsets = [8, 48], sizes = [8, 16], strides = [1, 1]} : vector<16x64xf32> to vector<8x16xf32>
    %436 = vector.extract_strided_slice %285 {offsets = [8, 48], sizes = [8, 16], strides = [1, 1]} : vector<16x64xf32> to vector<8x16xf32>
    %437 = vector.extract_strided_slice %277 {offsets = [8, 48], sizes = [8, 16], strides = [1, 1]} : vector<16x64xf32> to vector<8x16xf32>
    %cst_165 = arith.constant dense<0.000000e+00> : vector<8x8xf32>
    %438 = tpu.matmul %435, %436, %cst_165 {dimension_numbers = #tpu.dot_dimension_numbers<[1], [1], [0], [0], [0, 0, 1, 0], [], []>} : vector<8x16xf32>, vector<8x16xf32>, vector<8x8xf32> -> vector<8x8xf32>
    %cst_166 = arith.constant 2.500000e-01 : f32
    %439 = vector.broadcast %cst_166 : f32 to vector<8x8xf32>
    %440 = arith.mulf %438, %439 : vector<8x8xf32>
    %441 = arith.addf %440, %377 : vector<8x8xf32>
    %cst_167 = arith.constant dense<0xFF800000> : vector<8xf32>
    %442 = vector.multi_reduction <maximumf>, %441, %cst_167 [1] : vector<8x8xf32> to vector<8xf32>
    %443 = vector.shape_cast %442 : vector<8xf32> to vector<8x1xf32>
    %444 = vector.broadcast %443 : vector<8x1xf32> to vector<8x8xf32>
    %445 = arith.subf %441, %444 : vector<8x8xf32>
    %446 = math.exp %445 : vector<8x8xf32>
    %cst_168 = arith.constant dense<0.000000e+00> : vector<8xf32>
    %447 = vector.multi_reduction <add>, %446, %cst_168 [1] : vector<8x8xf32> to vector<8xf32>
    %448 = vector.shape_cast %447 : vector<8xf32> to vector<8x1xf32>
    %449 = tpu.reciprocal %448 {approx = true} : vector<8x1xf32> -> vector<8x1xf32>
    %450 = vector.broadcast %449 : vector<8x1xf32> to vector<8x8xf32>
    %451 = arith.mulf %446, %450 : vector<8x8xf32>
    %cst_169 = arith.constant dense<0.000000e+00> : vector<8x16xf32>
    %452 = tpu.matmul %451, %437, %cst_169 {dimension_numbers = #tpu.dot_dimension_numbers<[1], [0], [0], [1], [0, 0, 1, 1], [], []>} : vector<8x8xf32>, vector<8x16xf32>, vector<8x16xf32> -> vector<8x16xf32>
    %c8_170 = arith.constant 8 : index
    %c48_171 = arith.constant 48 : index
    %453 = vector.load %arg17[%c8_170, %c48_171] : memref<16x64xf32, #tpu.memory_space<vmem>>, vector<8x16xf32>
    tpu.vector_store %arg17[%c8_170, %c48_171], %452 {strides = array<i32>} : memref<16x64xf32, #tpu.memory_space<vmem>>, vector<8x16xf32>,
    %c0_172 = arith.constant 0 : index
    %c0_173 = arith.constant 0 : index
    %454 = vector.load %arg17[%c0_172, %c0_173] : memref<16x64xf32, #tpu.memory_space<vmem>>, vector<16x64xf32>
    %c1_174 = arith.constant 1 : index
    %c0_175 = arith.constant 0 : index
    %c0_176 = arith.constant 0 : index
    %455 = vector.load %arg7[%c1_174, %c0_175, %c0_176] : memref<2x64x64xf32, #tpu.memory_space<vmem>>, vector<1x64x64xf32>
    %456 = vector.shape_cast %455 : vector<1x64x64xf32> to vector<64x64xf32>
    %cst_177 = arith.constant dense<0.000000e+00> : vector<16x64xf32>
    %457 = tpu.matmul %454, %456, %cst_177 {dimension_numbers = #tpu.dot_dimension_numbers<[1], [0], [0], [1], [0, 0, 1, 1], [], []>} : vector<16x64xf32>, vector<64x64xf32>, vector<16x64xf32> -> vector<16x64xf32>
    %458 = arith.addf %253, %457 : vector<16x64xf32>
    %cst_178 = arith.constant dense<0.000000e+00> : vector<16xf32>
    %459 = vector.multi_reduction <add>, %458, %cst_178 [1] : vector<16x64xf32> to vector<16xf32>
    %460 = vector.shape_cast %459 : vector<16xf32> to vector<16x1xf32>
    %cst_179 = arith.constant 6.400000e+01 : f32
    %461 = vector.broadcast %cst_179 : f32 to vector<16x1xf32>
    %462 = arith.divf %460, %461 : vector<16x1xf32>
    %463 = vector.broadcast %462 : vector<16x1xf32> to vector<16x64xf32>
    %464 = arith.subf %458, %463 : vector<16x64xf32>
    %465 = arith.mulf %464, %464 : vector<16x64xf32>
    %cst_180 = arith.constant dense<0.000000e+00> : vector<16xf32>
    %466 = vector.multi_reduction <add>, %465, %cst_180 [1] : vector<16x64xf32> to vector<16xf32>
    %467 = vector.shape_cast %466 : vector<16xf32> to vector<16x1xf32>
    %cst_181 = arith.constant 6.400000e+01 : f32
    %468 = vector.broadcast %cst_181 : f32 to vector<16x1xf32>
    %469 = arith.divf %467, %468 : vector<16x1xf32>
    %470 = vector.broadcast %462 : vector<16x1xf32> to vector<16x64xf32>
    %471 = arith.subf %458, %470 : vector<16x64xf32>
    %cst_182 = arith.constant 9.99999974E-6 : f32
    %472 = vector.broadcast %cst_182 : f32 to vector<16x1xf32>
    %473 = arith.addf %469, %472 : vector<16x1xf32>
    %474 = math.rsqrt %473 : vector<16x1xf32>
    %475 = vector.broadcast %474 : vector<16x1xf32> to vector<16x64xf32>
    %476 = arith.mulf %471, %475 : vector<16x64xf32>
    %c1_183 = arith.constant 1 : index
    %c0_184 = arith.constant 0 : index
    %c0_185 = arith.constant 0 : index
    %477 = vector.load %arg8[%c1_183, %c0_184, %c0_185] : memref<2x64x256xf32, #tpu.memory_space<vmem>>, vector<1x64x256xf32>
    %478 = vector.shape_cast %477 : vector<1x64x256xf32> to vector<64x256xf32>
    %cst_186 = arith.constant dense<0.000000e+00> : vector<16x256xf32>
    %479 = tpu.matmul %476, %478, %cst_186 {dimension_numbers = #tpu.dot_dimension_numbers<[1], [0], [0], [1], [0, 0, 1, 1], [], []>} : vector<16x64xf32>, vector<64x256xf32>, vector<16x256xf32> -> vector<16x256xf32>
    %480 = vector.extract_strided_slice %479 {offsets = [0, 0], sizes = [16, 128], strides = [1, 1]} : vector<16x256xf32> to vector<16x128xf32>
    %481 = vector.extract_strided_slice %479 {offsets = [0, 128], sizes = [16, 128], strides = [1, 1]} : vector<16x256xf32> to vector<16x128xf32>
    %482 = arith.negf %480 : vector<16x128xf32>
    %483 = math.exp %482 : vector<16x128xf32>
    %cst_187 = arith.constant 1.000000e+00 : f32
    %484 = vector.broadcast %cst_187 : f32 to vector<16x128xf32>
    %485 = arith.addf %484, %483 : vector<16x128xf32>
    %486 = arith.divf %484, %485 : vector<16x128xf32>
    %487 = arith.mulf %480, %486 : vector<16x128xf32>
    %488 = arith.mulf %487, %481 : vector<16x128xf32>
    %c1_188 = arith.constant 1 : index
    %c0_189 = arith.constant 0 : index
    %c0_190 = arith.constant 0 : index
    %489 = vector.load %arg9[%c1_188, %c0_189, %c0_190] : memref<2x128x64xf32, #tpu.memory_space<vmem>>, vector<1x128x64xf32>
    %490 = vector.shape_cast %489 : vector<1x128x64xf32> to vector<128x64xf32>
    %cst_191 = arith.constant dense<0.000000e+00> : vector<16x64xf32>
    %491 = tpu.matmul %488, %490, %cst_191 {dimension_numbers = #tpu.dot_dimension_numbers<[1], [0], [0], [1], [0, 0, 1, 1], [], []>} : vector<16x128xf32>, vector<128x64xf32>, vector<16x64xf32> -> vector<16x64xf32>
    %492 = arith.addf %458, %491 : vector<16x64xf32>
    %c0_192 = arith.constant 0 : index
    %c0_193 = arith.constant 0 : index
    %493 = vector.load %arg13[%c0_192, %c0_193] : memref<2x16xf32, #tpu.memory_space<vmem>>, vector<2x16xf32>
    %cst_194 = arith.constant dense<0.000000e+00> : vector<2x64xf32>
    %494 = tpu.matmul %493, %492, %cst_194 {dimension_numbers = #tpu.dot_dimension_numbers<[1], [0], [0], [1], [0, 0, 1, 1], [], []>} : vector<2x16xf32>, vector<16x64xf32>, vector<2x64xf32> -> vector<2x64xf32>
    %cst_195 = arith.constant dense<0.000000e+00> : vector<2xf32>
    %495 = vector.multi_reduction <add>, %494, %cst_195 [1] : vector<2x64xf32> to vector<2xf32>
    %496 = vector.shape_cast %495 : vector<2xf32> to vector<2x1xf32>
    %cst_196 = arith.constant 6.400000e+01 : f32
    %497 = vector.broadcast %cst_196 : f32 to vector<2x1xf32>
    %498 = arith.divf %496, %497 : vector<2x1xf32>
    %499 = vector.broadcast %498 : vector<2x1xf32> to vector<2x64xf32>
    %500 = arith.subf %494, %499 : vector<2x64xf32>
    %501 = arith.mulf %500, %500 : vector<2x64xf32>
    %cst_197 = arith.constant dense<0.000000e+00> : vector<2xf32>
    %502 = vector.multi_reduction <add>, %501, %cst_197 [1] : vector<2x64xf32> to vector<2xf32>
    %503 = vector.shape_cast %502 : vector<2xf32> to vector<2x1xf32>
    %cst_198 = arith.constant 6.400000e+01 : f32
    %504 = vector.broadcast %cst_198 : f32 to vector<2x1xf32>
    %505 = arith.divf %503, %504 : vector<2x1xf32>
    %506 = vector.broadcast %498 : vector<2x1xf32> to vector<2x64xf32>
    %507 = arith.subf %494, %506 : vector<2x64xf32>
    %cst_199 = arith.constant 9.99999974E-6 : f32
    %508 = vector.broadcast %cst_199 : f32 to vector<2x1xf32>
    %509 = arith.addf %505, %508 : vector<2x1xf32>
    %510 = math.rsqrt %509 : vector<2x1xf32>
    %511 = vector.broadcast %510 : vector<2x1xf32> to vector<2x64xf32>
    %512 = arith.mulf %507, %511 : vector<2x64xf32>
    %c0_200 = arith.constant 0 : index
    %c0_201 = arith.constant 0 : index
    %513 = vector.load %arg5[%c0_200, %c0_201] : memref<64x128xf32, #tpu.memory_space<vmem>>, vector<64x128xf32>
    %cst_202 = arith.constant dense<0.000000e+00> : vector<2x128xf32>
    %514 = tpu.matmul %512, %513, %cst_202 {dimension_numbers = #tpu.dot_dimension_numbers<[1], [0], [0], [1], [0, 0, 1, 1], [], []>} : vector<2x64xf32>, vector<64x128xf32>, vector<2x128xf32> -> vector<2x128xf32>
    %cst_203 = arith.constant dense<0xFF800000> : vector<2xf32>
    %515 = vector.multi_reduction <maximumf>, %514, %cst_203 [1] : vector<2x128xf32> to vector<2xf32>
    %516 = vector.shape_cast %515 : vector<2xf32> to vector<2x1xf32>
    %517 = vector.broadcast %516 : vector<2x1xf32> to vector<2x128xf32>
    %518 = arith.subf %514, %517 : vector<2x128xf32>
    %519 = math.exp %518 : vector<2x128xf32>
    %cst_204 = arith.constant dense<0.000000e+00> : vector<2xf32>
    %520 = vector.multi_reduction <add>, %519, %cst_204 [1] : vector<2x128xf32> to vector<2xf32>
    %521 = vector.shape_cast %520 : vector<2xf32> to vector<2x1xf32>
    %522 = math.log %521 : vector<2x1xf32>
    %523 = arith.addf %516, %522 : vector<2x1xf32>
    %c0_205 = arith.constant 0 : index
    %c0_206 = arith.constant 0 : index
    %524 = vector.load %arg3[%c0_205, %c0_206] : memref<2x1xi32, #tpu.memory_space<vmem>>, vector<2x1xi32>
    %525 = tpu.iota {dimensions = array<i32: 1>} : vector<2x128xi32>
    %526 = vector.broadcast %524 : vector<2x1xi32> to vector<2x128xi32>
    %527 = arith.cmpi eq, %525, %526 : vector<2x128xi32>
    %cst_207 = arith.constant 0.000000e+00 : f32
    %528 = vector.broadcast %cst_207 : f32 to vector<2x128xf32>
    %529 = arith.select %527, %514, %528 : vector<2x128xi1>, vector<2x128xf32>
    %cst_208 = arith.constant dense<0.000000e+00> : vector<2xf32>
    %530 = vector.multi_reduction <add>, %529, %cst_208 [1] : vector<2x128xf32> to vector<2xf32>
    %531 = vector.shape_cast %530 : vector<2xf32> to vector<2x1xf32>
    %532 = arith.subf %523, %531 : vector<2x1xf32>
    %c0_209 = arith.constant 0 : index
    %c0_210 = arith.constant 0 : index
    %533 = vector.load %arg15[%c0_209, %c0_210] : memref<2x1xf32, #tpu.memory_space<vmem>>, vector<2x1xf32>
    tpu.vector_store %arg15[%c0_209, %c0_210], %532 {strides = array<i32>} : memref<2x1xf32, #tpu.memory_space<vmem>>, vector<2x1xf32>,
    %c0_211 = arith.constant 0 : index
    %c0_212 = arith.constant 0 : index
    %534 = vector.load %arg14[%c0_211, %c0_212] : memref<128x3xf32, #tpu.memory_space<vmem>>, vector<128x3xf32>
    %cst_213 = arith.constant dense<0.000000e+00> : vector<2x3xf32>
    %535 = tpu.matmul %514, %534, %cst_213 {dimension_numbers = #tpu.dot_dimension_numbers<[1], [0], [0], [1], [0, 0, 1, 1], [], []>} : vector<2x128xf32>, vector<128x3xf32>, vector<2x3xf32> -> vector<2x3xf32>
    %c0_214 = arith.constant 0 : index
    %c0_215 = arith.constant 0 : index
    %536 = vector.load %arg16[%c0_214, %c0_215] : memref<2x3xf32, #tpu.memory_space<vmem>>, vector<2x3xf32>
    tpu.vector_store %arg16[%c0_214, %c0_215], %535 {strides = array<i32>} : memref<2x3xf32, #tpu.memory_space<vmem>>, vector<2x3xf32>,
    return
  }
  func.func @transform_0(%arg0: i32) -> (i32, i32) {
    %c0_i32 = arith.constant 0 : i32
    %c0_i32_0 = arith.constant 0 : i32
    %c0_i32_1 = arith.constant 0 : i32
    return %c0_i32, %c0_i32_0 : i32, i32
  }
  func.func @transform_1(%arg0: i32) -> (i32, i32) {
    %c0_i32 = arith.constant 0 : i32
    %c0_i32_0 = arith.constant 0 : i32
    %c0_i32_1 = arith.constant 0 : i32
    return %c0_i32, %c0_i32_0 : i32, i32
  }
  func.func @transform_2(%arg0: i32) -> (i32, i32) {
    %c0_i32 = arith.constant 0 : i32
    %c0_i32_0 = arith.constant 0 : i32
    %c0_i32_1 = arith.constant 0 : i32
    return %c0_i32, %c0_i32_0 : i32, i32
  }
  func.func @transform_3(%arg0: i32) -> (i32, i32) {
    %c0_i32 = arith.constant 0 : i32
    %c0_i32_0 = arith.constant 0 : i32
    %c0_i32_1 = arith.constant 0 : i32
    return %c0_i32, %c0_i32_0 : i32, i32
  }
  func.func @transform_4(%arg0: i32) -> (i32, i32) {
    %c0_i32 = arith.constant 0 : i32
    %c0_i32_0 = arith.constant 0 : i32
    %c0_i32_1 = arith.constant 0 : i32
    return %c0_i32, %c0_i32_0 : i32, i32
  }
  func.func @transform_5(%arg0: i32) -> (i32, i32, i32) {
    %c0_i32 = arith.constant 0 : i32
    %c0_i32_0 = arith.constant 0 : i32
    %c0_i32_1 = arith.constant 0 : i32
    %c0_i32_2 = arith.constant 0 : i32
    return %c0_i32, %c0_i32_0, %c0_i32_1 : i32, i32, i32
  }
  func.func @transform_6(%arg0: i32) -> (i32, i32, i32) {
    %c0_i32 = arith.constant 0 : i32
    %c0_i32_0 = arith.constant 0 : i32
    %c0_i32_1 = arith.constant 0 : i32
    %c0_i32_2 = arith.constant 0 : i32
    return %c0_i32, %c0_i32_0, %c0_i32_1 : i32, i32, i32
  }
  func.func @transform_7(%arg0: i32) -> (i32, i32, i32) {
    %c0_i32 = arith.constant 0 : i32
    %c0_i32_0 = arith.constant 0 : i32
    %c0_i32_1 = arith.constant 0 : i32
    %c0_i32_2 = arith.constant 0 : i32
    return %c0_i32, %c0_i32_0, %c0_i32_1 : i32, i32, i32
  }
  func.func @transform_8(%arg0: i32) -> (i32, i32, i32) {
    %c0_i32 = arith.constant 0 : i32
    %c0_i32_0 = arith.constant 0 : i32
    %c0_i32_1 = arith.constant 0 : i32
    %c0_i32_2 = arith.constant 0 : i32
    return %c0_i32, %c0_i32_0, %c0_i32_1 : i32, i32, i32
  }
  func.func @transform_9(%arg0: i32) -> (i32, i32) {
    %c0_i32 = arith.constant 0 : i32
    %c0_i32_0 = arith.constant 0 : i32
    %c0_i32_1 = arith.constant 0 : i32
    return %c0_i32, %c0_i32_0 : i32, i32
  }
  func.func @transform_10(%arg0: i32) -> (i32, i32) {
    %c0_i32 = arith.constant 0 : i32
    %c0_i32_0 = arith.constant 0 : i32
    %c0_i32_1 = arith.constant 0 : i32
    return %c0_i32, %c0_i32_0 : i32, i32
  }
  func.func @transform_11(%arg0: i32) -> (i32, i32) {
    %c0_i32 = arith.constant 0 : i32
    %c0_i32_0 = arith.constant 0 : i32
    %c0_i32_1 = arith.constant 0 : i32
    return %c0_i32, %c0_i32_0 : i32, i32
  }
  func.func @transform_12(%arg0: i32) -> (i32, i32) {
    %c0_i32 = arith.constant 0 : i32
    %c0_i32_0 = arith.constant 0 : i32
    %c0_i32_1 = arith.constant 0 : i32
    return %c0_i32, %c0_i32_0 : i32, i32
  }
  func.func @transform_13(%arg0: i32) -> (i32, i32) {
    %c0_i32 = arith.constant 0 : i32
    %c0_i32_0 = arith.constant 0 : i32
    %c0_i32_1 = arith.constant 0 : i32
    return %c0_i32, %c0_i32_0 : i32, i32
  }
  func.func @transform_14(%arg0: i32) -> (i32, i32) {
    %c0_i32 = arith.constant 0 : i32
    %c0_i32_0 = arith.constant 0 : i32
    %c0_i32_1 = arith.constant 0 : i32
    return %c0_i32, %c0_i32_0 : i32, i32
  }
  func.func @transform_15(%arg0: i32) -> (i32, i32) {
    %c0_i32 = arith.constant 0 : i32
    %c0_i32_0 = arith.constant 0 : i32
    %c0_i32_1 = arith.constant 0 : i32
    return %c0_i32, %c0_i32_0 : i32, i32
  }
}

</mosaic_0001>

<llo_original>
// kernel: tpu_custom_call.1
$region0: #{tpu_custom_call.1}
  #allocation0 [shape = 'u32[]', space=smem, size = 0x4, offset = 0x4, fixed_abs, tag = 'smem constant byte address 0x4 - core index']
  #allocation1 [shape = 'u32[144,128]{1,0:T(1,128)}', space=vmem, size = 0x12000, scoped, tag = 'internal scratch']
  #allocation2 [shape = 'f32[16,64]{1,0:T(8,128)}', space=vmem, size = 0x2000, scoped, tag = 'scratch operand']
  %s0 = inlined_call_operand.vmem [shape: s32[16,1], index: 0, kind: input, shape index: {}]
  %s1 = inlined_call_operand.vmem [shape: f32[2,8], index: 1, kind: input, shape index: {}]
  %s2 = inlined_call_operand.vmem [shape: s32[2,1], index: 2, kind: input, shape index: {}]
  %s3 = inlined_call_operand.vmem [shape: f32[128,64], index: 3, kind: input, shape index: {}]
  %s4 = inlined_call_operand.vmem [shape: f32[64,128], index: 4, kind: input, shape index: {}]
  %s5 = inlined_call_operand.vmem [shape: f32[2,64,192], index: 5, kind: input, shape index: {}]
  %s6 = inlined_call_operand.hbm [shape: f32[2,64,64], index: 6, kind: input, shape index: {}]
  %s7 = inlined_call_operand.vmem [shape: f32[2,64,256], index: 7, kind: input, shape index: {}]
  %s8 = inlined_call_operand.vmem [shape: f32[2,128,64], index: 8, kind: input, shape index: {}]
  %s9 = inlined_call_operand.hbm [shape: f32[16,64], index: 9, kind: input, shape index: {}]
  %s10 = inlined_call_operand.hbm [shape: f32[16,64], index: 10, kind: input, shape index: {}]
  %s11 = inlined_call_operand.vmem [shape: f32[64,64], index: 11, kind: input, shape index: {}]
  %s12 = inlined_call_operand.hbm [shape: f32[2,16], index: 12, kind: input, shape index: {}]
  %s13 = inlined_call_operand.vmem [shape: f32[128,3], index: 13, kind: input, shape index: {}]
  %s14 = inlined_call_operand.vmem [shape: f32[2,1], index: 14, kind: output, shape index: {0}]
  %s15 = inlined_call_operand.hbm [shape: f32[2,3], index: 15, kind: output, shape index: {1}]
  %16 = xla_tuple %s14, %s15
  %s17 = sld [smem:[#allocation0]]
  $region90: #{tpu_custom_call.1} parent=0
    _
  %s19 = ssub.s32 1, %s17
  %s20 = scalar_select 0, %s19, %s17
  $region1: #{tpu_custom_call.1} parent=0
    #allocation3 [shape = 'u8[65536]{0}', space=vmem, size = 0x10000, scoped, tag = 'input window, operand 6, single buffered']
    #allocation4 [shape = 's32[1]{0}', space=sflag, size = 0x4, scoped, tag = 'scoped memory for tpu_custom_call.1']
    #allocation5 [shape = 's32[1]{0}', space=sflag, size = 0x4, scoped, tag = 'scoped memory for tpu_custom_call.1']
    #allocation6 [shape = 'u8[8192]{0}', space=vmem, size = 0x2000, scoped, tag = 'input window, operand 9, single buffered']
    #allocation7 [shape = 's32[1]{0}', space=sflag, size = 0x4, scoped, tag = 'scoped memory for tpu_custom_call.1']
    #allocation8 [shape = 'u8[8192]{0}', space=vmem, size = 0x2000, scoped, tag = 'input window, operand 10, single buffered']
    #allocation9 [shape = 'u8[1024]{0}', space=vmem, size = 0x400, scoped, tag = 'input window, operand 12, single buffered']
    #allocation10 [shape = 's32[1]{0}', space=sflag, size = 0x4, scoped, tag = 'scoped memory for tpu_custom_call.1']
    #allocation11 [shape = 'u8[1024]{0}', space=vmem, size = 0x400, scoped, tag = 'output window, operand 1, single buffered']
    %21 = vsyncpa [#allocation4], 0
    %22 = vsyncpa [#allocation7], 0
    %23 = vsyncpa [#allocation10], 0
    %24 = vsyncpa [#allocation5], 0
    // Predicated region
    $region2: #{tpu_custom_call.1} parent=1 // pred_check
      _
    $region3: #{tpu_custom_call.1} parent=1 // pred_check_branch
      %26 = sbr.rel (0) target = $region5
    $region4: #{tpu_custom_call.1} parent=1 // pred_region
      _
    $region5: #{tpu_custom_call.1} parent=1 // pred_fallthru
      _
    // Predicated region
    $region6: #{tpu_custom_call.1} parent=1 // pred_check
      _
    $region7: #{tpu_custom_call.1} parent=1 // pred_check_branch
      %28 = sbr.rel (0) target = $region9
    $region8: #{tpu_custom_call.1} parent=1 // pred_region
      _
    $region9: #{tpu_custom_call.1} parent=1 // pred_fallthru
      _
    // Predicated region
    $region10: #{tpu_custom_call.1} parent=1 // pred_check
      _
    $region11: #{tpu_custom_call.1} parent=1 // pred_check_branch
      %30 = sbr.rel (0) target = $region13
    $region12: #{tpu_custom_call.1} parent=1 // pred_region
      _
    $region13: #{tpu_custom_call.1} parent=1 // pred_fallthru
      _
    // Predicated region
    $region14: #{tpu_custom_call.1} parent=1 // pred_check
      _
    $region15: #{tpu_custom_call.1} parent=1 // pred_check_branch
      %32 = sbr.rel (0) target = $region17
    $region16: #{tpu_custom_call.1} parent=1 // pred_region
      _
    $region17: #{tpu_custom_call.1} parent=1 // pred_fallthru
      _
    // Predicated region
    $region18: #{tpu_custom_call.1} parent=1 // pred_check
      _
    $region19: #{tpu_custom_call.1} parent=1 // pred_check_branch
      %34 = sbr.rel (0) target = $region21
    $region20: #{tpu_custom_call.1} parent=1 // pred_region
      _
    $region21: #{tpu_custom_call.1} parent=1 // pred_fallthru
      _
    // Predicated region
    $region22: #{tpu_custom_call.1} parent=1 // pred_check
      _
    $region23: #{tpu_custom_call.1} parent=1 // pred_check_branch
      %36 = sbr.rel (0) target = $region25
    $region24: #{tpu_custom_call.1} parent=1 // pred_region
      _
    $region25: #{tpu_custom_call.1} parent=1 // pred_fallthru
      _
    // Predicated region
    $region26: #{tpu_custom_call.1} parent=1 // pred_check
      _
    $region27: #{tpu_custom_call.1} parent=1 // pred_check_branch
      %38 = sbr.rel (0) target = $region29
    $region28: #{tpu_custom_call.1} parent=1 // pred_region
      %s40 = ssub.s32 2048, 2048
      %41 = vsyncadd [#allocation4], %s40
      %s42 = sshll.u32 [#allocation3], 4
      %s43 = int_to_ptr.vmem [resolvable:$true] %s42
      %48 = dma.hbm_to_vmem [thread:$0]  %s6, 2048, %s43, [#allocation4], 128, 128, 8
    $region29: #{tpu_custom_call.1} parent=1 // pred_fallthru
      _
    // Predicated region
    $region30: #{tpu_custom_call.1} parent=1 // pred_check
      _
    $region31: #{tpu_custom_call.1} parent=1 // pred_check_branch
      %50 = sbr.rel (0) target = $region33
    $region32: #{tpu_custom_call.1} parent=1 // pred_region
      _
    $region33: #{tpu_custom_call.1} parent=1 // pred_fallthru
      _
    // Predicated region
    $region34: #{tpu_custom_call.1} parent=1 // pred_check
      _
    $region35: #{tpu_custom_call.1} parent=1 // pred_check_branch
      %52 = sbr.rel (0) target = $region37
    $region36: #{tpu_custom_call.1} parent=1 // pred_region
      _
    $region37: #{tpu_custom_call.1} parent=1 // pred_fallthru
      _
    // Predicated region
    $region38: #{tpu_custom_call.1} parent=1 // pred_check
      _
    $region39: #{tpu_custom_call.1} parent=1 // pred_check_branch
      %54 = sbr.rel (0) target = $region41
    $region40: #{tpu_custom_call.1} parent=1 // pred_region
      %s56 = ssub.s32 256, 256
      %57 = vsyncadd [#allocation7], %s56
      %s58 = sshll.u32 [#allocation6], 4
      %s59 = int_to_ptr.vmem [resolvable:$true] %s58
      %64 = dma.hbm_to_vmem [thread:$0]  %s9, 256, %s59, [#allocation7], 128, 128, 8
    $region41: #{tpu_custom_call.1} parent=1 // pred_fallthru
      _
    // Predicated region
    $region42: #{tpu_custom_call.1} parent=1 // pred_check
      _
    $region43: #{tpu_custom_call.1} parent=1 // pred_check_branch
      %66 = sbr.rel (0) target = $region45
    $region44: #{tpu_custom_call.1} parent=1 // pred_region
      %s68 = ssub.s32 256, 256
      %69 = vsyncadd [#allocation7], %s68
      %s70 = sshll.u32 [#allocation8], 4
      %s71 = int_to_ptr.vmem [resolvable:$true] %s70
      %76 = dma.hbm_to_vmem [thread:$0]  %s10, 256, %s71, [#allocation7], 128, 128, 8
    $region45: #{tpu_custom_call.1} parent=1 // pred_fallthru
      _
    // Predicated region
    $region46: #{tpu_custom_call.1} parent=1 // pred_check
      _
    $region47: #{tpu_custom_call.1} parent=1 // pred_check_branch
      %78 = sbr.rel (0) target = $region49
    $region48: #{tpu_custom_call.1} parent=1 // pred_region
      _
    $region49: #{tpu_custom_call.1} parent=1 // pred_fallthru
      _
    // Predicated region
    $region50: #{tpu_custom_call.1} parent=1 // pred_check
      _
    $region51: #{tpu_custom_call.1} parent=1 // pred_check_branch
      %80 = sbr.rel (0) target = $region53
    $region52: #{tpu_custom_call.1} parent=1 // pred_region
      %s82 = ssub.s32 32, 32
      %83 = vsyncadd [#allocation10], %s82
      %s85 = sshll.u32 [#allocation9], 4
      %s86 = int_to_ptr.vmem [resolvable:$true] %s85
      %88 = dma.hbm_to_vmem [thread:$0]  %s12, 32, %s86, [#allocation10]
    $region53: #{tpu_custom_call.1} parent=1 // pred_fallthru
      _
    // Predicated region
    $region54: #{tpu_custom_call.1} parent=1 // pred_check
      _
    $region55: #{tpu_custom_call.1} parent=1 // pred_check_branch
      %90 = sbr.rel (0) target = $region57
    $region56: #{tpu_custom_call.1} parent=1 // pred_region
      _
    $region57: #{tpu_custom_call.1} parent=1 // pred_fallthru
      _
    // Predicated region
    $region58: #{tpu_custom_call.1} parent=1 // pred_check
      _
    $region59: #{tpu_custom_call.1} parent=1 // pred_check_branch
      %92 = sbr.rel (0) target = $region61
    $region60: #{tpu_custom_call.1} parent=1 // pred_region
      %93 = dma.done [#allocation4], 2048
    $region61: #{tpu_custom_call.1} parent=1 // pred_fallthru
      _
    // Predicated region
    $region62: #{tpu_custom_call.1} parent=1 // pred_check
      _
    $region63: #{tpu_custom_call.1} parent=1 // pred_check_branch
      %95 = sbr.rel (0) target = $region65
    $region64: #{tpu_custom_call.1} parent=1 // pred_region
      %96 = dma.done [#allocation7], 256
    $region65: #{tpu_custom_call.1} parent=1 // pred_fallthru
      _
    // Predicated region
    $region66: #{tpu_custom_call.1} parent=1 // pred_check
      _
    $region67: #{tpu_custom_call.1} parent=1 // pred_check_branch
      %98 = sbr.rel (0) target = $region69
    $region68: #{tpu_custom_call.1} parent=1 // pred_region
      %99 = dma.done [#allocation7], 256
    $region69: #{tpu_custom_call.1} parent=1 // pred_fallthru
      _
    // Predicated region
    $region70: #{tpu_custom_call.1} parent=1 // pred_check
      _
    $region71: #{tpu_custom_call.1} parent=1 // pred_check_branch
      %101 = sbr.rel (0) target = $region73
    $region72: #{tpu_custom_call.1} parent=1 // pred_region
      %102 = dma.done [#allocation10], 32
    $region73: #{tpu_custom_call.1} parent=1 // pred_fallthru
      _
    %v103 = vld [vmem:[%s0] sm:$0xff]
    %v104 = vld [vmem:[%s0 + $0x8] sm:$0xff]
    %v105 = vlaneseq
    %v106 = vand.u32 %v105, 127
    %107 = vset.pattern.permute.xlu0 0
    %108 = vperm.xlu0 %107, %v103
    %v109 = vpop.permute.xlu0 %108
    %110 = vset.pattern.permute.xlu0 0
    %111 = vperm.xlu0 %110, %v104
    %v112 = vpop.permute.xlu0 %111
    %vm113 = vcmp.eq.s32.totalorder %v106, %v109
    %vm114 = vcmp.eq.s32.totalorder %v106, %v112
    %v115 = vsel %vm113, 1, 0
    %v116 = vsel %vm114, 1, 0
    %v117 = vcvt.s32.f32 %v115
    %v118 = vcvt.s32.f32 %v116
    %v119 = vld [vmem:[%s3] sm:$0xff]
    %v120 = vld [vmem:[%s3 + $0x8] sm:$0xff]
    %v121 = vld [vmem:[%s3 + $0x10] sm:$0xff]
    %v122 = vld [vmem:[%s3 + $0x18] sm:$0xff]
    %v123 = vld [vmem:[%s3 + $0x20] sm:$0xff]
    %v124 = vld [vmem:[%s3 + $0x28] sm:$0xff]
    %v125 = vld [vmem:[%s3 + $0x30] sm:$0xff]
    %v126 = vld [vmem:[%s3 + $0x38] sm:$0xff]
    %v127 = vld [vmem:[%s3 + $0x40] sm:$0xff]
    %v128 = vld [vmem:[%s3 + $0x48] sm:$0xff]
    %v129 = vld [vmem:[%s3 + $0x50] sm:$0xff]
    %v130 = vld [vmem:[%s3 + $0x58] sm:$0xff]
    %v131 = vld [vmem:[%s3 + $0x60] sm:$0xff]
    %v132 = vld [vmem:[%s3 + $0x68] sm:$0xff]
    %v133 = vld [vmem:[%s3 + $0x70] sm:$0xff]
    %v134 = vld [vmem:[%s3 + $0x78] sm:$0xff]
    %135 = vmatprep.subr.mxu0 0.0
    %136 = vmatpush1.msra.mxu0 %v119
    %137 = vmatprep.subr.mxu0 0.0
    %138 = vmatpush1.msra.mxu0 %v120
    %139 = vmatprep.subr.mxu0 0.0
    %140 = vmatpush1.msra.mxu0 %v121
    %141 = vmatprep.subr.mxu0 0.0
    %142 = vmatpush1.msra.mxu0 %v122
    %143 = vmatprep.subr.mxu0 0.0
    %144 = vmatpush1.msra.mxu0 %v123
    %145 = vmatprep.subr.mxu0 0.0
    %146 = vmatpush1.msra.mxu0 %v124
    %147 = vmatprep.subr.mxu0 0.0
    %148 = vmatpush1.msra.mxu0 %v125
    %149 = vmatprep.subr.mxu0 0.0
    %150 = vmatpush1.msra.mxu0 %v126
    %151 = vmatprep.subr.mxu0 0.0
    %152 = vmatpush1.msra.mxu0 %v127
    %153 = vmatprep.subr.mxu0 0.0
    %154 = vmatpush1.msra.mxu0 %v128
    %155 = vmatprep.subr.mxu0 0.0
    %156 = vmatpush1.msra.mxu0 %v129
    %157 = vmatprep.subr.mxu0 0.0
    %158 = vmatpush1.msra.mxu0 %v130
    %159 = vmatprep.subr.mxu0 0.0
    %160 = vmatpush1.msra.mxu0 %v131
    %161 = vmatprep.subr.mxu0 0.0
    %162 = vmatpush1.msra.mxu0 %v132
    %163 = vmatprep.subr.mxu0 0.0
    %164 = vmatpush1.msra.mxu0 %v133
    %165 = vmatprep.subr.mxu0 0.0
    %166 = vmatpush1.msra.mxu0 %v134
    %167 = vmatprep.subr.mxu0 0.0
    %168 = vmatpush1.msra.mxu0 0.0
    %169 = vmatprep.subr.mxu0 0.0
    %170 = vmatpush1.msra.mxu0 0.0
    %171 = vmatprep.subr.mxu0 0.0
    %172 = vmatpush1.msra.mxu0 0.0
    %173 = vmatprep.subr.mxu0 0.0
    %174 = vmatpush1.msra.mxu0 0.0
    %175 = vmatprep.subr.mxu0 0.0
    %176 = vmatpush1.msra.mxu0 0.0
    %177 = vmatprep.subr.mxu0 0.0
    %178 = vmatpush1.msra.mxu0 0.0
    %179 = vmatprep.subr.mxu0 0.0
    %180 = vmatpush1.msra.mxu0 0.0
    %181 = vmatprep.subr.mxu0 0.0
    %182 = vmatpush1.msra.mxu0 0.0
    %183 = vmatprep.subr.mxu0 0.0
    %184 = vmatpush1.msra.mxu0 0.0
    %185 = vmatprep.subr.mxu0 0.0
    %186 = vmatpush1.msra.mxu0 0.0
    %187 = vmatprep.subr.mxu0 0.0
    %188 = vmatpush1.msra.mxu0 0.0
    %189 = vmatprep.subr.mxu0 0.0
    %190 = vmatpush1.msra.mxu0 0.0
    %191 = vmatprep.subr.mxu0 0.0
    %192 = vmatpush1.msra.mxu0 0.0
    %193 = vmatprep.subr.mxu0 0.0
    %194 = vmatpush1.msra.mxu0 0.0
    %195 = vmatprep.subr.mxu0 0.0
    %196 = vmatpush1.msra.mxu0 0.0
    %197 = vmatprep.subr.mxu0 0.0
    %198 = vmatpush1.msra.mxu0 0.0
    %199 = vmatprep.mubr.f32.mxu0 0.0
    %200 = vmatmul.mubr.f32.gmra.mrb[0].mxu0 %v117
    %v201 = vpop.f32.mrb[0].mxu0
    %v202 = vadd.f32 0.0, %v201
    %v203 = vpop.f32.mrb[0].mxu0
    %204 = vmatprep.mubr.f32.mxu0 0.0
    %205 = vmatmul.mubr.f32.gmra.mrb[0].mxu0 %v118
    %v206 = vpop.f32.mrb[0].mxu0
    %v207 = vadd.f32 0.0, %v206
    %v208 = vpop.f32.mrb[0].mxu0
    %209 = vdwg.mxu0
    %v210 = vld [vmem:[#allocation6] sm:$0xff]
    %v211 = vld [vmem:[#allocation6 + $0x8] sm:$0xff]
    %v212 = vld [vmem:[#allocation8] sm:$0xff]
    %v213 = vld [vmem:[#allocation8 + $0x8] sm:$0xff]
    %v214 = vld [vmem:[%s11] sm:$0xff]
    %v215 = vld [vmem:[%s11 + $0x8] sm:$0xff]
    %v216 = vld [vmem:[%s11 + $0x10] sm:$0xff]
    %v217 = vld [vmem:[%s11 + $0x18] sm:$0xff]
    %v218 = vld [vmem:[%s11 + $0x20] sm:$0xff]
    %v219 = vld [vmem:[%s11 + $0x28] sm:$0xff]
    %v220 = vld [vmem:[%s11 + $0x30] sm:$0xff]
    %v221 = vld [vmem:[%s11 + $0x38] sm:$0xff]
    %v222 = vld [vmem:[%s1] sm:$0x3]
    %v223 = vlaneseq
    %v224 = vshrl.u32 %v223, 7
    %vm225 = vcmp.ge.s32.totalorder %v224, %v106
    %vm226 = vcmask 523264
    %v227 = vsel %vm226, %v202, 0.0
    %228 = vadd.xlane.f32.xlu0 %v227
    %v229 = vpop.xlane.xlu0 %228
    %v230 = vsel %vm226, %v207, 0.0
    %231 = vadd.xlane.f32.xlu0 %v230
    %v232 = vpop.xlane.xlu0 %231
    %v233 = vrcp.pop 64.0
    %v234 = vmul.f32 %v229, %v233
    %v235 = vmul.f32 %v232, %v233
    %v236 = vsub.f32 %v202, %v234
    %v237 = vsub.f32 %v207, %v235
    %v238 = vmul.f32 %v236, %v236
    %v239 = vmul.f32 %v237, %v237
    %v240 = vsel %vm226, %v238, 0.0
    %241 = vadd.xlane.f32.xlu0 %v240
    %v242 = vpop.xlane.xlu0 %241
    %v243 = vsel %vm226, %v239, 0.0
    %244 = vadd.xlane.f32.xlu0 %v243
    %v245 = vpop.xlane.xlu0 %244
    %v246 = vmul.f32 %v242, %v233
    %v247 = vmul.f32 %v245, %v233
    %v248 = vadd.f32 %v246, 1e-05
    %v249 = vadd.f32 %v247, 1e-05
    %v250 = vrsqrt.pop %v248
    %v251 = vrsqrt.pop %v249
    %v252 = vmul.f32 %v236, %v250
    %v253 = vmul.f32 %v237, %v251
    %v254 = vld [vmem:[%s5] sm:$0xff]
    %v255 = vld [vmem:[%s5 + $0x8] sm:$0xff]
    %v256 = vld [vmem:[%s5 + $0x10] sm:$0xff]
    %v257 = vld [vmem:[%s5 + $0x18] sm:$0xff]
    %v258 = vld [vmem:[%s5 + $0x20] sm:$0xff]
    %v259 = vld [vmem:[%s5 + $0x28] sm:$0xff]
    %v260 = vld [vmem:[%s5 + $0x30] sm:$0xff]
    %v261 = vld [vmem:[%s5 + $0x38] sm:$0xff]
    %v262 = vld [vmem:[%s5 + $0x40] sm:$0xff]
    %v263 = vld [vmem:[%s5 + $0x48] sm:$0xff]
    %v264 = vld [vmem:[%s5 + $0x50] sm:$0xff]
    %v265 = vld [vmem:[%s5 + $0x58] sm:$0xff]
    %v266 = vld [vmem:[%s5 + $0x60] sm:$0xff]
    %v267 = vld [vmem:[%s5 + $0x68] sm:$0xff]
    %v268 = vld [vmem:[%s5 + $0x70] sm:$0xff]
    %v269 = vld [vmem:[%s5 + $0x78] sm:$0xff]
    %v271 = vsel %vm226, %v252, 0
    %v274 = vsel %vm226, %v253, 0
    %276 = vmatprep.subr.mxu0 %v255
    %277 = vmatpush1.msra.mxu0 %v254
    %278 = vmatprep.subr.mxu0 %v257
    %279 = vmatpush1.msra.mxu0 %v256
    %280 = vmatprep.subr.mxu0 %v259
    %281 = vmatpush1.msra.mxu0 %v258
    %282 = vmatprep.subr.mxu0 %v261
    %283 = vmatpush1.msra.mxu0 %v260
    %284 = vmatprep.subr.mxu0 %v263
    %285 = vmatpush1.msra.mxu0 %v262
    %286 = vmatprep.subr.mxu0 %v265
    %287 = vmatpush1.msra.mxu0 %v264
    %288 = vmatprep.subr.mxu0 %v267
    %289 = vmatpush1.msra.mxu0 %v266
    %290 = vmatprep.subr.mxu0 %v269
    %291 = vmatpush1.msra.mxu0 %v268
    %292 = vmatprep.subr.mxu0 0.0
    %293 = vmatpush1.msra.mxu0 0.0
    %294 = vmatprep.subr.mxu0 0.0
    %295 = vmatpush1.msra.mxu0 0.0
    %296 = vmatprep.subr.mxu0 0.0
    %297 = vmatpush1.msra.mxu0 0.0
    %298 = vmatprep.subr.mxu0 0.0
    %299 = vmatpush1.msra.mxu0 0.0
    %300 = vmatprep.subr.mxu0 0.0
    %301 = vmatpush1.msra.mxu0 0.0
    %302 = vmatprep.subr.mxu0 0.0
    %303 = vmatpush1.msra.mxu0 0.0
    %304 = vmatprep.subr.mxu0 0.0
    %305 = vmatpush1.msra.mxu0 0.0
    %306 = vmatprep.subr.mxu0 0.0
    %307 = vmatpush1.msra.mxu0 0.0
    %308 = vmatprep.subr.mxu0 0.0
    %309 = vmatpush1.msra.mxu0 0.0
    %310 = vmatprep.subr.mxu0 0.0
    %311 = vmatpush1.msra.mxu0 0.0
    %312 = vmatprep.subr.mxu0 0.0
    %313 = vmatpush1.msra.mxu0 0.0
    %314 = vmatprep.subr.mxu0 0.0
    %315 = vmatpush1.msra.mxu0 0.0
    %316 = vmatprep.subr.mxu0 0.0
    %317 = vmatpush1.msra.mxu0 0.0
    %318 = vmatprep.subr.mxu0 0.0
    %319 = vmatpush1.msra.mxu0 0.0
    %320 = vmatprep.subr.mxu0 0.0
    %321 = vmatpush1.msra.mxu0 0.0
    %322 = vmatprep.subr.mxu0 0.0
    %323 = vmatpush1.msra.mxu0 0.0
    %324 = vmatprep.subr.mxu0 0.0
    %325 = vmatpush1.msra.mxu0 0.0
    %326 = vmatprep.subr.mxu0 0.0
    %327 = vmatpush1.msra.mxu0 0.0
    %328 = vmatprep.subr.mxu0 0.0
    %329 = vmatpush1.msra.mxu0 0.0
    %330 = vmatprep.subr.mxu0 0.0
    %331 = vmatpush1.msra.mxu0 0.0
    %332 = vmatprep.subr.mxu0 0.0
    %333 = vmatpush1.msra.mxu0 0.0
    %334 = vmatprep.subr.mxu0 0.0
    %335 = vmatpush1.msra.mxu0 0.0
    %336 = vmatprep.subr.mxu0 0.0
    %337 = vmatpush1.msra.mxu0 0.0
    %338 = vmatprep.subr.mxu0 0.0
    %339 = vmatpush1.msra.mxu0 0.0
    %340 = vmatprep.mubr.f32.mxu0 0.0
    %341 = vmatmul.mubr.f32.gmra.mrb[0].mxu0 %v271
    %v342 = vpop.f32.mrb[0].mxu0
    %v343 = vadd.f32 0.0, %v342
    %v344 = vpop.f32.mrb[0].mxu0
    %v345 = vadd.f32 0.0, %v344
    %346 = vmatprep.mubr.f32.mxu0 0.0
    %347 = vmatmul.mubr.f32.gmra.mrb[0].mxu0 %v274
    %v348 = vpop.f32.mrb[0].mxu0
    %v349 = vadd.f32 0.0, %v348
    %v350 = vpop.f32.mrb[0].mxu0
    %v351 = vadd.f32 0.0, %v350
    %352 = vdwg.mxu0
    %v353 = vmul.f32 %v343, %v210
    %v354 = vmul.f32 %v349, %v211
    %v356 = vsel %vm226, %v343, 0
    %v359 = vsel %vm226, %v349, 0
    %361 = vmatprep.subr.mxu0 0.0
    %362 = vmatpush1.msra.mxu0 %v214
    %363 = vmatprep.subr.mxu0 0.0
    %364 = vmatpush1.msra.mxu0 %v215
    %365 = vmatprep.subr.mxu0 0.0
    %366 = vmatpush1.msra.mxu0 %v216
    %367 = vmatprep.subr.mxu0 0.0
    %368 = vmatpush1.msra.mxu0 %v217
    %369 = vmatprep.subr.mxu0 0.0
    %370 = vmatpush1.msra.mxu0 %v218
    %371 = vmatprep.subr.mxu0 0.0
    %372 = vmatpush1.msra.mxu0 %v219
    %373 = vmatprep.subr.mxu0 0.0
    %374 = vmatpush1.msra.mxu0 %v220
    %375 = vmatprep.subr.mxu0 0.0
    %376 = vmatpush1.msra.mxu0 %v221
    %377 = vmatprep.subr.mxu0 0.0
    %378 = vmatpush1.msra.mxu0 0.0
    %379 = vmatprep.subr.mxu0 0.0
    %380 = vmatpush1.msra.mxu0 0.0
    %381 = vmatprep.subr.mxu0 0.0
    %382 = vmatpush1.msra.mxu0 0.0
    %383 = vmatprep.subr.mxu0 0.0
    %384 = vmatpush1.msra.mxu0 0.0
    %385 = vmatprep.subr.mxu0 0.0
    %386 = vmatpush1.msra.mxu0 0.0
    %387 = vmatprep.subr.mxu0 0.0
    %388 = vmatpush1.msra.mxu0 0.0
    %389 = vmatprep.subr.mxu0 0.0
    %390 = vmatpush1.msra.mxu0 0.0
    %391 = vmatprep.subr.mxu0 0.0
    %392 = vmatpush1.msra.mxu0 0.0
    %393 = vmatprep.subr.mxu0 0.0
    %394 = vmatpush1.msra.mxu0 0.0
    %395 = vmatprep.subr.mxu0 0.0
    %396 = vmatpush1.msra.mxu0 0.0
    %397 = vmatprep.subr.mxu0 0.0
    %398 = vmatpush1.msra.mxu0 0.0
    %399 = vmatprep.subr.mxu0 0.0
    %400 = vmatpush1.msra.mxu0 0.0
    %401 = vmatprep.subr.mxu0 0.0
    %402 = vmatpush1.msra.mxu0 0.0
    %403 = vmatprep.subr.mxu0 0.0
    %404 = vmatpush1.msra.mxu0 0.0
    %405 = vmatprep.subr.mxu0 0.0
    %406 = vmatpush1.msra.mxu0 0.0
    %407 = vmatprep.subr.mxu0 0.0
    %408 = vmatpush1.msra.mxu0 0.0
    %409 = vmatprep.subr.mxu0 0.0
    %410 = vmatpush1.msra.mxu0 0.0
    %411 = vmatprep.subr.mxu0 0.0
    %412 = vmatpush1.msra.mxu0 0.0
    %413 = vmatprep.subr.mxu0 0.0
    %414 = vmatpush1.msra.mxu0 0.0
    %415 = vmatprep.subr.mxu0 0.0
    %416 = vmatpush1.msra.mxu0 0.0
    %417 = vmatprep.subr.mxu0 0.0
    %418 = vmatpush1.msra.mxu0 0.0
    %419 = vmatprep.subr.mxu0 0.0
    %420 = vmatpush1.msra.mxu0 0.0
    %421 = vmatprep.subr.mxu0 0.0
    %422 = vmatpush1.msra.mxu0 0.0
    %423 = vmatprep.subr.mxu0 0.0
    %424 = vmatpush1.msra.mxu0 0.0
    %425 = vmatprep.mubr.f32.mxu0 0.0
    %426 = vmatmul.mubr.f32.gmra.mrb[0].mxu0 %v356
    %v427 = vpop.f32.mrb[0].mxu0
    %v428 = vadd.f32 0.0, %v427
    %v429 = vpop.f32.mrb[0].mxu0
    %430 = vmatprep.mubr.f32.mxu0 0.0
    %431 = vmatmul.mubr.f32.gmra.mrb[0].mxu0 %v359
    %v432 = vpop.f32.mrb[0].mxu0
    %v433 = vadd.f32 0.0, %v432
    %v434 = vpop.f32.mrb[0].mxu0
    %435 = vdwg.mxu0
    %v436 = vmul.f32 %v428, %v212
    %v437 = vmul.f32 %v433, %v213
    %v438 = vadd.f32 %v353, %v436
    %v439 = vadd.f32 %v354, %v437
    %442 = vrot.lane.b32.xlu0 %v210, 64
    %v443 = vpop.permute.xlu0 %442
    %444 = vrot.lane.b32.xlu0 %v211, 64
    %v445 = vpop.permute.xlu0 %444
    %v448 = vmul.f32 %v343, %v443
    %v449 = vmul.f32 %v349, %v445
    %450 = vrot.lane.b32.xlu0 %v343, 64
    %v451 = vpop.permute.xlu0 %450
    %452 = vrot.lane.b32.xlu0 %v349, 64
    %v453 = vpop.permute.xlu0 %452
    %v454 = vsel %vm226, %v451, 0
    %v456 = vsel %vm226, %v453, 0
    %458 = vmatprep.subr.mxu0 0.0
    %459 = vmatpush1.msra.mxu0 %v214
    %460 = vmatprep.subr.mxu0 0.0
    %461 = vmatpush1.msra.mxu0 %v215
    %462 = vmatprep.subr.mxu0 0.0
    %463 = vmatpush1.msra.mxu0 %v216
    %464 = vmatprep.subr.mxu0 0.0
    %465 = vmatpush1.msra.mxu0 %v217
    %466 = vmatprep.subr.mxu0 0.0
    %467 = vmatpush1.msra.mxu0 %v218
    %468 = vmatprep.subr.mxu0 0.0
    %469 = vmatpush1.msra.mxu0 %v219
    %470 = vmatprep.subr.mxu0 0.0
    %471 = vmatpush1.msra.mxu0 %v220
    %472 = vmatprep.subr.mxu0 0.0
    %473 = vmatpush1.msra.mxu0 %v221
    %474 = vmatprep.subr.mxu0 0.0
    %475 = vmatpush1.msra.mxu0 0.0
    %476 = vmatprep.subr.mxu0 0.0
    %477 = vmatpush1.msra.mxu0 0.0
    %478 = vmatprep.subr.mxu0 0.0
    %479 = vmatpush1.msra.mxu0 0.0
    %480 = vmatprep.subr.mxu0 0.0
    %481 = vmatpush1.msra.mxu0 0.0
    %482 = vmatprep.subr.mxu0 0.0
    %483 = vmatpush1.msra.mxu0 0.0
    %484 = vmatprep.subr.mxu0 0.0
    %485 = vmatpush1.msra.mxu0 0.0
    %486 = vmatprep.subr.mxu0 0.0
    %487 = vmatpush1.msra.mxu0 0.0
    %488 = vmatprep.subr.mxu0 0.0
    %489 = vmatpush1.msra.mxu0 0.0
    %490 = vmatprep.subr.mxu0 0.0
    %491 = vmatpush1.msra.mxu0 0.0
    %492 = vmatprep.subr.mxu0 0.0
    %493 = vmatpush1.msra.mxu0 0.0
    %494 = vmatprep.subr.mxu0 0.0
    %495 = vmatpush1.msra.mxu0 0.0
    %496 = vmatprep.subr.mxu0 0.0
    %497 = vmatpush1.msra.mxu0 0.0
    %498 = vmatprep.subr.mxu0 0.0
    %499 = vmatpush1.msra.mxu0 0.0
    %500 = vmatprep.subr.mxu0 0.0
    %501 = vmatpush1.msra.mxu0 0.0
    %502 = vmatprep.subr.mxu0 0.0
    %503 = vmatpush1.msra.mxu0 0.0
    %504 = vmatprep.subr.mxu0 0.0
    %505 = vmatpush1.msra.mxu0 0.0
    %506 = vmatprep.subr.mxu0 0.0
    %507 = vmatpush1.msra.mxu0 0.0
    %508 = vmatprep.subr.mxu0 0.0
    %509 = vmatpush1.msra.mxu0 0.0
    %510 = vmatprep.subr.mxu0 0.0
    %511 = vmatpush1.msra.mxu0 0.0
    %512 = vmatprep.subr.mxu0 0.0
    %513 = vmatpush1.msra.mxu0 0.0
    %514 = vmatprep.subr.mxu0 0.0
    %515 = vmatpush1.msra.mxu0 0.0
    %516 = vmatprep.subr.mxu0 0.0
    %517 = vmatpush1.msra.mxu0 0.0
    %518 = vmatprep.subr.mxu0 0.0
    %519 = vmatpush1.msra.mxu0 0.0
    %520 = vmatprep.subr.mxu0 0.0
    %521 = vmatpush1.msra.mxu0 0.0
    %522 = vmatprep.mubr.f32.mxu0 0.0
    %523 = vmatmul.mubr.f32.gmra.mrb[0].mxu0 %v454
    %v524 = vpop.f32.mrb[0].mxu0
    %v525 = vadd.f32 0.0, %v524
    %v526 = vpop.f32.mrb[0].mxu0
    %527 = vmatprep.mubr.f32.mxu0 0.0
    %528 = vmatmul.mubr.f32.gmra.mrb[0].mxu0 %v456
    %v529 = vpop.f32.mrb[0].mxu0
    %v530 = vadd.f32 0.0, %v529
    %v531 = vpop.f32.mrb[0].mxu0
    %532 = vdwg.mxu0
    %v533 = vmul.f32 %v525, %v212
    %v534 = vmul.f32 %v530, %v213
    %537 = vrot.lane.b32.xlu0 %v533, 64
    %v538 = vpop.permute.xlu0 %537
    %539 = vrot.lane.b32.xlu0 %v534, 64
    %v540 = vpop.permute.xlu0 %539
    %v543 = vadd.f32 %v448, %v538
    %v544 = vadd.f32 %v449, %v540
    %vm545 = vcmp.gt.f32.partialorder %v222, 0.0
    %v546 = vsel %vm545, 1, 0
    %v547 = vlaneseq
    %v548 = vshrl.u32 %v547, 7
    %v549 = vsub.s32 0, %v548
    %v550 = vrot.slane %v546, %v549
    %vm551 = vcmp.eq.s32.totalorder %v550, 1
    %vm552 = vmand %vm225, %vm551
    %v553 = vsel %vm552, 0.0, -1e+09
    %555 = vrot.lane.b32.xlu0 %v543, 64
    %v556 = vpop.permute.xlu0 %555
    %vm557 = vcmask 130048
    %v559 = vsel %vm557, %v438, 0
    %v561 = vsel %vm557, %v556, 0
    %563 = vmatprep.subr.mxu0 0.0
    %564 = vmatpush1.xpose.msra.mxu0 %v561
    %565 = vmatprep.subr.mxu0 0.0
    %566 = vmatpush1.xpose.msra.mxu0 0.0
    %567 = vmatprep.subr.mxu0 0.0
    %568 = vmatpush1.xpose.msra.mxu0 0.0
    %569 = vmatprep.subr.mxu0 0.0
    %570 = vmatpush1.xpose.msra.mxu0 0.0
    %571 = vmatprep.subr.mxu0 0.0
    %572 = vmatpush1.xpose.msra.mxu0 0.0
    %573 = vmatprep.subr.mxu0 0.0
    %574 = vmatpush1.xpose.msra.mxu0 0.0
    %575 = vmatprep.subr.mxu0 0.0
    %576 = vmatpush1.xpose.msra.mxu0 0.0
    %577 = vmatprep.subr.mxu0 0.0
    %578 = vmatpush1.xpose.msra.mxu0 0.0
    %579 = vmatprep.subr.mxu0 0.0
    %580 = vmatpush1.xpose.msra.mxu0 0.0
    %581 = vmatprep.subr.mxu0 0.0
    %582 = vmatpush1.xpose.msra.mxu0 0.0
    %583 = vmatprep.subr.mxu0 0.0
    %584 = vmatpush1.xpose.msra.mxu0 0.0
    %585 = vmatprep.subr.mxu0 0.0
    %586 = vmatpush1.xpose.msra.mxu0 0.0
    %587 = vmatprep.subr.mxu0 0.0
    %588 = vmatpush1.xpose.msra.mxu0 0.0
    %589 = vmatprep.subr.mxu0 0.0
    %590 = vmatpush1.xpose.msra.mxu0 0.0
    %591 = vmatprep.subr.mxu0 0.0
    %592 = vmatpush1.xpose.msra.mxu0 0.0
    %593 = vmatprep.subr.mxu0 0.0
    %594 = vmatpush1.xpose.msra.mxu0 0.0
    %595 = vmatprep.subr.mxu0 0.0
    %596 = vmatpush1.xpose.msra.mxu0 0.0
    %597 = vmatprep.subr.mxu0 0.0
    %598 = vmatpush1.xpose.msra.mxu0 0.0
    %599 = vmatprep.subr.mxu0 0.0
    %600 = vmatpush1.xpose.msra.mxu0 0.0
    %601 = vmatprep.subr.mxu0 0.0
    %602 = vmatpush1.xpose.msra.mxu0 0.0
    %603 = vmatprep.subr.mxu0 0.0
    %604 = vmatpush1.xpose.msra.mxu0 0.0
    %605 = vmatprep.subr.mxu0 0.0
    %606 = vmatpush1.xpose.msra.mxu0 0.0
    %607 = vmatprep.subr.mxu0 0.0
    %608 = vmatpush1.xpose.msra.mxu0 0.0
    %609 = vmatprep.subr.mxu0 0.0
    %610 = vmatpush1.xpose.msra.mxu0 0.0
    %611 = vmatprep.subr.mxu0 0.0
    %612 = vmatpush1.xpose.msra.mxu0 0.0
    %613 = vmatprep.subr.mxu0 0.0
    %614 = vmatpush1.xpose.msra.mxu0 0.0
    %615 = vmatprep.subr.mxu0 0.0
    %616 = vmatpush1.xpose.msra.mxu0 0.0
    %617 = vmatprep.subr.mxu0 0.0
    %618 = vmatpush1.xpose.msra.mxu0 0.0
    %619 = vmatprep.subr.mxu0 0.0
    %620 = vmatpush1.xpose.msra.mxu0 0.0
    %621 = vmatprep.subr.mxu0 0.0
    %622 = vmatpush1.xpose.msra.mxu0 0.0
    %623 = vmatprep.subr.mxu0 0.0
    %624 = vmatpush1.xpose.msra.mxu0 0.0
    %625 = vmatprep.subr.mxu0 0.0
    %626 = vmatpush1.xpose.msra.mxu0 0.0
    %627 = vmatprep.mubr.f32.mxu0 0.0
    %628 = vmatmul.mubr.f32.gmra.mrb[0].mxu0 %v559
    %v629 = vpop.f32.mrb[0].mxu0
    %v630 = vadd.f32 0.0, %v629
    %v631 = vpop.f32.mrb[0].mxu0
    %632 = vdwg.mxu0
    %v633 = vmul.f32 %v630, 0.25
    %v634 = vadd.f32 %v633, %v553
    %vm635 = vcmask 64512
    %v636 = vsel %vm635, %v634, -inf
    %637 = vmax.xlane.f32.xlu0 %v636
    %v638 = vpop.xlane.xlu0 %637
    %v639 = vsub.f32 %v634, %v638
    %v640 = vmul.f32 %v639, 1.442695
    %v641 = vpow.pop %v640
    %v642 = vsel %vm635, %v641, 0.0
    %643 = vadd.xlane.f32.xlu0 %v642
    %v644 = vpop.xlane.xlu0 %643
    %v645 = vrcp.pop %v644
    %v646 = vmul.f32 %v641, %v645
    %v648 = vsel %vm635, %v646, 0
    %650 = vmatprep.subr.mxu0 0.0
    %651 = vmatpush1.msra.mxu0 %v345
    %652 = vmatprep.subr.mxu0 0.0
    %653 = vmatpush1.msra.mxu0 0.0
    %654 = vmatprep.subr.mxu0 0.0
    %655 = vmatpush1.msra.mxu0 0.0
    %656 = vmatprep.subr.mxu0 0.0
    %657 = vmatpush1.msra.mxu0 0.0
    %658 = vmatprep.subr.mxu0 0.0
    %659 = vmatpush1.msra.mxu0 0.0
    %660 = vmatprep.subr.mxu0 0.0
    %661 = vmatpush1.msra.mxu0 0.0
    %662 = vmatprep.subr.mxu0 0.0
    %663 = vmatpush1.msra.mxu0 0.0
    %664 = vmatprep.subr.mxu0 0.0
    %665 = vmatpush1.msra.mxu0 0.0
    %666 = vmatprep.subr.mxu0 0.0
    %667 = vmatpush1.msra.mxu0 0.0
    %668 = vmatprep.subr.mxu0 0.0
    %669 = vmatpush1.msra.mxu0 0.0
    %670 = vmatprep.subr.mxu0 0.0
    %671 = vmatpush1.msra.mxu0 0.0
    %672 = vmatprep.subr.mxu0 0.0
    %673 = vmatpush1.msra.mxu0 0.0
    %674 = vmatprep.subr.mxu0 0.0
    %675 = vmatpush1.msra.mxu0 0.0
    %676 = vmatprep.subr.mxu0 0.0
    %677 = vmatpush1.msra.mxu0 0.0
    %678 = vmatprep.subr.mxu0 0.0
    %679 = vmatpush1.msra.mxu0 0.0
    %680 = vmatprep.subr.mxu0 0.0
    %681 = vmatpush1.msra.mxu0 0.0
    %682 = vmatprep.subr.mxu0 0.0
    %683 = vmatpush1.msra.mxu0 0.0
    %684 = vmatprep.subr.mxu0 0.0
    %685 = vmatpush1.msra.mxu0 0.0
    %686 = vmatprep.subr.mxu0 0.0
    %687 = vmatpush1.msra.mxu0 0.0
    %688 = vmatprep.subr.mxu0 0.0
    %689 = vmatpush1.msra.mxu0 0.0
    %690 = vmatprep.subr.mxu0 0.0
    %691 = vmatpush1.msra.mxu0 0.0
    %692 = vmatprep.subr.mxu0 0.0
    %693 = vmatpush1.msra.mxu0 0.0
    %694 = vmatprep.subr.mxu0 0.0
    %695 = vmatpush1.msra.mxu0 0.0
    %696 = vmatprep.subr.mxu0 0.0
    %697 = vmatpush1.msra.mxu0 0.0
    %698 = vmatprep.subr.mxu0 0.0
    %699 = vmatpush1.msra.mxu0 0.0
    %700 = vmatprep.subr.mxu0 0.0
    %701 = vmatpush1.msra.mxu0 0.0
    %702 = vmatprep.subr.mxu0 0.0
    %703 = vmatpush1.msra.mxu0 0.0
    %704 = vmatprep.subr.mxu0 0.0
    %705 = vmatpush1.msra.mxu0 0.0
    %706 = vmatprep.subr.mxu0 0.0
    %707 = vmatpush1.msra.mxu0 0.0
    %708 = vmatprep.subr.mxu0 0.0
    %709 = vmatpush1.msra.mxu0 0.0
    %710 = vmatprep.subr.mxu0 0.0
    %711 = vmatpush1.msra.mxu0 0.0
    %712 = vmatprep.subr.mxu0 0.0
    %713 = vmatpush1.msra.mxu0 0.0
    %714 = vmatprep.mubr.f32.mxu0 0.0
    %715 = vmatmul.mubr.f32.gmra.mrb[0].mxu0 %v648
    %v716 = vpop.f32.mrb[0].mxu0
    %v717 = vadd.f32 0.0, %v716
    %v718 = vpop.f32.mrb[0].mxu0
    %719 = vdwg.mxu0
    %720 = vst.msk [vmem:[#allocation2] sm:$0xff] %vm557, %v717
    %721 = vrot.lane.b32.xlu0 %v438, 112
    %v722 = vpop.permute.xlu0 %721
    %723 = vrot.lane.b32.xlu0 %v543, 48
    %v724 = vpop.permute.xlu0 %723
    %v725 = vsel %vm557, %v722, 0
    %v727 = vsel %vm557, %v724, 0
    %729 = vmatprep.subr.mxu0 0.0
    %730 = vmatpush1.xpose.msra.mxu0 %v727
    %731 = vmatprep.subr.mxu0 0.0
    %732 = vmatpush1.xpose.msra.mxu0 0.0
    %733 = vmatprep.subr.mxu0 0.0
    %734 = vmatpush1.xpose.msra.mxu0 0.0
    %735 = vmatprep.subr.mxu0 0.0
    %736 = vmatpush1.xpose.msra.mxu0 0.0
    %737 = vmatprep.subr.mxu0 0.0
    %738 = vmatpush1.xpose.msra.mxu0 0.0
    %739 = vmatprep.subr.mxu0 0.0
    %740 = vmatpush1.xpose.msra.mxu0 0.0
    %741 = vmatprep.subr.mxu0 0.0
    %742 = vmatpush1.xpose.msra.mxu0 0.0
    %743 = vmatprep.subr.mxu0 0.0
    %744 = vmatpush1.xpose.msra.mxu0 0.0
    %745 = vmatprep.subr.mxu0 0.0
    %746 = vmatpush1.xpose.msra.mxu0 0.0
    %747 = vmatprep.subr.mxu0 0.0
    %748 = vmatpush1.xpose.msra.mxu0 0.0
    %749 = vmatprep.subr.mxu0 0.0
    %750 = vmatpush1.xpose.msra.mxu0 0.0
    %751 = vmatprep.subr.mxu0 0.0
    %752 = vmatpush1.xpose.msra.mxu0 0.0
    %753 = vmatprep.subr.mxu0 0.0
    %754 = vmatpush1.xpose.msra.mxu0 0.0
    %755 = vmatprep.subr.mxu0 0.0
    %756 = vmatpush1.xpose.msra.mxu0 0.0
    %757 = vmatprep.subr.mxu0 0.0
    %758 = vmatpush1.xpose.msra.mxu0 0.0
    %759 = vmatprep.subr.mxu0 0.0
    %760 = vmatpush1.xpose.msra.mxu0 0.0
    %761 = vmatprep.subr.mxu0 0.0
    %762 = vmatpush1.xpose.msra.mxu0 0.0
    %763 = vmatprep.subr.mxu0 0.0
    %764 = vmatpush1.xpose.msra.mxu0 0.0
    %765 = vmatprep.subr.mxu0 0.0
    %766 = vmatpush1.xpose.msra.mxu0 0.0
    %767 = vmatprep.subr.mxu0 0.0
    %768 = vmatpush1.xpose.msra.mxu0 0.0
    %769 = vmatprep.subr.mxu0 0.0
    %770 = vmatpush1.xpose.msra.mxu0 0.0
    %771 = vmatprep.subr.mxu0 0.0
    %772 = vmatpush1.xpose.msra.mxu0 0.0
    %773 = vmatprep.subr.mxu0 0.0
    %774 = vmatpush1.xpose.msra.mxu0 0.0
    %775 = vmatprep.subr.mxu0 0.0
    %776 = vmatpush1.xpose.msra.mxu0 0.0
    %777 = vmatprep.subr.mxu0 0.0
    %778 = vmatpush1.xpose.msra.mxu0 0.0
    %779 = vmatprep.subr.mxu0 0.0
    %780 = vmatpush1.xpose.msra.mxu0 0.0
    %781 = vmatprep.subr.mxu0 0.0
    %782 = vmatpush1.xpose.msra.mxu0 0.0
    %783 = vmatprep.subr.mxu0 0.0
    %784 = vmatpush1.xpose.msra.mxu0 0.0
    %785 = vmatprep.subr.mxu0 0.0
    %786 = vmatpush1.xpose.msra.mxu0 0.0
    %787 = vmatprep.subr.mxu0 0.0
    %788 = vmatpush1.xpose.msra.mxu0 0.0
    %789 = vmatprep.subr.mxu0 0.0
    %790 = vmatpush1.xpose.msra.mxu0 0.0
    %791 = vmatprep.subr.mxu0 0.0
    %792 = vmatpush1.xpose.msra.mxu0 0.0
    %793 = vmatprep.mubr.f32.mxu0 0.0
    %794 = vmatmul.mubr.f32.gmra.mrb[0].mxu0 %v725
    %v795 = vpop.f32.mrb[0].mxu0
    %v796 = vadd.f32 0.0, %v795
    %v797 = vpop.f32.mrb[0].mxu0
    %798 = vdwg.mxu0
    %v799 = vmul.f32 %v796, 0.25
    %v800 = vadd.f32 %v799, %v553
    %v801 = vsel %vm635, %v800, -inf
    %802 = vmax.xlane.f32.xlu0 %v801
    %v803 = vpop.xlane.xlu0 %802
    %v804 = vsub.f32 %v800, %v803
    %v805 = vmul.f32 %v804, 1.442695
    %v806 = vpow.pop %v805
    %v807 = vsel %vm635, %v806, 0.0
    %808 = vadd.xlane.f32.xlu0 %v807
    %v809 = vpop.xlane.xlu0 %808
    %v810 = vrcp.pop %v809
    %v811 = vmul.f32 %v806, %v810
    %813 = vrot.lane.b32.xlu0 %v345, 112
    %v814 = vpop.permute.xlu0 %813
    %v817 = vsel %vm635, %v811, 0
    %819 = vmatprep.subr.mxu0 0.0
    %820 = vmatpush1.msra.mxu0 %v814
    %821 = vmatprep.subr.mxu0 0.0
    %822 = vmatpush1.msra.mxu0 0.0
    %823 = vmatprep.subr.mxu0 0.0
    %824 = vmatpush1.msra.mxu0 0.0
    %825 = vmatprep.subr.mxu0 0.0
    %826 = vmatpush1.msra.mxu0 0.0
    %827 = vmatprep.subr.mxu0 0.0
    %828 = vmatpush1.msra.mxu0 0.0
    %829 = vmatprep.subr.mxu0 0.0
    %830 = vmatpush1.msra.mxu0 0.0
    %831 = vmatprep.subr.mxu0 0.0
    %832 = vmatpush1.msra.mxu0 0.0
    %833 = vmatprep.subr.mxu0 0.0
    %834 = vmatpush1.msra.mxu0 0.0
    %835 = vmatprep.subr.mxu0 0.0
    %836 = vmatpush1.msra.mxu0 0.0
    %837 = vmatprep.subr.mxu0 0.0
    %838 = vmatpush1.msra.mxu0 0.0
    %839 = vmatprep.subr.mxu0 0.0
    %840 = vmatpush1.msra.mxu0 0.0
    %841 = vmatprep.subr.mxu0 0.0
    %842 = vmatpush1.msra.mxu0 0.0
    %843 = vmatprep.subr.mxu0 0.0
    %844 = vmatpush1.msra.mxu0 0.0
    %845 = vmatprep.subr.mxu0 0.0
    %846 = vmatpush1.msra.mxu0 0.0
    %847 = vmatprep.subr.mxu0 0.0
    %848 = vmatpush1.msra.mxu0 0.0
    %849 = vmatprep.subr.mxu0 0.0
    %850 = vmatpush1.msra.mxu0 0.0
    %851 = vmatprep.subr.mxu0 0.0
    %852 = vmatpush1.msra.mxu0 0.0
    %853 = vmatprep.subr.mxu0 0.0
    %854 = vmatpush1.msra.mxu0 0.0
    %855 = vmatprep.subr.mxu0 0.0
    %856 = vmatpush1.msra.mxu0 0.0
    %857 = vmatprep.subr.mxu0 0.0
    %858 = vmatpush1.msra.mxu0 0.0
    %859 = vmatprep.subr.mxu0 0.0
    %860 = vmatpush1.msra.mxu0 0.0
    %861 = vmatprep.subr.mxu0 0.0
    %862 = vmatpush1.msra.mxu0 0.0
    %863 = vmatprep.subr.mxu0 0.0
    %864 = vmatpush1.msra.mxu0 0.0
    %865 = vmatprep.subr.mxu0 0.0
    %866 = vmatpush1.msra.mxu0 0.0
    %867 = vmatprep.subr.mxu0 0.0
    %868 = vmatpush1.msra.mxu0 0.0
    %869 = vmatprep.subr.mxu0 0.0
    %870 = vmatpush1.msra.mxu0 0.0
    %871 = vmatprep.subr.mxu0 0.0
    %872 = vmatpush1.msra.mxu0 0.0
    %873 = vmatprep.subr.mxu0 0.0
    %874 = vmatpush1.msra.mxu0 0.0
    %875 = vmatprep.subr.mxu0 0.0
    %876 = vmatpush1.msra.mxu0 0.0
    %877 = vmatprep.subr.mxu0 0.0
    %878 = vmatpush1.msra.mxu0 0.0
    %879 = vmatprep.subr.mxu0 0.0
    %880 = vmatpush1.msra.mxu0 0.0
    %881 = vmatprep.subr.mxu0 0.0
    %882 = vmatpush1.msra.mxu0 0.0
    %883 = vmatprep.mubr.f32.mxu0 0.0
    %884 = vmatmul.mubr.f32.gmra.mrb[0].mxu0 %v817
    %v885 = vpop.f32.mrb[0].mxu0
    %v886 = vadd.f32 0.0, %v885
    %v887 = vpop.f32.mrb[0].mxu0
    %888 = vdwg.mxu0
    %890 = vrot.lane.b32.xlu0 %v886, 16
    %v891 = vpop.permute.xlu0 %890
    %vm893 = vcmask 261248
    %894 = vst.msk [vmem:[#allocation2] sm:$0xff] %vm893, %v891
    %895 = vrot.lane.b32.xlu0 %v438, 96
    %v896 = vpop.permute.xlu0 %895
    %897 = vrot.lane.b32.xlu0 %v543, 32
    %v898 = vpop.permute.xlu0 %897
    %v899 = vsel %vm557, %v896, 0
    %v901 = vsel %vm557, %v898, 0
    %903 = vmatprep.subr.mxu0 0.0
    %904 = vmatpush1.xpose.msra.mxu0 %v901
    %905 = vmatprep.subr.mxu0 0.0
    %906 = vmatpush1.xpose.msra.mxu0 0.0
    %907 = vmatprep.subr.mxu0 0.0
    %908 = vmatpush1.xpose.msra.mxu0 0.0
    %909 = vmatprep.subr.mxu0 0.0
    %910 = vmatpush1.xpose.msra.mxu0 0.0
    %911 = vmatprep.subr.mxu0 0.0
    %912 = vmatpush1.xpose.msra.mxu0 0.0
    %913 = vmatprep.subr.mxu0 0.0
    %914 = vmatpush1.xpose.msra.mxu0 0.0
    %915 = vmatprep.subr.mxu0 0.0
    %916 = vmatpush1.xpose.msra.mxu0 0.0
    %917 = vmatprep.subr.mxu0 0.0
    %918 = vmatpush1.xpose.msra.mxu0 0.0
    %919 = vmatprep.subr.mxu0 0.0
    %920 = vmatpush1.xpose.msra.mxu0 0.0
    %921 = vmatprep.subr.mxu0 0.0
    %922 = vmatpush1.xpose.msra.mxu0 0.0
    %923 = vmatprep.subr.mxu0 0.0
    %924 = vmatpush1.xpose.msra.mxu0 0.0
    %925 = vmatprep.subr.mxu0 0.0
    %926 = vmatpush1.xpose.msra.mxu0 0.0
    %927 = vmatprep.subr.mxu0 0.0
    %928 = vmatpush1.xpose.msra.mxu0 0.0
    %929 = vmatprep.subr.mxu0 0.0
    %930 = vmatpush1.xpose.msra.mxu0 0.0
    %931 = vmatprep.subr.mxu0 0.0
    %932 = vmatpush1.xpose.msra.mxu0 0.0
    %933 = vmatprep.subr.mxu0 0.0
    %934 = vmatpush1.xpose.msra.mxu0 0.0
    %935 = vmatprep.subr.mxu0 0.0
    %936 = vmatpush1.xpose.msra.mxu0 0.0
    %937 = vmatprep.subr.mxu0 0.0
    %938 = vmatpush1.xpose.msra.mxu0 0.0
    %939 = vmatprep.subr.mxu0 0.0
    %940 = vmatpush1.xpose.msra.mxu0 0.0
    %941 = vmatprep.subr.mxu0 0.0
    %942 = vmatpush1.xpose.msra.mxu0 0.0
    %943 = vmatprep.subr.mxu0 0.0
    %944 = vmatpush1.xpose.msra.mxu0 0.0
    %945 = vmatprep.subr.mxu0 0.0
    %946 = vmatpush1.xpose.msra.mxu0 0.0
    %947 = vmatprep.subr.mxu0 0.0
    %948 = vmatpush1.xpose.msra.mxu0 0.0
    %949 = vmatprep.subr.mxu0 0.0
    %950 = vmatpush1.xpose.msra.mxu0 0.0
    %951 = vmatprep.subr.mxu0 0.0
    %952 = vmatpush1.xpose.msra.mxu0 0.0
    %953 = vmatprep.subr.mxu0 0.0
    %954 = vmatpush1.xpose.msra.mxu0 0.0
    %955 = vmatprep.subr.mxu0 0.0
    %956 = vmatpush1.xpose.msra.mxu0 0.0
    %957 = vmatprep.subr.mxu0 0.0
    %958 = vmatpush1.xpose.msra.mxu0 0.0
    %959 = vmatprep.subr.mxu0 0.0
    %960 = vmatpush1.xpose.msra.mxu0 0.0
    %961 = vmatprep.subr.mxu0 0.0
    %962 = vmatpush1.xpose.msra.mxu0 0.0
    %963 = vmatprep.subr.mxu0 0.0
    %964 = vmatpush1.xpose.msra.mxu0 0.0
    %965 = vmatprep.subr.mxu0 0.0
    %966 = vmatpush1.xpose.msra.mxu0 0.0
    %967 = vmatprep.mubr.f32.mxu0 0.0
    %968 = vmatmul.mubr.f32.gmra.mrb[0].mxu0 %v899
    %v969 = vpop.f32.mrb[0].mxu0
    %v970 = vadd.f32 0.0, %v969
    %v971 = vpop.f32.mrb[0].mxu0
    %972 = vdwg.mxu0
    %v973 = vmul.f32 %v970, 0.25
    %v974 = vadd.f32 %v973, %v553
    %v975 = vsel %vm635, %v974, -inf
    %976 = vmax.xlane.f32.xlu0 %v975
    %v977 = vpop.xlane.xlu0 %976
    %v978 = vsub.f32 %v974, %v977
    %v979 = vmul.f32 %v978, 1.442695
    %v980 = vpow.pop %v979
    %v981 = vsel %vm635, %v980, 0.0
    %982 = vadd.xlane.f32.xlu0 %v981
    %v983 = vpop.xlane.xlu0 %982
    %v984 = vrcp.pop %v983
    %v985 = vmul.f32 %v980, %v984
    %986 = vrot.lane.b32.xlu0 %v345, 96
    %v987 = vpop.permute.xlu0 %986
    %v990 = vsel %vm635, %v985, 0
    %992 = vmatprep.subr.mxu0 0.0
    %993 = vmatpush1.msra.mxu0 %v987
    %994 = vmatprep.subr.mxu0 0.0
    %995 = vmatpush1.msra.mxu0 0.0
    %996 = vmatprep.subr.mxu0 0.0
    %997 = vmatpush1.msra.mxu0 0.0
    %998 = vmatprep.subr.mxu0 0.0
    %999 = vmatpush1.msra.mxu0 0.0
    %1000 = vmatprep.subr.mxu0 0.0
    %1001 = vmatpush1.msra.mxu0 0.0
    %1002 = vmatprep.subr.mxu0 0.0
    %1003 = vmatpush1.msra.mxu0 0.0
    %1004 = vmatprep.subr.mxu0 0.0
    %1005 = vmatpush1.msra.mxu0 0.0
    %1006 = vmatprep.subr.mxu0 0.0
    %1007 = vmatpush1.msra.mxu0 0.0
    %1008 = vmatprep.subr.mxu0 0.0
    %1009 = vmatpush1.msra.mxu0 0.0
    %1010 = vmatprep.subr.mxu0 0.0
    %1011 = vmatpush1.msra.mxu0 0.0
    %1012 = vmatprep.subr.mxu0 0.0
    %1013 = vmatpush1.msra.mxu0 0.0
    %1014 = vmatprep.subr.mxu0 0.0
    %1015 = vmatpush1.msra.mxu0 0.0
    %1016 = vmatprep.subr.mxu0 0.0
    %1017 = vmatpush1.msra.mxu0 0.0
    %1018 = vmatprep.subr.mxu0 0.0
    %1019 = vmatpush1.msra.mxu0 0.0
    %1020 = vmatprep.subr.mxu0 0.0
    %1021 = vmatpush1.msra.mxu0 0.0
    %1022 = vmatprep.subr.mxu0 0.0
    %1023 = vmatpush1.msra.mxu0 0.0
    %1024 = vmatprep.subr.mxu0 0.0
    %1025 = vmatpush1.msra.mxu0 0.0
    %1026 = vmatprep.subr.mxu0 0.0
    %1027 = vmatpush1.msra.mxu0 0.0
    %1028 = vmatprep.subr.mxu0 0.0
    %1029 = vmatpush1.msra.mxu0 0.0
    %1030 = vmatprep.subr.mxu0 0.0
    %1031 = vmatpush1.msra.mxu0 0.0
    %1032 = vmatprep.subr.mxu0 0.0
    %1033 = vmatpush1.msra.mxu0 0.0
    %1034 = vmatprep.subr.mxu0 0.0
    %1035 = vmatpush1.msra.mxu0 0.0
    %1036 = vmatprep.subr.mxu0 0.0
    %1037 = vmatpush1.msra.mxu0 0.0
    %1038 = vmatprep.subr.mxu0 0.0
    %1039 = vmatpush1.msra.mxu0 0.0
    %1040 = vmatprep.subr.mxu0 0.0
    %1041 = vmatpush1.msra.mxu0 0.0
    %1042 = vmatprep.subr.mxu0 0.0
    %1043 = vmatpush1.msra.mxu0 0.0
    %1044 = vmatprep.subr.mxu0 0.0
    %1045 = vmatpush1.msra.mxu0 0.0
    %1046 = vmatprep.subr.mxu0 0.0
    %1047 = vmatpush1.msra.mxu0 0.0
    %1048 = vmatprep.subr.mxu0 0.0
    %1049 = vmatpush1.msra.mxu0 0.0
    %1050 = vmatprep.subr.mxu0 0.0
    %1051 = vmatpush1.msra.mxu0 0.0
    %1052 = vmatprep.subr.mxu0 0.0
    %1053 = vmatpush1.msra.mxu0 0.0
    %1054 = vmatprep.subr.mxu0 0.0
    %1055 = vmatpush1.msra.mxu0 0.0
    %1056 = vmatprep.mubr.f32.mxu0 0.0
    %1057 = vmatmul.mubr.f32.gmra.mrb[0].mxu0 %v990
    %v1058 = vpop.f32.mrb[0].mxu0
    %v1059 = vadd.f32 0.0, %v1058
    %v1060 = vpop.f32.mrb[0].mxu0
    %1061 = vdwg.mxu0
    %1063 = vrot.lane.b32.xlu0 %v1059, 32
    %v1064 = vpop.permute.xlu0 %1063
    %vm1066 = vcmask 392448
    %1067 = vst.msk [vmem:[#allocation2] sm:$0xff] %vm1066, %v1064
    %1068 = vrot.lane.b32.xlu0 %v438, 80
    %v1069 = vpop.permute.xlu0 %1068
    %1070 = vrot.lane.b32.xlu0 %v543, 16
    %v1071 = vpop.permute.xlu0 %1070
    %v1072 = vsel %vm557, %v1069, 0
    %v1074 = vsel %vm557, %v1071, 0
    %1076 = vmatprep.subr.mxu0 0.0
    %1077 = vmatpush1.xpose.msra.mxu0 %v1074
    %1078 = vmatprep.subr.mxu0 0.0
    %1079 = vmatpush1.xpose.msra.mxu0 0.0
    %1080 = vmatprep.subr.mxu0 0.0
    %1081 = vmatpush1.xpose.msra.mxu0 0.0
    %1082 = vmatprep.subr.mxu0 0.0
    %1083 = vmatpush1.xpose.msra.mxu0 0.0
    %1084 = vmatprep.subr.mxu0 0.0
    %1085 = vmatpush1.xpose.msra.mxu0 0.0
    %1086 = vmatprep.subr.mxu0 0.0
    %1087 = vmatpush1.xpose.msra.mxu0 0.0
    %1088 = vmatprep.subr.mxu0 0.0
    %1089 = vmatpush1.xpose.msra.mxu0 0.0
    %1090 = vmatprep.subr.mxu0 0.0
    %1091 = vmatpush1.xpose.msra.mxu0 0.0
    %1092 = vmatprep.subr.mxu0 0.0
    %1093 = vmatpush1.xpose.msra.mxu0 0.0
    %1094 = vmatprep.subr.mxu0 0.0
    %1095 = vmatpush1.xpose.msra.mxu0 0.0
    %1096 = vmatprep.subr.mxu0 0.0
    %1097 = vmatpush1.xpose.msra.mxu0 0.0
    %1098 = vmatprep.subr.mxu0 0.0
    %1099 = vmatpush1.xpose.msra.mxu0 0.0
    %1100 = vmatprep.subr.mxu0 0.0
    %1101 = vmatpush1.xpose.msra.mxu0 0.0
    %1102 = vmatprep.subr.mxu0 0.0
    %1103 = vmatpush1.xpose.msra.mxu0 0.0
    %1104 = vmatprep.subr.mxu0 0.0
    %1105 = vmatpush1.xpose.msra.mxu0 0.0
    %1106 = vmatprep.subr.mxu0 0.0
    %1107 = vmatpush1.xpose.msra.mxu0 0.0
    %1108 = vmatprep.subr.mxu0 0.0
    %1109 = vmatpush1.xpose.msra.mxu0 0.0
    %1110 = vmatprep.subr.mxu0 0.0
    %1111 = vmatpush1.xpose.msra.mxu0 0.0
    %1112 = vmatprep.subr.mxu0 0.0
    %1113 = vmatpush1.xpose.msra.mxu0 0.0
    %1114 = vmatprep.subr.mxu0 0.0
    %1115 = vmatpush1.xpose.msra.mxu0 0.0
    %1116 = vmatprep.subr.mxu0 0.0
    %1117 = vmatpush1.xpose.msra.mxu0 0.0
    %1118 = vmatprep.subr.mxu0 0.0
    %1119 = vmatpush1.xpose.msra.mxu0 0.0
    %1120 = vmatprep.subr.mxu0 0.0
    %1121 = vmatpush1.xpose.msra.mxu0 0.0
    %1122 = vmatprep.subr.mxu0 0.0
    %1123 = vmatpush1.xpose.msra.mxu0 0.0
    %1124 = vmatprep.subr.mxu0 0.0
    %1125 = vmatpush1.xpose.msra.mxu0 0.0
    %1126 = vmatprep.subr.mxu0 0.0
    %1127 = vmatpush1.xpose.msra.mxu0 0.0
    %1128 = vmatprep.subr.mxu0 0.0
    %1129 = vmatpush1.xpose.msra.mxu0 0.0
    %1130 = vmatprep.subr.mxu0 0.0
    %1131 = vmatpush1.xpose.msra.mxu0 0.0
    %1132 = vmatprep.subr.mxu0 0.0
    %1133 = vmatpush1.xpose.msra.mxu0 0.0
    %1134 = vmatprep.subr.mxu0 0.0
    %1135 = vmatpush1.xpose.msra.mxu0 0.0
    %1136 = vmatprep.subr.mxu0 0.0
    %1137 = vmatpush1.xpose.msra.mxu0 0.0
    %1138 = vmatprep.subr.mxu0 0.0
    %1139 = vmatpush1.xpose.msra.mxu0 0.0
    %1140 = vmatprep.mubr.f32.mxu0 0.0
    %1141 = vmatmul.mubr.f32.gmra.mrb[0].mxu0 %v1072
    %v1142 = vpop.f32.mrb[0].mxu0
    %v1143 = vadd.f32 0.0, %v1142
    %v1144 = vpop.f32.mrb[0].mxu0
    %1145 = vdwg.mxu0
    %v1146 = vmul.f32 %v1143, 0.25
    %v1147 = vadd.f32 %v1146, %v553
    %v1148 = vsel %vm635, %v1147, -inf
    %1149 = vmax.xlane.f32.xlu0 %v1148
    %v1150 = vpop.xlane.xlu0 %1149
    %v1151 = vsub.f32 %v1147, %v1150
    %v1152 = vmul.f32 %v1151, 1.442695
    %v1153 = vpow.pop %v1152
    %v1154 = vsel %vm635, %v1153, 0.0
    %1155 = vadd.xlane.f32.xlu0 %v1154
    %v1156 = vpop.xlane.xlu0 %1155
    %v1157 = vrcp.pop %v1156
    %v1158 = vmul.f32 %v1153, %v1157
    %1159 = vrot.lane.b32.xlu0 %v345, 80
    %v1160 = vpop.permute.xlu0 %1159
    %v1163 = vsel %vm635, %v1158, 0
    %1165 = vmatprep.subr.mxu0 0.0
    %1166 = vmatpush1.msra.mxu0 %v1160
    %1167 = vmatprep.subr.mxu0 0.0
    %1168 = vmatpush1.msra.mxu0 0.0
    %1169 = vmatprep.subr.mxu0 0.0
    %1170 = vmatpush1.msra.mxu0 0.0
    %1171 = vmatprep.subr.mxu0 0.0
    %1172 = vmatpush1.msra.mxu0 0.0
    %1173 = vmatprep.subr.mxu0 0.0
    %1174 = vmatpush1.msra.mxu0 0.0
    %1175 = vmatprep.subr.mxu0 0.0
    %1176 = vmatpush1.msra.mxu0 0.0
    %1177 = vmatprep.subr.mxu0 0.0
    %1178 = vmatpush1.msra.mxu0 0.0
    %1179 = vmatprep.subr.mxu0 0.0
    %1180 = vmatpush1.msra.mxu0 0.0
    %1181 = vmatprep.subr.mxu0 0.0
    %1182 = vmatpush1.msra.mxu0 0.0
    %1183 = vmatprep.subr.mxu0 0.0
    %1184 = vmatpush1.msra.mxu0 0.0
    %1185 = vmatprep.subr.mxu0 0.0
    %1186 = vmatpush1.msra.mxu0 0.0
    %1187 = vmatprep.subr.mxu0 0.0
    %1188 = vmatpush1.msra.mxu0 0.0
    %1189 = vmatprep.subr.mxu0 0.0
    %1190 = vmatpush1.msra.mxu0 0.0
    %1191 = vmatprep.subr.mxu0 0.0
    %1192 = vmatpush1.msra.mxu0 0.0
    %1193 = vmatprep.subr.mxu0 0.0
    %1194 = vmatpush1.msra.mxu0 0.0
    %1195 = vmatprep.subr.mxu0 0.0
    %1196 = vmatpush1.msra.mxu0 0.0
    %1197 = vmatprep.subr.mxu0 0.0
    %1198 = vmatpush1.msra.mxu0 0.0
    %1199 = vmatprep.subr.mxu0 0.0
    %1200 = vmatpush1.msra.mxu0 0.0
    %1201 = vmatprep.subr.mxu0 0.0
    %1202 = vmatpush1.msra.mxu0 0.0
    %1203 = vmatprep.subr.mxu0 0.0
    %1204 = vmatpush1.msra.mxu0 0.0
    %1205 = vmatprep.subr.mxu0 0.0
    %1206 = vmatpush1.msra.mxu0 0.0
    %1207 = vmatprep.subr.mxu0 0.0
    %1208 = vmatpush1.msra.mxu0 0.0
    %1209 = vmatprep.subr.mxu0 0.0
    %1210 = vmatpush1.msra.mxu0 0.0
    %1211 = vmatprep.subr.mxu0 0.0
    %1212 = vmatpush1.msra.mxu0 0.0
    %1213 = vmatprep.subr.mxu0 0.0
    %1214 = vmatpush1.msra.mxu0 0.0
    %1215 = vmatprep.subr.mxu0 0.0
    %1216 = vmatpush1.msra.mxu0 0.0
    %1217 = vmatprep.subr.mxu0 0.0
    %1218 = vmatpush1.msra.mxu0 0.0
    %1219 = vmatprep.subr.mxu0 0.0
    %1220 = vmatpush1.msra.mxu0 0.0
    %1221 = vmatprep.subr.mxu0 0.0
    %1222 = vmatpush1.msra.mxu0 0.0
    %1223 = vmatprep.subr.mxu0 0.0
    %1224 = vmatpush1.msra.mxu0 0.0
    %1225 = vmatprep.subr.mxu0 0.0
    %1226 = vmatpush1.msra.mxu0 0.0
    %1227 = vmatprep.subr.mxu0 0.0
    %1228 = vmatpush1.msra.mxu0 0.0
    %1229 = vmatprep.mubr.f32.mxu0 0.0
    %1230 = vmatmul.mubr.f32.gmra.mrb[0].mxu0 %v1163
    %v1231 = vpop.f32.mrb[0].mxu0
    %v1232 = vadd.f32 0.0, %v1231
    %v1233 = vpop.f32.mrb[0].mxu0
    %1234 = vdwg.mxu0
    %1236 = vrot.lane.b32.xlu0 %v1232, 48
    %v1237 = vpop.permute.xlu0 %1236
    %vm1239 = vcmask 523648
    %1240 = vst.msk [vmem:[#allocation2] sm:$0xff] %vm1239, %v1237
    %v1241 = vlaneseq
    %v1242 = vshrl.u32 %v1241, 7
    %v1243 = vsub.s32 1, %v1242
    %v1244 = vrot.slane %v546, %v1243
    %vm1245 = vcmp.eq.s32.totalorder %v1244, 1
    %vm1246 = vmand %vm225, %vm1245
    %v1247 = vsel %vm1246, 0.0, -1e+09
    %1249 = vrot.lane.b32.xlu0 %v544, 64
    %v1250 = vpop.permute.xlu0 %1249
    %v1252 = vsel %vm557, %v439, 0
    %v1254 = vsel %vm557, %v1250, 0
    %1256 = vmatprep.subr.mxu0 0.0
    %1257 = vmatpush1.xpose.msra.mxu0 %v1254
    %1258 = vmatprep.subr.mxu0 0.0
    %1259 = vmatpush1.xpose.msra.mxu0 0.0
    %1260 = vmatprep.subr.mxu0 0.0
    %1261 = vmatpush1.xpose.msra.mxu0 0.0
    %1262 = vmatprep.subr.mxu0 0.0
    %1263 = vmatpush1.xpose.msra.mxu0 0.0
    %1264 = vmatprep.subr.mxu0 0.0
    %1265 = vmatpush1.xpose.msra.mxu0 0.0
    %1266 = vmatprep.subr.mxu0 0.0
    %1267 = vmatpush1.xpose.msra.mxu0 0.0
    %1268 = vmatprep.subr.mxu0 0.0
    %1269 = vmatpush1.xpose.msra.mxu0 0.0
    %1270 = vmatprep.subr.mxu0 0.0
    %1271 = vmatpush1.xpose.msra.mxu0 0.0
    %1272 = vmatprep.subr.mxu0 0.0
    %1273 = vmatpush1.xpose.msra.mxu0 0.0
    %1274 = vmatprep.subr.mxu0 0.0
    %1275 = vmatpush1.xpose.msra.mxu0 0.0
    %1276 = vmatprep.subr.mxu0 0.0
    %1277 = vmatpush1.xpose.msra.mxu0 0.0
    %1278 = vmatprep.subr.mxu0 0.0
    %1279 = vmatpush1.xpose.msra.mxu0 0.0
    %1280 = vmatprep.subr.mxu0 0.0
    %1281 = vmatpush1.xpose.msra.mxu0 0.0
    %1282 = vmatprep.subr.mxu0 0.0
    %1283 = vmatpush1.xpose.msra.mxu0 0.0
    %1284 = vmatprep.subr.mxu0 0.0
    %1285 = vmatpush1.xpose.msra.mxu0 0.0
    %1286 = vmatprep.subr.mxu0 0.0
    %1287 = vmatpush1.xpose.msra.mxu0 0.0
    %1288 = vmatprep.subr.mxu0 0.0
    %1289 = vmatpush1.xpose.msra.mxu0 0.0
    %1290 = vmatprep.subr.mxu0 0.0
    %1291 = vmatpush1.xpose.msra.mxu0 0.0
    %1292 = vmatprep.subr.mxu0 0.0
    %1293 = vmatpush1.xpose.msra.mxu0 0.0
    %1294 = vmatprep.subr.mxu0 0.0
    %1295 = vmatpush1.xpose.msra.mxu0 0.0
    %1296 = vmatprep.subr.mxu0 0.0
    %1297 = vmatpush1.xpose.msra.mxu0 0.0
    %1298 = vmatprep.subr.mxu0 0.0
    %1299 = vmatpush1.xpose.msra.mxu0 0.0
    %1300 = vmatprep.subr.mxu0 0.0
    %1301 = vmatpush1.xpose.msra.mxu0 0.0
    %1302 = vmatprep.subr.mxu0 0.0
    %1303 = vmatpush1.xpose.msra.mxu0 0.0
    %1304 = vmatprep.subr.mxu0 0.0
    %1305 = vmatpush1.xpose.msra.mxu0 0.0
    %1306 = vmatprep.subr.mxu0 0.0
    %1307 = vmatpush1.xpose.msra.mxu0 0.0
    %1308 = vmatprep.subr.mxu0 0.0
    %1309 = vmatpush1.xpose.msra.mxu0 0.0
    %1310 = vmatprep.subr.mxu0 0.0
    %1311 = vmatpush1.xpose.msra.mxu0 0.0
    %1312 = vmatprep.subr.mxu0 0.0
    %1313 = vmatpush1.xpose.msra.mxu0 0.0
    %1314 = vmatprep.subr.mxu0 0.0
    %1315 = vmatpush1.xpose.msra.mxu0 0.0
    %1316 = vmatprep.subr.mxu0 0.0
    %1317 = vmatpush1.xpose.msra.mxu0 0.0
    %1318 = vmatprep.subr.mxu0 0.0
    %1319 = vmatpush1.xpose.msra.mxu0 0.0
    %1320 = vmatprep.mubr.f32.mxu0 0.0
    %1321 = vmatmul.mubr.f32.gmra.mrb[0].mxu0 %v1252
    %v1322 = vpop.f32.mrb[0].mxu0
    %v1323 = vadd.f32 0.0, %v1322
    %v1324 = vpop.f32.mrb[0].mxu0
    %1325 = vdwg.mxu0
    %v1326 = vmul.f32 %v1323, 0.25
    %v1327 = vadd.f32 %v1326, %v1247
    %v1328 = vsel %vm635, %v1327, -inf
    %1329 = vmax.xlane.f32.xlu0 %v1328
    %v1330 = vpop.xlane.xlu0 %1329
    %v1331 = vsub.f32 %v1327, %v1330
    %v1332 = vmul.f32 %v1331, 1.442695
    %v1333 = vpow.pop %v1332
    %v1334 = vsel %vm635, %v1333, 0.0
    %1335 = vadd.xlane.f32.xlu0 %v1334
    %v1336 = vpop.xlane.xlu0 %1335
    %v1337 = vrcp.pop %v1336
    %v1338 = vmul.f32 %v1333, %v1337
    %v1340 = vsel %vm635, %v1338, 0
    %1342 = vmatprep.subr.mxu0 0.0
    %1343 = vmatpush1.msra.mxu0 %v351
    %1344 = vmatprep.subr.mxu0 0.0
    %1345 = vmatpush1.msra.mxu0 0.0
    %1346 = vmatprep.subr.mxu0 0.0
    %1347 = vmatpush1.msra.mxu0 0.0
    %1348 = vmatprep.subr.mxu0 0.0
    %1349 = vmatpush1.msra.mxu0 0.0
    %1350 = vmatprep.subr.mxu0 0.0
    %1351 = vmatpush1.msra.mxu0 0.0
    %1352 = vmatprep.subr.mxu0 0.0
    %1353 = vmatpush1.msra.mxu0 0.0
    %1354 = vmatprep.subr.mxu0 0.0
    %1355 = vmatpush1.msra.mxu0 0.0
    %1356 = vmatprep.subr.mxu0 0.0
    %1357 = vmatpush1.msra.mxu0 0.0
    %1358 = vmatprep.subr.mxu0 0.0
    %1359 = vmatpush1.msra.mxu0 0.0
    %1360 = vmatprep.subr.mxu0 0.0
    %1361 = vmatpush1.msra.mxu0 0.0
    %1362 = vmatprep.subr.mxu0 0.0
    %1363 = vmatpush1.msra.mxu0 0.0
    %1364 = vmatprep.subr.mxu0 0.0
    %1365 = vmatpush1.msra.mxu0 0.0
    %1366 = vmatprep.subr.mxu0 0.0
    %1367 = vmatpush1.msra.mxu0 0.0
    %1368 = vmatprep.subr.mxu0 0.0
    %1369 = vmatpush1.msra.mxu0 0.0
    %1370 = vmatprep.subr.mxu0 0.0
    %1371 = vmatpush1.msra.mxu0 0.0
    %1372 = vmatprep.subr.mxu0 0.0
    %1373 = vmatpush1.msra.mxu0 0.0
    %1374 = vmatprep.subr.mxu0 0.0
    %1375 = vmatpush1.msra.mxu0 0.0
    %1376 = vmatprep.subr.mxu0 0.0
    %1377 = vmatpush1.msra.mxu0 0.0
    %1378 = vmatprep.subr.mxu0 0.0
    %1379 = vmatpush1.msra.mxu0 0.0
    %1380 = vmatprep.subr.mxu0 0.0
    %1381 = vmatpush1.msra.mxu0 0.0
    %1382 = vmatprep.subr.mxu0 0.0
    %1383 = vmatpush1.msra.mxu0 0.0
    %1384 = vmatprep.subr.mxu0 0.0
    %1385 = vmatpush1.msra.mxu0 0.0
    %1386 = vmatprep.subr.mxu0 0.0
    %1387 = vmatpush1.msra.mxu0 0.0
    %1388 = vmatprep.subr.mxu0 0.0
    %1389 = vmatpush1.msra.mxu0 0.0
    %1390 = vmatprep.subr.mxu0 0.0
    %1391 = vmatpush1.msra.mxu0 0.0
    %1392 = vmatprep.subr.mxu0 0.0
    %1393 = vmatpush1.msra.mxu0 0.0
    %1394 = vmatprep.subr.mxu0 0.0
    %1395 = vmatpush1.msra.mxu0 0.0
    %1396 = vmatprep.subr.mxu0 0.0
    %1397 = vmatpush1.msra.mxu0 0.0
    %1398 = vmatprep.subr.mxu0 0.0
    %1399 = vmatpush1.msra.mxu0 0.0
    %1400 = vmatprep.subr.mxu0 0.0
    %1401 = vmatpush1.msra.mxu0 0.0
    %1402 = vmatprep.subr.mxu0 0.0
    %1403 = vmatpush1.msra.mxu0 0.0
    %1404 = vmatprep.subr.mxu0 0.0
    %1405 = vmatpush1.msra.mxu0 0.0
    %1406 = vmatprep.mubr.f32.mxu0 0.0
    %1407 = vmatmul.mubr.f32.gmra.mrb[0].mxu0 %v1340
    %v1408 = vpop.f32.mrb[0].mxu0
    %v1409 = vadd.f32 0.0, %v1408
    %v1410 = vpop.f32.mrb[0].mxu0
    %1411 = vdwg.mxu0
    %1412 = vst.msk [vmem:[#allocation2 + $0x8] sm:$0xff] %vm557, %v1409
    %1413 = vrot.lane.b32.xlu0 %v439, 112
    %v1414 = vpop.permute.xlu0 %1413
    %1415 = vrot.lane.b32.xlu0 %v544, 48
    %v1416 = vpop.permute.xlu0 %1415
    %v1417 = vsel %vm557, %v1414, 0
    %v1419 = vsel %vm557, %v1416, 0
    %1421 = vmatprep.subr.mxu0 0.0
    %1422 = vmatpush1.xpose.msra.mxu0 %v1419
    %1423 = vmatprep.subr.mxu0 0.0
    %1424 = vmatpush1.xpose.msra.mxu0 0.0
    %1425 = vmatprep.subr.mxu0 0.0
    %1426 = vmatpush1.xpose.msra.mxu0 0.0
    %1427 = vmatprep.subr.mxu0 0.0
    %1428 = vmatpush1.xpose.msra.mxu0 0.0
    %1429 = vmatprep.subr.mxu0 0.0
    %1430 = vmatpush1.xpose.msra.mxu0 0.0
    %1431 = vmatprep.subr.mxu0 0.0
    %1432 = vmatpush1.xpose.msra.mxu0 0.0
    %1433 = vmatprep.subr.mxu0 0.0
    %1434 = vmatpush1.xpose.msra.mxu0 0.0
    %1435 = vmatprep.subr.mxu0 0.0
    %1436 = vmatpush1.xpose.msra.mxu0 0.0
    %1437 = vmatprep.subr.mxu0 0.0
    %1438 = vmatpush1.xpose.msra.mxu0 0.0
    %1439 = vmatprep.subr.mxu0 0.0
    %1440 = vmatpush1.xpose.msra.mxu0 0.0
    %1441 = vmatprep.subr.mxu0 0.0
    %1442 = vmatpush1.xpose.msra.mxu0 0.0
    %1443 = vmatprep.subr.mxu0 0.0
    %1444 = vmatpush1.xpose.msra.mxu0 0.0
    %1445 = vmatprep.subr.mxu0 0.0
    %1446 = vmatpush1.xpose.msra.mxu0 0.0
    %1447 = vmatprep.subr.mxu0 0.0
    %1448 = vmatpush1.xpose.msra.mxu0 0.0
    %1449 = vmatprep.subr.mxu0 0.0
    %1450 = vmatpush1.xpose.msra.mxu0 0.0
    %1451 = vmatprep.subr.mxu0 0.0
    %1452 = vmatpush1.xpose.msra.mxu0 0.0
    %1453 = vmatprep.subr.mxu0 0.0
    %1454 = vmatpush1.xpose.msra.mxu0 0.0
    %1455 = vmatprep.subr.mxu0 0.0
    %1456 = vmatpush1.xpose.msra.mxu0 0.0
    %1457 = vmatprep.subr.mxu0 0.0
    %1458 = vmatpush1.xpose.msra.mxu0 0.0
    %1459 = vmatprep.subr.mxu0 0.0
    %1460 = vmatpush1.xpose.msra.mxu0 0.0
    %1461 = vmatprep.subr.mxu0 0.0
    %1462 = vmatpush1.xpose.msra.mxu0 0.0
    %1463 = vmatprep.subr.mxu0 0.0
    %1464 = vmatpush1.xpose.msra.mxu0 0.0
    %1465 = vmatprep.subr.mxu0 0.0
    %1466 = vmatpush1.xpose.msra.mxu0 0.0
    %1467 = vmatprep.subr.mxu0 0.0
    %1468 = vmatpush1.xpose.msra.mxu0 0.0
    %1469 = vmatprep.subr.mxu0 0.0
    %1470 = vmatpush1.xpose.msra.mxu0 0.0
    %1471 = vmatprep.subr.mxu0 0.0
    %1472 = vmatpush1.xpose.msra.mxu0 0.0
    %1473 = vmatprep.subr.mxu0 0.0
    %1474 = vmatpush1.xpose.msra.mxu0 0.0
    %1475 = vmatprep.subr.mxu0 0.0
    %1476 = vmatpush1.xpose.msra.mxu0 0.0
    %1477 = vmatprep.subr.mxu0 0.0
    %1478 = vmatpush1.xpose.msra.mxu0 0.0
    %1479 = vmatprep.subr.mxu0 0.0
    %1480 = vmatpush1.xpose.msra.mxu0 0.0
    %1481 = vmatprep.subr.mxu0 0.0
    %1482 = vmatpush1.xpose.msra.mxu0 0.0
    %1483 = vmatprep.subr.mxu0 0.0
    %1484 = vmatpush1.xpose.msra.mxu0 0.0
    %1485 = vmatprep.mubr.f32.mxu0 0.0
    %1486 = vmatmul.mubr.f32.gmra.mrb[0].mxu0 %v1417
    %v1487 = vpop.f32.mrb[0].mxu0
    %v1488 = vadd.f32 0.0, %v1487
    %v1489 = vpop.f32.mrb[0].mxu0
    %1490 = vdwg.mxu0
    %v1491 = vmul.f32 %v1488, 0.25
    %v1492 = vadd.f32 %v1491, %v1247
    %v1493 = vsel %vm635, %v1492, -inf
    %1494 = vmax.xlane.f32.xlu0 %v1493
    %v1495 = vpop.xlane.xlu0 %1494
    %v1496 = vsub.f32 %v1492, %v1495
    %v1497 = vmul.f32 %v1496, 1.442695
    %v1498 = vpow.pop %v1497
    %v1499 = vsel %vm635, %v1498, 0.0
    %1500 = vadd.xlane.f32.xlu0 %v1499
    %v1501 = vpop.xlane.xlu0 %1500
    %v1502 = vrcp.pop %v1501
    %v1503 = vmul.f32 %v1498, %v1502
    %1505 = vrot.lane.b32.xlu0 %v351, 112
    %v1506 = vpop.permute.xlu0 %1505
    %v1509 = vsel %vm635, %v1503, 0
    %1511 = vmatprep.subr.mxu0 0.0
    %1512 = vmatpush1.msra.mxu0 %v1506
    %1513 = vmatprep.subr.mxu0 0.0
    %1514 = vmatpush1.msra.mxu0 0.0
    %1515 = vmatprep.subr.mxu0 0.0
    %1516 = vmatpush1.msra.mxu0 0.0
    %1517 = vmatprep.subr.mxu0 0.0
    %1518 = vmatpush1.msra.mxu0 0.0
    %1519 = vmatprep.subr.mxu0 0.0
    %1520 = vmatpush1.msra.mxu0 0.0
    %1521 = vmatprep.subr.mxu0 0.0
    %1522 = vmatpush1.msra.mxu0 0.0
    %1523 = vmatprep.subr.mxu0 0.0
    %1524 = vmatpush1.msra.mxu0 0.0
    %1525 = vmatprep.subr.mxu0 0.0
    %1526 = vmatpush1.msra.mxu0 0.0
    %1527 = vmatprep.subr.mxu0 0.0
    %1528 = vmatpush1.msra.mxu0 0.0
    %1529 = vmatprep.subr.mxu0 0.0
    %1530 = vmatpush1.msra.mxu0 0.0
    %1531 = vmatprep.subr.mxu0 0.0
    %1532 = vmatpush1.msra.mxu0 0.0
    %1533 = vmatprep.subr.mxu0 0.0
    %1534 = vmatpush1.msra.mxu0 0.0
    %1535 = vmatprep.subr.mxu0 0.0
    %1536 = vmatpush1.msra.mxu0 0.0
    %1537 = vmatprep.subr.mxu0 0.0
    %1538 = vmatpush1.msra.mxu0 0.0
    %1539 = vmatprep.subr.mxu0 0.0
    %1540 = vmatpush1.msra.mxu0 0.0
    %1541 = vmatprep.subr.mxu0 0.0
    %1542 = vmatpush1.msra.mxu0 0.0
    %1543 = vmatprep.subr.mxu0 0.0
    %1544 = vmatpush1.msra.mxu0 0.0
    %1545 = vmatprep.subr.mxu0 0.0
    %1546 = vmatpush1.msra.mxu0 0.0
    %1547 = vmatprep.subr.mxu0 0.0
    %1548 = vmatpush1.msra.mxu0 0.0
    %1549 = vmatprep.subr.mxu0 0.0
    %1550 = vmatpush1.msra.mxu0 0.0
    %1551 = vmatprep.subr.mxu0 0.0
    %1552 = vmatpush1.msra.mxu0 0.0
    %1553 = vmatprep.subr.mxu0 0.0
    %1554 = vmatpush1.msra.mxu0 0.0
    %1555 = vmatprep.subr.mxu0 0.0
    %1556 = vmatpush1.msra.mxu0 0.0
    %1557 = vmatprep.subr.mxu0 0.0
    %1558 = vmatpush1.msra.mxu0 0.0
    %1559 = vmatprep.subr.mxu0 0.0
    %1560 = vmatpush1.msra.mxu0 0.0
    %1561 = vmatprep.subr.mxu0 0.0
    %1562 = vmatpush1.msra.mxu0 0.0
    %1563 = vmatprep.subr.mxu0 0.0
    %1564 = vmatpush1.msra.mxu0 0.0
    %1565 = vmatprep.subr.mxu0 0.0
    %1566 = vmatpush1.msra.mxu0 0.0
    %1567 = vmatprep.subr.mxu0 0.0
    %1568 = vmatpush1.msra.mxu0 0.0
    %1569 = vmatprep.subr.mxu0 0.0
    %1570 = vmatpush1.msra.mxu0 0.0
    %1571 = vmatprep.subr.mxu0 0.0
    %1572 = vmatpush1.msra.mxu0 0.0
    %1573 = vmatprep.subr.mxu0 0.0
    %1574 = vmatpush1.msra.mxu0 0.0
    %1575 = vmatprep.mubr.f32.mxu0 0.0
    %1576 = vmatmul.mubr.f32.gmra.mrb[0].mxu0 %v1509
    %v1577 = vpop.f32.mrb[0].mxu0
    %v1578 = vadd.f32 0.0, %v1577
    %v1579 = vpop.f32.mrb[0].mxu0
    %1580 = vdwg.mxu0
    %1582 = vrot.lane.b32.xlu0 %v1578, 16
    %v1583 = vpop.permute.xlu0 %1582
    %1585 = vst.msk [vmem:[#allocation2 + $0x8] sm:$0xff] %vm893, %v1583
    %1586 = vrot.lane.b32.xlu0 %v439, 96
    %v1587 = vpop.permute.xlu0 %1586
    %1588 = vrot.lane.b32.xlu0 %v544, 32
    %v1589 = vpop.permute.xlu0 %1588
    %v1590 = vsel %vm557, %v1587, 0
    %v1592 = vsel %vm557, %v1589, 0
    %1594 = vmatprep.subr.mxu0 0.0
    %1595 = vmatpush1.xpose.msra.mxu0 %v1592
    %1596 = vmatprep.subr.mxu0 0.0
    %1597 = vmatpush1.xpose.msra.mxu0 0.0
    %1598 = vmatprep.subr.mxu0 0.0
    %1599 = vmatpush1.xpose.msra.mxu0 0.0
    %1600 = vmatprep.subr.mxu0 0.0
    %1601 = vmatpush1.xpose.msra.mxu0 0.0
    %1602 = vmatprep.subr.mxu0 0.0
    %1603 = vmatpush1.xpose.msra.mxu0 0.0
    %1604 = vmatprep.subr.mxu0 0.0
    %1605 = vmatpush1.xpose.msra.mxu0 0.0
    %1606 = vmatprep.subr.mxu0 0.0
    %1607 = vmatpush1.xpose.msra.mxu0 0.0
    %1608 = vmatprep.subr.mxu0 0.0
    %1609 = vmatpush1.xpose.msra.mxu0 0.0
    %1610 = vmatprep.subr.mxu0 0.0
    %1611 = vmatpush1.xpose.msra.mxu0 0.0
    %1612 = vmatprep.subr.mxu0 0.0
    %1613 = vmatpush1.xpose.msra.mxu0 0.0
    %1614 = vmatprep.subr.mxu0 0.0
    %1615 = vmatpush1.xpose.msra.mxu0 0.0
    %1616 = vmatprep.subr.mxu0 0.0
    %1617 = vmatpush1.xpose.msra.mxu0 0.0
    %1618 = vmatprep.subr.mxu0 0.0
    %1619 = vmatpush1.xpose.msra.mxu0 0.0
    %1620 = vmatprep.subr.mxu0 0.0
    %1621 = vmatpush1.xpose.msra.mxu0 0.0
    %1622 = vmatprep.subr.mxu0 0.0
    %1623 = vmatpush1.xpose.msra.mxu0 0.0
    %1624 = vmatprep.subr.mxu0 0.0
    %1625 = vmatpush1.xpose.msra.mxu0 0.0
    %1626 = vmatprep.subr.mxu0 0.0
    %1627 = vmatpush1.xpose.msra.mxu0 0.0
    %1628 = vmatprep.subr.mxu0 0.0
    %1629 = vmatpush1.xpose.msra.mxu0 0.0
    %1630 = vmatprep.subr.mxu0 0.0
    %1631 = vmatpush1.xpose.msra.mxu0 0.0
    %1632 = vmatprep.subr.mxu0 0.0
    %1633 = vmatpush1.xpose.msra.mxu0 0.0
    %1634 = vmatprep.subr.mxu0 0.0
    %1635 = vmatpush1.xpose.msra.mxu0 0.0
    %1636 = vmatprep.subr.mxu0 0.0
    %1637 = vmatpush1.xpose.msra.mxu0 0.0
    %1638 = vmatprep.subr.mxu0 0.0
    %1639 = vmatpush1.xpose.msra.mxu0 0.0
    %1640 = vmatprep.subr.mxu0 0.0
    %1641 = vmatpush1.xpose.msra.mxu0 0.0
    %1642 = vmatprep.subr.mxu0 0.0
    %1643 = vmatpush1.xpose.msra.mxu0 0.0
    %1644 = vmatprep.subr.mxu0 0.0
    %1645 = vmatpush1.xpose.msra.mxu0 0.0
    %1646 = vmatprep.subr.mxu0 0.0
    %1647 = vmatpush1.xpose.msra.mxu0 0.0
    %1648 = vmatprep.subr.mxu0 0.0
    %1649 = vmatpush1.xpose.msra.mxu0 0.0
    %1650 = vmatprep.subr.mxu0 0.0
    %1651 = vmatpush1.xpose.msra.mxu0 0.0
    %1652 = vmatprep.subr.mxu0 0.0
    %1653 = vmatpush1.xpose.msra.mxu0 0.0
    %1654 = vmatprep.subr.mxu0 0.0
    %1655 = vmatpush1.xpose.msra.mxu0 0.0
    %1656 = vmatprep.subr.mxu0 0.0
    %1657 = vmatpush1.xpose.msra.mxu0 0.0
    %1658 = vmatprep.mubr.f32.mxu0 0.0
    %1659 = vmatmul.mubr.f32.gmra.mrb[0].mxu0 %v1590
    %v1660 = vpop.f32.mrb[0].mxu0
    %v1661 = vadd.f32 0.0, %v1660
    %v1662 = vpop.f32.mrb[0].mxu0
    %1663 = vdwg.mxu0
    %v1664 = vmul.f32 %v1661, 0.25
    %v1665 = vadd.f32 %v1664, %v1247
    %v1666 = vsel %vm635, %v1665, -inf
    %1667 = vmax.xlane.f32.xlu0 %v1666
    %v1668 = vpop.xlane.xlu0 %1667
    %v1669 = vsub.f32 %v1665, %v1668
    %v1670 = vmul.f32 %v1669, 1.442695
    %v1671 = vpow.pop %v1670
    %v1672 = vsel %vm635, %v1671, 0.0
    %1673 = vadd.xlane.f32.xlu0 %v1672
    %v1674 = vpop.xlane.xlu0 %1673
    %v1675 = vrcp.pop %v1674
    %v1676 = vmul.f32 %v1671, %v1675
    %1677 = vrot.lane.b32.xlu0 %v351, 96
    %v1678 = vpop.permute.xlu0 %1677
    %v1681 = vsel %vm635, %v1676, 0
    %1683 = vmatprep.subr.mxu0 0.0
    %1684 = vmatpush1.msra.mxu0 %v1678
    %1685 = vmatprep.subr.mxu0 0.0
    %1686 = vmatpush1.msra.mxu0 0.0
    %1687 = vmatprep.subr.mxu0 0.0
    %1688 = vmatpush1.msra.mxu0 0.0
    %1689 = vmatprep.subr.mxu0 0.0
    %1690 = vmatpush1.msra.mxu0 0.0
    %1691 = vmatprep.subr.mxu0 0.0
    %1692 = vmatpush1.msra.mxu0 0.0
    %1693 = vmatprep.subr.mxu0 0.0
    %1694 = vmatpush1.msra.mxu0 0.0
    %1695 = vmatprep.subr.mxu0 0.0
    %1696 = vmatpush1.msra.mxu0 0.0
    %1697 = vmatprep.subr.mxu0 0.0
    %1698 = vmatpush1.msra.mxu0 0.0
    %1699 = vmatprep.subr.mxu0 0.0
    %1700 = vmatpush1.msra.mxu0 0.0
    %1701 = vmatprep.subr.mxu0 0.0
    %1702 = vmatpush1.msra.mxu0 0.0
    %1703 = vmatprep.subr.mxu0 0.0
    %1704 = vmatpush1.msra.mxu0 0.0
    %1705 = vmatprep.subr.mxu0 0.0
    %1706 = vmatpush1.msra.mxu0 0.0
    %1707 = vmatprep.subr.mxu0 0.0
    %1708 = vmatpush1.msra.mxu0 0.0
    %1709 = vmatprep.subr.mxu0 0.0
    %1710 = vmatpush1.msra.mxu0 0.0
    %1711 = vmatprep.subr.mxu0 0.0
    %1712 = vmatpush1.msra.mxu0 0.0
    %1713 = vmatprep.subr.mxu0 0.0
    %1714 = vmatpush1.msra.mxu0 0.0
    %1715 = vmatprep.subr.mxu0 0.0
    %1716 = vmatpush1.msra.mxu0 0.0
    %1717 = vmatprep.subr.mxu0 0.0
    %1718 = vmatpush1.msra.mxu0 0.0
    %1719 = vmatprep.subr.mxu0 0.0
    %1720 = vmatpush1.msra.mxu0 0.0
    %1721 = vmatprep.subr.mxu0 0.0
    %1722 = vmatpush1.msra.mxu0 0.0
    %1723 = vmatprep.subr.mxu0 0.0
    %1724 = vmatpush1.msra.mxu0 0.0
    %1725 = vmatprep.subr.mxu0 0.0
    %1726 = vmatpush1.msra.mxu0 0.0
    %1727 = vmatprep.subr.mxu0 0.0
    %1728 = vmatpush1.msra.mxu0 0.0
    %1729 = vmatprep.subr.mxu0 0.0
    %1730 = vmatpush1.msra.mxu0 0.0
    %1731 = vmatprep.subr.mxu0 0.0
    %1732 = vmatpush1.msra.mxu0 0.0
    %1733 = vmatprep.subr.mxu0 0.0
    %1734 = vmatpush1.msra.mxu0 0.0
    %1735 = vmatprep.subr.mxu0 0.0
    %1736 = vmatpush1.msra.mxu0 0.0
    %1737 = vmatprep.subr.mxu0 0.0
    %1738 = vmatpush1.msra.mxu0 0.0
    %1739 = vmatprep.subr.mxu0 0.0
    %1740 = vmatpush1.msra.mxu0 0.0
    %1741 = vmatprep.subr.mxu0 0.0
    %1742 = vmatpush1.msra.mxu0 0.0
    %1743 = vmatprep.subr.mxu0 0.0
    %1744 = vmatpush1.msra.mxu0 0.0
    %1745 = vmatprep.subr.mxu0 0.0
    %1746 = vmatpush1.msra.mxu0 0.0
    %1747 = vmatprep.mubr.f32.mxu0 0.0
    %1748 = vmatmul.mubr.f32.gmra.mrb[0].mxu0 %v1681
    %v1749 = vpop.f32.mrb[0].mxu0
    %v1750 = vadd.f32 0.0, %v1749
    %v1751 = vpop.f32.mrb[0].mxu0
    %1752 = vdwg.mxu0
    %1754 = vrot.lane.b32.xlu0 %v1750, 32
    %v1755 = vpop.permute.xlu0 %1754
    %1757 = vst.msk [vmem:[#allocation2 + $0x8] sm:$0xff] %vm1066, %v1755
    %1758 = vrot.lane.b32.xlu0 %v439, 80
    %v1759 = vpop.permute.xlu0 %1758
    %1760 = vrot.lane.b32.xlu0 %v544, 16
    %v1761 = vpop.permute.xlu0 %1760
    %v1762 = vsel %vm557, %v1759, 0
    %v1764 = vsel %vm557, %v1761, 0
    %1766 = vmatprep.subr.mxu0 0.0
    %1767 = vmatpush1.xpose.msra.mxu0 %v1764
    %1768 = vmatprep.subr.mxu0 0.0
    %1769 = vmatpush1.xpose.msra.mxu0 0.0
    %1770 = vmatprep.subr.mxu0 0.0
    %1771 = vmatpush1.xpose.msra.mxu0 0.0
    %1772 = vmatprep.subr.mxu0 0.0
    %1773 = vmatpush1.xpose.msra.mxu0 0.0
    %1774 = vmatprep.subr.mxu0 0.0
    %1775 = vmatpush1.xpose.msra.mxu0 0.0
    %1776 = vmatprep.subr.mxu0 0.0
    %1777 = vmatpush1.xpose.msra.mxu0 0.0
    %1778 = vmatprep.subr.mxu0 0.0
    %1779 = vmatpush1.xpose.msra.mxu0 0.0
    %1780 = vmatprep.subr.mxu0 0.0
    %1781 = vmatpush1.xpose.msra.mxu0 0.0
    %1782 = vmatprep.subr.mxu0 0.0
    %1783 = vmatpush1.xpose.msra.mxu0 0.0
    %1784 = vmatprep.subr.mxu0 0.0
    %1785 = vmatpush1.xpose.msra.mxu0 0.0
    %1786 = vmatprep.subr.mxu0 0.0
    %1787 = vmatpush1.xpose.msra.mxu0 0.0
    %1788 = vmatprep.subr.mxu0 0.0
    %1789 = vmatpush1.xpose.msra.mxu0 0.0
    %1790 = vmatprep.subr.mxu0 0.0
    %1791 = vmatpush1.xpose.msra.mxu0 0.0
    %1792 = vmatprep.subr.mxu0 0.0
    %1793 = vmatpush1.xpose.msra.mxu0 0.0
    %1794 = vmatprep.subr.mxu0 0.0
    %1795 = vmatpush1.xpose.msra.mxu0 0.0
    %1796 = vmatprep.subr.mxu0 0.0
    %1797 = vmatpush1.xpose.msra.mxu0 0.0
    %1798 = vmatprep.subr.mxu0 0.0
    %1799 = vmatpush1.xpose.msra.mxu0 0.0
    %1800 = vmatprep.subr.mxu0 0.0
    %1801 = vmatpush1.xpose.msra.mxu0 0.0
    %1802 = vmatprep.subr.mxu0 0.0
    %1803 = vmatpush1.xpose.msra.mxu0 0.0
    %1804 = vmatprep.subr.mxu0 0.0
    %1805 = vmatpush1.xpose.msra.mxu0 0.0
    %1806 = vmatprep.subr.mxu0 0.0
    %1807 = vmatpush1.xpose.msra.mxu0 0.0
    %1808 = vmatprep.subr.mxu0 0.0
    %1809 = vmatpush1.xpose.msra.mxu0 0.0
    %1810 = vmatprep.subr.mxu0 0.0
    %1811 = vmatpush1.xpose.msra.mxu0 0.0
    %1812 = vmatprep.subr.mxu0 0.0
    %1813 = vmatpush1.xpose.msra.mxu0 0.0
    %1814 = vmatprep.subr.mxu0 0.0
    %1815 = vmatpush1.xpose.msra.mxu0 0.0
    %1816 = vmatprep.subr.mxu0 0.0
    %1817 = vmatpush1.xpose.msra.mxu0 0.0
    %1818 = vmatprep.subr.mxu0 0.0
    %1819 = vmatpush1.xpose.msra.mxu0 0.0
    %1820 = vmatprep.subr.mxu0 0.0
    %1821 = vmatpush1.xpose.msra.mxu0 0.0
    %1822 = vmatprep.subr.mxu0 0.0
    %1823 = vmatpush1.xpose.msra.mxu0 0.0
    %1824 = vmatprep.subr.mxu0 0.0
    %1825 = vmatpush1.xpose.msra.mxu0 0.0
    %1826 = vmatprep.subr.mxu0 0.0
    %1827 = vmatpush1.xpose.msra.mxu0 0.0
    %1828 = vmatprep.subr.mxu0 0.0
    %1829 = vmatpush1.xpose.msra.mxu0 0.0
    %1830 = vmatprep.mubr.f32.mxu0 0.0
    %1831 = vmatmul.mubr.f32.gmra.mrb[0].mxu0 %v1762
    %v1832 = vpop.f32.mrb[0].mxu0
    %v1833 = vadd.f32 0.0, %v1832
    %v1834 = vpop.f32.mrb[0].mxu0
    %1835 = vdwg.mxu0
    %v1836 = vmul.f32 %v1833, 0.25
    %v1837 = vadd.f32 %v1836, %v1247
    %v1838 = vsel %vm635, %v1837, -inf
    %1839 = vmax.xlane.f32.xlu0 %v1838
    %v1840 = vpop.xlane.xlu0 %1839
    %v1841 = vsub.f32 %v1837, %v1840
    %v1842 = vmul.f32 %v1841, 1.442695
    %v1843 = vpow.pop %v1842
    %v1844 = vsel %vm635, %v1843, 0.0
    %1845 = vadd.xlane.f32.xlu0 %v1844
    %v1846 = vpop.xlane.xlu0 %1845
    %v1847 = vrcp.pop %v1846
    %v1848 = vmul.f32 %v1843, %v1847
    %1849 = vrot.lane.b32.xlu0 %v351, 80
    %v1850 = vpop.permute.xlu0 %1849
    %v1853 = vsel %vm635, %v1848, 0
    %1855 = vmatprep.subr.mxu0 0.0
    %1856 = vmatpush1.msra.mxu0 %v1850
    %1857 = vmatprep.subr.mxu0 0.0
    %1858 = vmatpush1.msra.mxu0 0.0
    %1859 = vmatprep.subr.mxu0 0.0
    %1860 = vmatpush1.msra.mxu0 0.0
    %1861 = vmatprep.subr.mxu0 0.0
    %1862 = vmatpush1.msra.mxu0 0.0
    %1863 = vmatprep.subr.mxu0 0.0
    %1864 = vmatpush1.msra.mxu0 0.0
    %1865 = vmatprep.subr.mxu0 0.0
    %1866 = vmatpush1.msra.mxu0 0.0
    %1867 = vmatprep.subr.mxu0 0.0
    %1868 = vmatpush1.msra.mxu0 0.0
    %1869 = vmatprep.subr.mxu0 0.0
    %1870 = vmatpush1.msra.mxu0 0.0
    %1871 = vmatprep.subr.mxu0 0.0
    %1872 = vmatpush1.msra.mxu0 0.0
    %1873 = vmatprep.subr.mxu0 0.0
    %1874 = vmatpush1.msra.mxu0 0.0
    %1875 = vmatprep.subr.mxu0 0.0
    %1876 = vmatpush1.msra.mxu0 0.0
    %1877 = vmatprep.subr.mxu0 0.0
    %1878 = vmatpush1.msra.mxu0 0.0
    %1879 = vmatprep.subr.mxu0 0.0
    %1880 = vmatpush1.msra.mxu0 0.0
    %1881 = vmatprep.subr.mxu0 0.0
    %1882 = vmatpush1.msra.mxu0 0.0
    %1883 = vmatprep.subr.mxu0 0.0
    %1884 = vmatpush1.msra.mxu0 0.0
    %1885 = vmatprep.subr.mxu0 0.0
    %1886 = vmatpush1.msra.mxu0 0.0
    %1887 = vmatprep.subr.mxu0 0.0
    %1888 = vmatpush1.msra.mxu0 0.0
    %1889 = vmatprep.subr.mxu0 0.0
    %1890 = vmatpush1.msra.mxu0 0.0
    %1891 = vmatprep.subr.mxu0 0.0
    %1892 = vmatpush1.msra.mxu0 0.0
    %1893 = vmatprep.subr.mxu0 0.0
    %1894 = vmatpush1.msra.mxu0 0.0
    %1895 = vmatprep.subr.mxu0 0.0
    %1896 = vmatpush1.msra.mxu0 0.0
    %1897 = vmatprep.subr.mxu0 0.0
    %1898 = vmatpush1.msra.mxu0 0.0
    %1899 = vmatprep.subr.mxu0 0.0
    %1900 = vmatpush1.msra.mxu0 0.0
    %1901 = vmatprep.subr.mxu0 0.0
    %1902 = vmatpush1.msra.mxu0 0.0
    %1903 = vmatprep.subr.mxu0 0.0
    %1904 = vmatpush1.msra.mxu0 0.0
    %1905 = vmatprep.subr.mxu0 0.0
    %1906 = vmatpush1.msra.mxu0 0.0
    %1907 = vmatprep.subr.mxu0 0.0
    %1908 = vmatpush1.msra.mxu0 0.0
    %1909 = vmatprep.subr.mxu0 0.0
    %1910 = vmatpush1.msra.mxu0 0.0
    %1911 = vmatprep.subr.mxu0 0.0
    %1912 = vmatpush1.msra.mxu0 0.0
    %1913 = vmatprep.subr.mxu0 0.0
    %1914 = vmatpush1.msra.mxu0 0.0
    %1915 = vmatprep.subr.mxu0 0.0
    %1916 = vmatpush1.msra.mxu0 0.0
    %1917 = vmatprep.subr.mxu0 0.0
    %1918 = vmatpush1.msra.mxu0 0.0
    %1919 = vmatprep.mubr.f32.mxu0 0.0
    %1920 = vmatmul.mubr.f32.gmra.mrb[0].mxu0 %v1853
    %v1921 = vpop.f32.mrb[0].mxu0
    %v1922 = vadd.f32 0.0, %v1921
    %v1923 = vpop.f32.mrb[0].mxu0
    %1924 = vdwg.mxu0
    %1926 = vrot.lane.b32.xlu0 %v1922, 48
    %v1927 = vpop.permute.xlu0 %1926
    %1929 = vst.msk [vmem:[#allocation2 + $0x8] sm:$0xff] %vm1239, %v1927
    %v1930 = vld [vmem:[#allocation2] sm:$0xff]
    %v1931 = vld [vmem:[#allocation2 + $0x8] sm:$0xff]
    %v1932 = vld [vmem:[#allocation3] sm:$0xff]
    %v1933 = vld [vmem:[#allocation3 + $0x8] sm:$0xff]
    %v1934 = vld [vmem:[#allocation3 + $0x10] sm:$0xff]
    %v1935 = vld [vmem:[#allocation3 + $0x18] sm:$0xff]
    %v1936 = vld [vmem:[#allocation3 + $0x20] sm:$0xff]
    %v1937 = vld [vmem:[#allocation3 + $0x28] sm:$0xff]
    %v1938 = vld [vmem:[#allocation3 + $0x30] sm:$0xff]
    %v1939 = vld [vmem:[#allocation3 + $0x38] sm:$0xff]
    %v1941 = vsel %vm226, %v1930, 0
    %v1944 = vsel %vm226, %v1931, 0
    %1946 = vmatprep.subr.mxu0 0.0
    %1947 = vmatpush1.msra.mxu0 %v1932
    %1948 = vmatprep.subr.mxu0 0.0
    %1949 = vmatpush1.msra.mxu0 %v1933
    %1950 = vmatprep.subr.mxu0 0.0
    %1951 = vmatpush1.msra.mxu0 %v1934
    %1952 = vmatprep.subr.mxu0 0.0
    %1953 = vmatpush1.msra.mxu0 %v1935
    %1954 = vmatprep.subr.mxu0 0.0
    %1955 = vmatpush1.msra.mxu0 %v1936
    %1956 = vmatprep.subr.mxu0 0.0
    %1957 = vmatpush1.msra.mxu0 %v1937
    %1958 = vmatprep.subr.mxu0 0.0
    %1959 = vmatpush1.msra.mxu0 %v1938
    %1960 = vmatprep.subr.mxu0 0.0
    %1961 = vmatpush1.msra.mxu0 %v1939
    %1962 = vmatprep.subr.mxu0 0.0
    %1963 = vmatpush1.msra.mxu0 0.0
    %1964 = vmatprep.subr.mxu0 0.0
    %1965 = vmatpush1.msra.mxu0 0.0
    %1966 = vmatprep.subr.mxu0 0.0
    %1967 = vmatpush1.msra.mxu0 0.0
    %1968 = vmatprep.subr.mxu0 0.0
    %1969 = vmatpush1.msra.mxu0 0.0
    %1970 = vmatprep.subr.mxu0 0.0
    %1971 = vmatpush1.msra.mxu0 0.0
    %1972 = vmatprep.subr.mxu0 0.0
    %1973 = vmatpush1.msra.mxu0 0.0
    %1974 = vmatprep.subr.mxu0 0.0
    %1975 = vmatpush1.msra.mxu0 0.0
    %1976 = vmatprep.subr.mxu0 0.0
    %1977 = vmatpush1.msra.mxu0 0.0
    %1978 = vmatprep.subr.mxu0 0.0
    %1979 = vmatpush1.msra.mxu0 0.0
    %1980 = vmatprep.subr.mxu0 0.0
    %1981 = vmatpush1.msra.mxu0 0.0
    %1982 = vmatprep.subr.mxu0 0.0
    %1983 = vmatpush1.msra.mxu0 0.0
    %1984 = vmatprep.subr.mxu0 0.0
    %1985 = vmatpush1.msra.mxu0 0.0
    %1986 = vmatprep.subr.mxu0 0.0
    %1987 = vmatpush1.msra.mxu0 0.0
    %1988 = vmatprep.subr.mxu0 0.0
    %1989 = vmatpush1.msra.mxu0 0.0
    %1990 = vmatprep.subr.mxu0 0.0
    %1991 = vmatpush1.msra.mxu0 0.0
    %1992 = vmatprep.subr.mxu0 0.0
    %1993 = vmatpush1.msra.mxu0 0.0
    %1994 = vmatprep.subr.mxu0 0.0
    %1995 = vmatpush1.msra.mxu0 0.0
    %1996 = vmatprep.subr.mxu0 0.0
    %1997 = vmatpush1.msra.mxu0 0.0
    %1998 = vmatprep.subr.mxu0 0.0
    %1999 = vmatpush1.msra.mxu0 0.0
    %2000 = vmatprep.subr.mxu0 0.0
    %2001 = vmatpush1.msra.mxu0 0.0
    %2002 = vmatprep.subr.mxu0 0.0
    %2003 = vmatpush1.msra.mxu0 0.0
    %2004 = vmatprep.subr.mxu0 0.0
    %2005 = vmatpush1.msra.mxu0 0.0
    %2006 = vmatprep.subr.mxu0 0.0
    %2007 = vmatpush1.msra.mxu0 0.0
    %2008 = vmatprep.subr.mxu0 0.0
    %2009 = vmatpush1.msra.mxu0 0.0
    %2010 = vmatprep.mubr.f32.mxu0 0.0
    %2011 = vmatmul.mubr.f32.gmra.mrb[0].mxu0 %v1941
    %v2012 = vpop.f32.mrb[0].mxu0
    %v2013 = vadd.f32 0.0, %v2012
    %v2014 = vpop.f32.mrb[0].mxu0
    %2015 = vmatprep.mubr.f32.mxu0 0.0
    %2016 = vmatmul.mubr.f32.gmra.mrb[0].mxu0 %v1944
    %v2017 = vpop.f32.mrb[0].mxu0
    %v2018 = vadd.f32 0.0, %v2017
    %v2019 = vpop.f32.mrb[0].mxu0
    %2020 = vdwg.mxu0
    %v2021 = vadd.f32 %v202, %v2013
    %v2022 = vadd.f32 %v207, %v2018
    %v2023 = vsel %vm226, %v2021, 0.0
    %2024 = vadd.xlane.f32.xlu0 %v2023
    %v2025 = vpop.xlane.xlu0 %2024
    %v2026 = vsel %vm226, %v2022, 0.0
    %2027 = vadd.xlane.f32.xlu0 %v2026
    %v2028 = vpop.xlane.xlu0 %2027
    %v2029 = vmul.f32 %v2025, %v233
    %v2030 = vmul.f32 %v2028, %v233
    %v2031 = vsub.f32 %v2021, %v2029
    %v2032 = vsub.f32 %v2022, %v2030
    %v2033 = vmul.f32 %v2031, %v2031
    %v2034 = vmul.f32 %v2032, %v2032
    %v2035 = vsel %vm226, %v2033, 0.0
    %2036 = vadd.xlane.f32.xlu0 %v2035
    %v2037 = vpop.xlane.xlu0 %2036
    %v2038 = vsel %vm226, %v2034, 0.0
    %2039 = vadd.xlane.f32.xlu0 %v2038
    %v2040 = vpop.xlane.xlu0 %2039
    %v2041 = vmul.f32 %v2037, %v233
    %v2042 = vmul.f32 %v2040, %v233
    %v2043 = vadd.f32 %v2041, 1e-05
    %v2044 = vadd.f32 %v2042, 1e-05
    %v2045 = vrsqrt.pop %v2043
    %v2046 = vrsqrt.pop %v2044
    %v2047 = vmul.f32 %v2031, %v2045
    %v2048 = vmul.f32 %v2032, %v2046
    %v2049 = vld [vmem:[%s7] sm:$0xff]
    %v2050 = vld [vmem:[%s7 + $0x8] sm:$0xff]
    %v2051 = vld [vmem:[%s7 + $0x10] sm:$0xff]
    %v2052 = vld [vmem:[%s7 + $0x18] sm:$0xff]
    %v2053 = vld [vmem:[%s7 + $0x20] sm:$0xff]
    %v2054 = vld [vmem:[%s7 + $0x28] sm:$0xff]
    %v2055 = vld [vmem:[%s7 + $0x30] sm:$0xff]
    %v2056 = vld [vmem:[%s7 + $0x38] sm:$0xff]
    %v2057 = vld [vmem:[%s7 + $0x40] sm:$0xff]
    %v2058 = vld [vmem:[%s7 + $0x48] sm:$0xff]
    %v2059 = vld [vmem:[%s7 + $0x50] sm:$0xff]
    %v2060 = vld [vmem:[%s7 + $0x58] sm:$0xff]
    %v2061 = vld [vmem:[%s7 + $0x60] sm:$0xff]
    %v2062 = vld [vmem:[%s7 + $0x68] sm:$0xff]
    %v2063 = vld [vmem:[%s7 + $0x70] sm:$0xff]
    %v2064 = vld [vmem:[%s7 + $0x78] sm:$0xff]
    %v2066 = vsel %vm226, %v2047, 0
    %v2069 = vsel %vm226, %v2048, 0
    %2071 = vmatprep.subr.mxu0 %v2050
    %2072 = vmatpush1.msra.mxu0 %v2049
    %2073 = vmatprep.subr.mxu0 %v2052
    %2074 = vmatpush1.msra.mxu0 %v2051
    %2075 = vmatprep.subr.mxu0 %v2054
    %2076 = vmatpush1.msra.mxu0 %v2053
    %2077 = vmatprep.subr.mxu0 %v2056
    %2078 = vmatpush1.msra.mxu0 %v2055
    %2079 = vmatprep.subr.mxu0 %v2058
    %2080 = vmatpush1.msra.mxu0 %v2057
    %2081 = vmatprep.subr.mxu0 %v2060
    %2082 = vmatpush1.msra.mxu0 %v2059
    %2083 = vmatprep.subr.mxu0 %v2062
    %2084 = vmatpush1.msra.mxu0 %v2061
    %2085 = vmatprep.subr.mxu0 %v2064
    %2086 = vmatpush1.msra.mxu0 %v2063
    %2087 = vmatprep.subr.mxu0 0.0
    %2088 = vmatpush1.msra.mxu0 0.0
    %2089 = vmatprep.subr.mxu0 0.0
    %2090 = vmatpush1.msra.mxu0 0.0
    %2091 = vmatprep.subr.mxu0 0.0
    %2092 = vmatpush1.msra.mxu0 0.0
    %2093 = vmatprep.subr.mxu0 0.0
    %2094 = vmatpush1.msra.mxu0 0.0
    %2095 = vmatprep.subr.mxu0 0.0
    %2096 = vmatpush1.msra.mxu0 0.0
    %2097 = vmatprep.subr.mxu0 0.0
    %2098 = vmatpush1.msra.mxu0 0.0
    %2099 = vmatprep.subr.mxu0 0.0
    %2100 = vmatpush1.msra.mxu0 0.0
    %2101 = vmatprep.subr.mxu0 0.0
    %2102 = vmatpush1.msra.mxu0 0.0
    %2103 = vmatprep.subr.mxu0 0.0
    %2104 = vmatpush1.msra.mxu0 0.0
    %2105 = vmatprep.subr.mxu0 0.0
    %2106 = vmatpush1.msra.mxu0 0.0
    %2107 = vmatprep.subr.mxu0 0.0
    %2108 = vmatpush1.msra.mxu0 0.0
    %2109 = vmatprep.subr.mxu0 0.0
    %2110 = vmatpush1.msra.mxu0 0.0
    %2111 = vmatprep.subr.mxu0 0.0
    %2112 = vmatpush1.msra.mxu0 0.0
    %2113 = vmatprep.subr.mxu0 0.0
    %2114 = vmatpush1.msra.mxu0 0.0
    %2115 = vmatprep.subr.mxu0 0.0
    %2116 = vmatpush1.msra.mxu0 0.0
    %2117 = vmatprep.subr.mxu0 0.0
    %2118 = vmatpush1.msra.mxu0 0.0
    %2119 = vmatprep.subr.mxu0 0.0
    %2120 = vmatpush1.msra.mxu0 0.0
    %2121 = vmatprep.subr.mxu0 0.0
    %2122 = vmatpush1.msra.mxu0 0.0
    %2123 = vmatprep.subr.mxu0 0.0
    %2124 = vmatpush1.msra.mxu0 0.0
    %2125 = vmatprep.subr.mxu0 0.0
    %2126 = vmatpush1.msra.mxu0 0.0
    %2127 = vmatprep.subr.mxu0 0.0
    %2128 = vmatpush1.msra.mxu0 0.0
    %2129 = vmatprep.subr.mxu0 0.0
    %2130 = vmatpush1.msra.mxu0 0.0
    %2131 = vmatprep.subr.mxu0 0.0
    %2132 = vmatpush1.msra.mxu0 0.0
    %2133 = vmatprep.subr.mxu0 0.0
    %2134 = vmatpush1.msra.mxu0 0.0
    %2135 = vmatprep.mubr.f32.mxu0 0.0
    %2136 = vmatmul.mubr.f32.gmra.mrb[0].mxu0 %v2066
    %v2137 = vpop.f32.mrb[0].mxu0
    %v2138 = vadd.f32 0.0, %v2137
    %v2139 = vpop.f32.mrb[0].mxu0
    %v2140 = vadd.f32 0.0, %v2139
    %2141 = vmatprep.mubr.f32.mxu0 0.0
    %2142 = vmatmul.mubr.f32.gmra.mrb[0].mxu0 %v2069
    %v2143 = vpop.f32.mrb[0].mxu0
    %v2144 = vadd.f32 0.0, %v2143
    %v2145 = vpop.f32.mrb[0].mxu0
    %v2146 = vadd.f32 0.0, %v2145
    %2147 = vdwg.mxu0
    %v2148 = vxor.u32 %v2138, 2147483648
    %v2149 = vxor.u32 %v2144, 2147483648
    %v2150 = vmul.f32 %v2148, 1.442695
    %v2151 = vpow.pop %v2150
    %v2152 = vmul.f32 %v2149, 1.442695
    %v2153 = vpow.pop %v2152
    %v2154 = vadd.f32 %v2151, 1.0
    %v2155 = vadd.f32 %v2153, 1.0
    %v2156 = vrcp.pop %v2154
    %v2157 = vmul.f32 1.0, %v2156
    %v2158 = vrcp.pop %v2155
    %v2159 = vmul.f32 1.0, %v2158
    %v2160 = vmul.f32 %v2138, %v2157
    %v2161 = vmul.f32 %v2144, %v2159
    %v2162 = vmul.f32 %v2160, %v2140
    %v2163 = vmul.f32 %v2161, %v2146
    %v2164 = vld [vmem:[%s8] sm:$0xff]
    %v2165 = vld [vmem:[%s8 + $0x8] sm:$0xff]
    %v2166 = vld [vmem:[%s8 + $0x10] sm:$0xff]
    %v2167 = vld [vmem:[%s8 + $0x18] sm:$0xff]
    %v2168 = vld [vmem:[%s8 + $0x20] sm:$0xff]
    %v2169 = vld [vmem:[%s8 + $0x28] sm:$0xff]
    %v2170 = vld [vmem:[%s8 + $0x30] sm:$0xff]
    %v2171 = vld [vmem:[%s8 + $0x38] sm:$0xff]
    %v2172 = vld [vmem:[%s8 + $0x40] sm:$0xff]
    %v2173 = vld [vmem:[%s8 + $0x48] sm:$0xff]
    %v2174 = vld [vmem:[%s8 + $0x50] sm:$0xff]
    %v2175 = vld [vmem:[%s8 + $0x58] sm:$0xff]
    %v2176 = vld [vmem:[%s8 + $0x60] sm:$0xff]
    %v2177 = vld [vmem:[%s8 + $0x68] sm:$0xff]
    %v2178 = vld [vmem:[%s8 + $0x70] sm:$0xff]
    %v2179 = vld [vmem:[%s8 + $0x78] sm:$0xff]
    %2180 = vmatprep.subr.mxu0 0.0
    %2181 = vmatpush1.msra.mxu0 %v2164
    %2182 = vmatprep.subr.mxu0 0.0
    %2183 = vmatpush1.msra.mxu0 %v2165
    %2184 = vmatprep.subr.mxu0 0.0
    %2185 = vmatpush1.msra.mxu0 %v2166
    %2186 = vmatprep.subr.mxu0 0.0
    %2187 = vmatpush1.msra.mxu0 %v2167
    %2188 = vmatprep.subr.mxu0 0.0
    %2189 = vmatpush1.msra.mxu0 %v2168
    %2190 = vmatprep.subr.mxu0 0.0
    %2191 = vmatpush1.msra.mxu0 %v2169
    %2192 = vmatprep.subr.mxu0 0.0
    %2193 = vmatpush1.msra.mxu0 %v2170
    %2194 = vmatprep.subr.mxu0 0.0
    %2195 = vmatpush1.msra.mxu0 %v2171
    %2196 = vmatprep.subr.mxu0 0.0
    %2197 = vmatpush1.msra.mxu0 %v2172
    %2198 = vmatprep.subr.mxu0 0.0
    %2199 = vmatpush1.msra.mxu0 %v2173
    %2200 = vmatprep.subr.mxu0 0.0
    %2201 = vmatpush1.msra.mxu0 %v2174
    %2202 = vmatprep.subr.mxu0 0.0
    %2203 = vmatpush1.msra.mxu0 %v2175
    %2204 = vmatprep.subr.mxu0 0.0
    %2205 = vmatpush1.msra.mxu0 %v2176
    %2206 = vmatprep.subr.mxu0 0.0
    %2207 = vmatpush1.msra.mxu0 %v2177
    %2208 = vmatprep.subr.mxu0 0.0
    %2209 = vmatpush1.msra.mxu0 %v2178
    %2210 = vmatprep.subr.mxu0 0.0
    %2211 = vmatpush1.msra.mxu0 %v2179
    %2212 = vmatprep.subr.mxu0 0.0
    %2213 = vmatpush1.msra.mxu0 0.0
    %2214 = vmatprep.subr.mxu0 0.0
    %2215 = vmatpush1.msra.mxu0 0.0
    %2216 = vmatprep.subr.mxu0 0.0
    %2217 = vmatpush1.msra.mxu0 0.0
    %2218 = vmatprep.subr.mxu0 0.0
    %2219 = vmatpush1.msra.mxu0 0.0
    %2220 = vmatprep.subr.mxu0 0.0
    %2221 = vmatpush1.msra.mxu0 0.0
    %2222 = vmatprep.subr.mxu0 0.0
    %2223 = vmatpush1.msra.mxu0 0.0
    %2224 = vmatprep.subr.mxu0 0.0
    %2225 = vmatpush1.msra.mxu0 0.0
    %2226 = vmatprep.subr.mxu0 0.0
    %2227 = vmatpush1.msra.mxu0 0.0
    %2228 = vmatprep.subr.mxu0 0.0
    %2229 = vmatpush1.msra.mxu0 0.0
    %2230 = vmatprep.subr.mxu0 0.0
    %2231 = vmatpush1.msra.mxu0 0.0
    %2232 = vmatprep.subr.mxu0 0.0
    %2233 = vmatpush1.msra.mxu0 0.0
    %2234 = vmatprep.subr.mxu0 0.0
    %2235 = vmatpush1.msra.mxu0 0.0
    %2236 = vmatprep.subr.mxu0 0.0
    %2237 = vmatpush1.msra.mxu0 0.0
    %2238 = vmatprep.subr.mxu0 0.0
    %2239 = vmatpush1.msra.mxu0 0.0
    %2240 = vmatprep.subr.mxu0 0.0
    %2241 = vmatpush1.msra.mxu0 0.0
    %2242 = vmatprep.subr.mxu0 0.0
    %2243 = vmatpush1.msra.mxu0 0.0
    %2244 = vmatprep.mubr.f32.mxu0 0.0
    %2245 = vmatmul.mubr.f32.gmra.mrb[0].mxu0 %v2162
    %v2246 = vpop.f32.mrb[0].mxu0
    %v2247 = vadd.f32 0.0, %v2246
    %v2248 = vpop.f32.mrb[0].mxu0
    %2249 = vmatprep.mubr.f32.mxu0 0.0
    %2250 = vmatmul.mubr.f32.gmra.mrb[0].mxu0 %v2163
    %v2251 = vpop.f32.mrb[0].mxu0
    %v2252 = vadd.f32 0.0, %v2251
    %v2253 = vpop.f32.mrb[0].mxu0
    %2254 = vdwg.mxu0
    %v2255 = vadd.f32 %v2021, %v2247
    %v2256 = vadd.f32 %v2022, %v2252
    %v2257 = vsel %vm226, %v2255, 0.0
    %2258 = vadd.xlane.f32.xlu0 %v2257
    %v2259 = vpop.xlane.xlu0 %2258
    %v2260 = vsel %vm226, %v2256, 0.0
    %2261 = vadd.xlane.f32.xlu0 %v2260
    %v2262 = vpop.xlane.xlu0 %2261
    %v2263 = vmul.f32 %v2259, %v233
    %v2264 = vmul.f32 %v2262, %v233
    %v2265 = vsub.f32 %v2255, %v2263
    %v2266 = vsub.f32 %v2256, %v2264
    %v2267 = vmul.f32 %v2265, %v2265
    %v2268 = vmul.f32 %v2266, %v2266
    %v2269 = vsel %vm226, %v2267, 0.0
    %2270 = vadd.xlane.f32.xlu0 %v2269
    %v2271 = vpop.xlane.xlu0 %2270
    %v2272 = vsel %vm226, %v2268, 0.0
    %2273 = vadd.xlane.f32.xlu0 %v2272
    %v2274 = vpop.xlane.xlu0 %2273
    %v2275 = vmul.f32 %v2271, %v233
    %v2276 = vmul.f32 %v2274, %v233
    %v2277 = vadd.f32 %v2275, 1e-05
    %v2278 = vadd.f32 %v2276, 1e-05
    %v2279 = vrsqrt.pop %v2277
    %v2280 = vrsqrt.pop %v2278
    %v2281 = vmul.f32 %v2265, %v2279
    %v2282 = vmul.f32 %v2266, %v2280
    %s2283 = scalar_lea.vmem %s5, 128
    %v2284 = vld [vmem:[%s2283] sm:$0xff]
    %v2285 = vld [vmem:[%s2283 + $0x8] sm:$0xff]
    %v2286 = vld [vmem:[%s2283 + $0x10] sm:$0xff]
    %v2287 = vld [vmem:[%s2283 + $0x18] sm:$0xff]
    %v2288 = vld [vmem:[%s2283 + $0x20] sm:$0xff]
    %v2289 = vld [vmem:[%s2283 + $0x28] sm:$0xff]
    %v2290 = vld [vmem:[%s2283 + $0x30] sm:$0xff]
    %v2291 = vld [vmem:[%s2283 + $0x38] sm:$0xff]
    %v2292 = vld [vmem:[%s2283 + $0x40] sm:$0xff]
    %v2293 = vld [vmem:[%s2283 + $0x48] sm:$0xff]
    %v2294 = vld [vmem:[%s2283 + $0x50] sm:$0xff]
    %v2295 = vld [vmem:[%s2283 + $0x58] sm:$0xff]
    %v2296 = vld [vmem:[%s2283 + $0x60] sm:$0xff]
    %v2297 = vld [vmem:[%s2283 + $0x68] sm:$0xff]
    %v2298 = vld [vmem:[%s2283 + $0x70] sm:$0xff]
    %v2299 = vld [vmem:[%s2283 + $0x78] sm:$0xff]
    %v2301 = vsel %vm226, %v2281, 0
    %v2304 = vsel %vm226, %v2282, 0
    %2306 = vmatprep.subr.mxu0 %v2285
    %2307 = vmatpush1.msra.mxu0 %v2284
    %2308 = vmatprep.subr.mxu0 %v2287
    %2309 = vmatpush1.msra.mxu0 %v2286
    %2310 = vmatprep.subr.mxu0 %v2289
    %2311 = vmatpush1.msra.mxu0 %v2288
    %2312 = vmatprep.subr.mxu0 %v2291
    %2313 = vmatpush1.msra.mxu0 %v2290
    %2314 = vmatprep.subr.mxu0 %v2293
    %2315 = vmatpush1.msra.mxu0 %v2292
    %2316 = vmatprep.subr.mxu0 %v2295
    %2317 = vmatpush1.msra.mxu0 %v2294
    %2318 = vmatprep.subr.mxu0 %v2297
    %2319 = vmatpush1.msra.mxu0 %v2296
    %2320 = vmatprep.subr.mxu0 %v2299
    %2321 = vmatpush1.msra.mxu0 %v2298
    %2322 = vmatprep.subr.mxu0 0.0
    %2323 = vmatpush1.msra.mxu0 0.0
    %2324 = vmatprep.subr.mxu0 0.0
    %2325 = vmatpush1.msra.mxu0 0.0
    %2326 = vmatprep.subr.mxu0 0.0
    %2327 = vmatpush1.msra.mxu0 0.0
    %2328 = vmatprep.subr.mxu0 0.0
    %2329 = vmatpush1.msra.mxu0 0.0
    %2330 = vmatprep.subr.mxu0 0.0
    %2331 = vmatpush1.msra.mxu0 0.0
    %2332 = vmatprep.subr.mxu0 0.0
    %2333 = vmatpush1.msra.mxu0 0.0
    %2334 = vmatprep.subr.mxu0 0.0
    %2335 = vmatpush1.msra.mxu0 0.0
    %2336 = vmatprep.subr.mxu0 0.0
    %2337 = vmatpush1.msra.mxu0 0.0
    %2338 = vmatprep.subr.mxu0 0.0
    %2339 = vmatpush1.msra.mxu0 0.0
    %2340 = vmatprep.subr.mxu0 0.0
    %2341 = vmatpush1.msra.mxu0 0.0
    %2342 = vmatprep.subr.mxu0 0.0
    %2343 = vmatpush1.msra.mxu0 0.0
    %2344 = vmatprep.subr.mxu0 0.0
    %2345 = vmatpush1.msra.mxu0 0.0
    %2346 = vmatprep.subr.mxu0 0.0
    %2347 = vmatpush1.msra.mxu0 0.0
    %2348 = vmatprep.subr.mxu0 0.0
    %2349 = vmatpush1.msra.mxu0 0.0
    %2350 = vmatprep.subr.mxu0 0.0
    %2351 = vmatpush1.msra.mxu0 0.0
    %2352 = vmatprep.subr.mxu0 0.0
    %2353 = vmatpush1.msra.mxu0 0.0
    %2354 = vmatprep.subr.mxu0 0.0
    %2355 = vmatpush1.msra.mxu0 0.0
    %2356 = vmatprep.subr.mxu0 0.0
    %2357 = vmatpush1.msra.mxu0 0.0
    %2358 = vmatprep.subr.mxu0 0.0
    %2359 = vmatpush1.msra.mxu0 0.0
    %2360 = vmatprep.subr.mxu0 0.0
    %2361 = vmatpush1.msra.mxu0 0.0
    %2362 = vmatprep.subr.mxu0 0.0
    %2363 = vmatpush1.msra.mxu0 0.0
    %2364 = vmatprep.subr.mxu0 0.0
    %2365 = vmatpush1.msra.mxu0 0.0
    %2366 = vmatprep.subr.mxu0 0.0
    %2367 = vmatpush1.msra.mxu0 0.0
    %2368 = vmatprep.subr.mxu0 0.0
    %2369 = vmatpush1.msra.mxu0 0.0
    %2370 = vmatprep.mubr.f32.mxu0 0.0
    %2371 = vmatmul.mubr.f32.gmra.mrb[0].mxu0 %v2301
    %v2372 = vpop.f32.mrb[0].mxu0
    %v2373 = vadd.f32 0.0, %v2372
    %v2374 = vpop.f32.mrb[0].mxu0
    %v2375 = vadd.f32 0.0, %v2374
    %2376 = vmatprep.mubr.f32.mxu0 0.0
    %2377 = vmatmul.mubr.f32.gmra.mrb[0].mxu0 %v2304
    %v2378 = vpop.f32.mrb[0].mxu0
    %v2379 = vadd.f32 0.0, %v2378
    %v2380 = vpop.f32.mrb[0].mxu0
    %v2381 = vadd.f32 0.0, %v2380
    %2382 = vdwg.mxu0
    %v2383 = vmul.f32 %v2373, %v210
    %v2384 = vmul.f32 %v2379, %v211
    %v2386 = vsel %vm226, %v2373, 0
    %v2389 = vsel %vm226, %v2379, 0
    %2391 = vmatprep.subr.mxu0 0.0
    %2392 = vmatpush1.msra.mxu0 %v214
    %2393 = vmatprep.subr.mxu0 0.0
    %2394 = vmatpush1.msra.mxu0 %v215
    %2395 = vmatprep.subr.mxu0 0.0
    %2396 = vmatpush1.msra.mxu0 %v216
    %2397 = vmatprep.subr.mxu0 0.0
    %2398 = vmatpush1.msra.mxu0 %v217
    %2399 = vmatprep.subr.mxu0 0.0
    %2400 = vmatpush1.msra.mxu0 %v218
    %2401 = vmatprep.subr.mxu0 0.0
    %2402 = vmatpush1.msra.mxu0 %v219
    %2403 = vmatprep.subr.mxu0 0.0
    %2404 = vmatpush1.msra.mxu0 %v220
    %2405 = vmatprep.subr.mxu0 0.0
    %2406 = vmatpush1.msra.mxu0 %v221
    %2407 = vmatprep.subr.mxu0 0.0
    %2408 = vmatpush1.msra.mxu0 0.0
    %2409 = vmatprep.subr.mxu0 0.0
    %2410 = vmatpush1.msra.mxu0 0.0
    %2411 = vmatprep.subr.mxu0 0.0
    %2412 = vmatpush1.msra.mxu0 0.0
    %2413 = vmatprep.subr.mxu0 0.0
    %2414 = vmatpush1.msra.mxu0 0.0
    %2415 = vmatprep.subr.mxu0 0.0
    %2416 = vmatpush1.msra.mxu0 0.0
    %2417 = vmatprep.subr.mxu0 0.0
    %2418 = vmatpush1.msra.mxu0 0.0
    %2419 = vmatprep.subr.mxu0 0.0
    %2420 = vmatpush1.msra.mxu0 0.0
    %2421 = vmatprep.subr.mxu0 0.0
    %2422 = vmatpush1.msra.mxu0 0.0
    %2423 = vmatprep.subr.mxu0 0.0
    %2424 = vmatpush1.msra.mxu0 0.0
    %2425 = vmatprep.subr.mxu0 0.0
    %2426 = vmatpush1.msra.mxu0 0.0
    %2427 = vmatprep.subr.mxu0 0.0
    %2428 = vmatpush1.msra.mxu0 0.0
    %2429 = vmatprep.subr.mxu0 0.0
    %2430 = vmatpush1.msra.mxu0 0.0
    %2431 = vmatprep.subr.mxu0 0.0
    %2432 = vmatpush1.msra.mxu0 0.0
    %2433 = vmatprep.subr.mxu0 0.0
    %2434 = vmatpush1.msra.mxu0 0.0
    %2435 = vmatprep.subr.mxu0 0.0
    %2436 = vmatpush1.msra.mxu0 0.0
    %2437 = vmatprep.subr.mxu0 0.0
    %2438 = vmatpush1.msra.mxu0 0.0
    %2439 = vmatprep.subr.mxu0 0.0
    %2440 = vmatpush1.msra.mxu0 0.0
    %2441 = vmatprep.subr.mxu0 0.0
    %2442 = vmatpush1.msra.mxu0 0.0
    %2443 = vmatprep.subr.mxu0 0.0
    %2444 = vmatpush1.msra.mxu0 0.0
    %2445 = vmatprep.subr.mxu0 0.0
    %2446 = vmatpush1.msra.mxu0 0.0
    %2447 = vmatprep.subr.mxu0 0.0
    %2448 = vmatpush1.msra.mxu0 0.0
    %2449 = vmatprep.subr.mxu0 0.0
    %2450 = vmatpush1.msra.mxu0 0.0
    %2451 = vmatprep.subr.mxu0 0.0
    %2452 = vmatpush1.msra.mxu0 0.0
    %2453 = vmatprep.subr.mxu0 0.0
    %2454 = vmatpush1.msra.mxu0 0.0
    %2455 = vmatprep.mubr.f32.mxu0 0.0
    %2456 = vmatmul.mubr.f32.gmra.mrb[0].mxu0 %v2386
    %v2457 = vpop.f32.mrb[0].mxu0
    %v2458 = vadd.f32 0.0, %v2457
    %v2459 = vpop.f32.mrb[0].mxu0
    %2460 = vmatprep.mubr.f32.mxu0 0.0
    %2461 = vmatmul.mubr.f32.gmra.mrb[0].mxu0 %v2389
    %v2462 = vpop.f32.mrb[0].mxu0
    %v2463 = vadd.f32 0.0, %v2462
    %v2464 = vpop.f32.mrb[0].mxu0
    %2465 = vdwg.mxu0
    %v2466 = vmul.f32 %v2458, %v212
    %v2467 = vmul.f32 %v2463, %v213
    %v2468 = vadd.f32 %v2383, %v2466
    %v2469 = vadd.f32 %v2384, %v2467
    %v2470 = vmul.f32 %v2373, %v443
    %v2471 = vmul.f32 %v2379, %v445
    %2472 = vrot.lane.b32.xlu0 %v2373, 64
    %v2473 = vpop.permute.xlu0 %2472
    %2474 = vrot.lane.b32.xlu0 %v2379, 64
    %v2475 = vpop.permute.xlu0 %2474
    %v2476 = vsel %vm226, %v2473, 0
    %v2478 = vsel %vm226, %v2475, 0
    %2480 = vmatprep.subr.mxu0 0.0
    %2481 = vmatpush1.msra.mxu0 %v214
    %2482 = vmatprep.subr.mxu0 0.0
    %2483 = vmatpush1.msra.mxu0 %v215
    %2484 = vmatprep.subr.mxu0 0.0
    %2485 = vmatpush1.msra.mxu0 %v216
    %2486 = vmatprep.subr.mxu0 0.0
    %2487 = vmatpush1.msra.mxu0 %v217
    %2488 = vmatprep.subr.mxu0 0.0
    %2489 = vmatpush1.msra.mxu0 %v218
    %2490 = vmatprep.subr.mxu0 0.0
    %2491 = vmatpush1.msra.mxu0 %v219
    %2492 = vmatprep.subr.mxu0 0.0
    %2493 = vmatpush1.msra.mxu0 %v220
    %2494 = vmatprep.subr.mxu0 0.0
    %2495 = vmatpush1.msra.mxu0 %v221
    %2496 = vmatprep.subr.mxu0 0.0
    %2497 = vmatpush1.msra.mxu0 0.0
    %2498 = vmatprep.subr.mxu0 0.0
    %2499 = vmatpush1.msra.mxu0 0.0
    %2500 = vmatprep.subr.mxu0 0.0
    %2501 = vmatpush1.msra.mxu0 0.0
    %2502 = vmatprep.subr.mxu0 0.0
    %2503 = vmatpush1.msra.mxu0 0.0
    %2504 = vmatprep.subr.mxu0 0.0
    %2505 = vmatpush1.msra.mxu0 0.0
    %2506 = vmatprep.subr.mxu0 0.0
    %2507 = vmatpush1.msra.mxu0 0.0
    %2508 = vmatprep.subr.mxu0 0.0
    %2509 = vmatpush1.msra.mxu0 0.0
    %2510 = vmatprep.subr.mxu0 0.0
    %2511 = vmatpush1.msra.mxu0 0.0
    %2512 = vmatprep.subr.mxu0 0.0
    %2513 = vmatpush1.msra.mxu0 0.0
    %2514 = vmatprep.subr.mxu0 0.0
    %2515 = vmatpush1.msra.mxu0 0.0
    %2516 = vmatprep.subr.mxu0 0.0
    %2517 = vmatpush1.msra.mxu0 0.0
    %2518 = vmatprep.subr.mxu0 0.0
    %2519 = vmatpush1.msra.mxu0 0.0
    %2520 = vmatprep.subr.mxu0 0.0
    %2521 = vmatpush1.msra.mxu0 0.0
    %2522 = vmatprep.subr.mxu0 0.0
    %2523 = vmatpush1.msra.mxu0 0.0
    %2524 = vmatprep.subr.mxu0 0.0
    %2525 = vmatpush1.msra.mxu0 0.0
    %2526 = vmatprep.subr.mxu0 0.0
    %2527 = vmatpush1.msra.mxu0 0.0
    %2528 = vmatprep.subr.mxu0 0.0
    %2529 = vmatpush1.msra.mxu0 0.0
    %2530 = vmatprep.subr.mxu0 0.0
    %2531 = vmatpush1.msra.mxu0 0.0
    %2532 = vmatprep.subr.mxu0 0.0
    %2533 = vmatpush1.msra.mxu0 0.0
    %2534 = vmatprep.subr.mxu0 0.0
    %2535 = vmatpush1.msra.mxu0 0.0
    %2536 = vmatprep.subr.mxu0 0.0
    %2537 = vmatpush1.msra.mxu0 0.0
    %2538 = vmatprep.subr.mxu0 0.0
    %2539 = vmatpush1.msra.mxu0 0.0
    %2540 = vmatprep.subr.mxu0 0.0
    %2541 = vmatpush1.msra.mxu0 0.0
    %2542 = vmatprep.subr.mxu0 0.0
    %2543 = vmatpush1.msra.mxu0 0.0
    %2544 = vmatprep.mubr.f32.mxu0 0.0
    %2545 = vmatmul.mubr.f32.gmra.mrb[0].mxu0 %v2476
    %v2546 = vpop.f32.mrb[0].mxu0
    %v2547 = vadd.f32 0.0, %v2546
    %v2548 = vpop.f32.mrb[0].mxu0
    %2549 = vmatprep.mubr.f32.mxu0 0.0
    %2550 = vmatmul.mubr.f32.gmra.mrb[0].mxu0 %v2478
    %v2551 = vpop.f32.mrb[0].mxu0
    %v2552 = vadd.f32 0.0, %v2551
    %v2553 = vpop.f32.mrb[0].mxu0
    %2554 = vdwg.mxu0
    %v2555 = vmul.f32 %v2547, %v212
    %v2556 = vmul.f32 %v2552, %v213
    %2559 = vrot.lane.b32.xlu0 %v2555, 64
    %v2560 = vpop.permute.xlu0 %2559
    %2561 = vrot.lane.b32.xlu0 %v2556, 64
    %v2562 = vpop.permute.xlu0 %2561
    %v2565 = vadd.f32 %v2470, %v2560
    %v2566 = vadd.f32 %v2471, %v2562
    %2568 = vrot.lane.b32.xlu0 %v2565, 64
    %v2569 = vpop.permute.xlu0 %2568
    %v2571 = vsel %vm557, %v2468, 0
    %v2573 = vsel %vm557, %v2569, 0
    %2575 = vmatprep.subr.mxu0 0.0
    %2576 = vmatpush1.xpose.msra.mxu0 %v2573
    %2577 = vmatprep.subr.mxu0 0.0
    %2578 = vmatpush1.xpose.msra.mxu0 0.0
    %2579 = vmatprep.subr.mxu0 0.0
    %2580 = vmatpush1.xpose.msra.mxu0 0.0
    %2581 = vmatprep.subr.mxu0 0.0
    %2582 = vmatpush1.xpose.msra.mxu0 0.0
    %2583 = vmatprep.subr.mxu0 0.0
    %2584 = vmatpush1.xpose.msra.mxu0 0.0
    %2585 = vmatprep.subr.mxu0 0.0
    %2586 = vmatpush1.xpose.msra.mxu0 0.0
    %2587 = vmatprep.subr.mxu0 0.0
    %2588 = vmatpush1.xpose.msra.mxu0 0.0
    %2589 = vmatprep.subr.mxu0 0.0
    %2590 = vmatpush1.xpose.msra.mxu0 0.0
    %2591 = vmatprep.subr.mxu0 0.0
    %2592 = vmatpush1.xpose.msra.mxu0 0.0
    %2593 = vmatprep.subr.mxu0 0.0
    %2594 = vmatpush1.xpose.msra.mxu0 0.0
    %2595 = vmatprep.subr.mxu0 0.0
    %2596 = vmatpush1.xpose.msra.mxu0 0.0
    %2597 = vmatprep.subr.mxu0 0.0
    %2598 = vmatpush1.xpose.msra.mxu0 0.0
    %2599 = vmatprep.subr.mxu0 0.0
    %2600 = vmatpush1.xpose.msra.mxu0 0.0
    %2601 = vmatprep.subr.mxu0 0.0
    %2602 = vmatpush1.xpose.msra.mxu0 0.0
    %2603 = vmatprep.subr.mxu0 0.0
    %2604 = vmatpush1.xpose.msra.mxu0 0.0
    %2605 = vmatprep.subr.mxu0 0.0
    %2606 = vmatpush1.xpose.msra.mxu0 0.0
    %2607 = vmatprep.subr.mxu0 0.0
    %2608 = vmatpush1.xpose.msra.mxu0 0.0
    %2609 = vmatprep.subr.mxu0 0.0
    %2610 = vmatpush1.xpose.msra.mxu0 0.0
    %2611 = vmatprep.subr.mxu0 0.0
    %2612 = vmatpush1.xpose.msra.mxu0 0.0
    %2613 = vmatprep.subr.mxu0 0.0
    %2614 = vmatpush1.xpose.msra.mxu0 0.0
    %2615 = vmatprep.subr.mxu0 0.0
    %2616 = vmatpush1.xpose.msra.mxu0 0.0
    %2617 = vmatprep.subr.mxu0 0.0
    %2618 = vmatpush1.xpose.msra.mxu0 0.0
    %2619 = vmatprep.subr.mxu0 0.0
    %2620 = vmatpush1.xpose.msra.mxu0 0.0
    %2621 = vmatprep.subr.mxu0 0.0
    %2622 = vmatpush1.xpose.msra.mxu0 0.0
    %2623 = vmatprep.subr.mxu0 0.0
    %2624 = vmatpush1.xpose.msra.mxu0 0.0
    %2625 = vmatprep.subr.mxu0 0.0
    %2626 = vmatpush1.xpose.msra.mxu0 0.0
    %2627 = vmatprep.subr.mxu0 0.0
    %2628 = vmatpush1.xpose.msra.mxu0 0.0
    %2629 = vmatprep.subr.mxu0 0.0
    %2630 = vmatpush1.xpose.msra.mxu0 0.0
    %2631 = vmatprep.subr.mxu0 0.0
    %2632 = vmatpush1.xpose.msra.mxu0 0.0
    %2633 = vmatprep.subr.mxu0 0.0
    %2634 = vmatpush1.xpose.msra.mxu0 0.0
    %2635 = vmatprep.subr.mxu0 0.0
    %2636 = vmatpush1.xpose.msra.mxu0 0.0
    %2637 = vmatprep.subr.mxu0 0.0
    %2638 = vmatpush1.xpose.msra.mxu0 0.0
    %2639 = vmatprep.mubr.f32.mxu0 0.0
    %2640 = vmatmul.mubr.f32.gmra.mrb[0].mxu0 %v2571
    %v2641 = vpop.f32.mrb[0].mxu0
    %v2642 = vadd.f32 0.0, %v2641
    %v2643 = vpop.f32.mrb[0].mxu0
    %2644 = vdwg.mxu0
    %v2645 = vmul.f32 %v2642, 0.25
    %v2646 = vadd.f32 %v2645, %v553
    %v2647 = vsel %vm635, %v2646, -inf
    %2648 = vmax.xlane.f32.xlu0 %v2647
    %v2649 = vpop.xlane.xlu0 %2648
    %v2650 = vsub.f32 %v2646, %v2649
    %v2651 = vmul.f32 %v2650, 1.442695
    %v2652 = vpow.pop %v2651
    %v2653 = vsel %vm635, %v2652, 0.0
    %2654 = vadd.xlane.f32.xlu0 %v2653
    %v2655 = vpop.xlane.xlu0 %2654
    %v2656 = vrcp.pop %v2655
    %v2657 = vmul.f32 %v2652, %v2656
    %v2659 = vsel %vm635, %v2657, 0
    %2661 = vmatprep.subr.mxu0 0.0
    %2662 = vmatpush1.msra.mxu0 %v2375
    %2663 = vmatprep.subr.mxu0 0.0
    %2664 = vmatpush1.msra.mxu0 0.0
    %2665 = vmatprep.subr.mxu0 0.0
    %2666 = vmatpush1.msra.mxu0 0.0
    %2667 = vmatprep.subr.mxu0 0.0
    %2668 = vmatpush1.msra.mxu0 0.0
    %2669 = vmatprep.subr.mxu0 0.0
    %2670 = vmatpush1.msra.mxu0 0.0
    %2671 = vmatprep.subr.mxu0 0.0
    %2672 = vmatpush1.msra.mxu0 0.0
    %2673 = vmatprep.subr.mxu0 0.0
    %2674 = vmatpush1.msra.mxu0 0.0
    %2675 = vmatprep.subr.mxu0 0.0
    %2676 = vmatpush1.msra.mxu0 0.0
    %2677 = vmatprep.subr.mxu0 0.0
    %2678 = vmatpush1.msra.mxu0 0.0
    %2679 = vmatprep.subr.mxu0 0.0
    %2680 = vmatpush1.msra.mxu0 0.0
    %2681 = vmatprep.subr.mxu0 0.0
    %2682 = vmatpush1.msra.mxu0 0.0
    %2683 = vmatprep.subr.mxu0 0.0
    %2684 = vmatpush1.msra.mxu0 0.0
    %2685 = vmatprep.subr.mxu0 0.0
    %2686 = vmatpush1.msra.mxu0 0.0
    %2687 = vmatprep.subr.mxu0 0.0
    %2688 = vmatpush1.msra.mxu0 0.0
    %2689 = vmatprep.subr.mxu0 0.0
    %2690 = vmatpush1.msra.mxu0 0.0
    %2691 = vmatprep.subr.mxu0 0.0
    %2692 = vmatpush1.msra.mxu0 0.0
    %2693 = vmatprep.subr.mxu0 0.0
    %2694 = vmatpush1.msra.mxu0 0.0
    %2695 = vmatprep.subr.mxu0 0.0
    %2696 = vmatpush1.msra.mxu0 0.0
    %2697 = vmatprep.subr.mxu0 0.0
    %2698 = vmatpush1.msra.mxu0 0.0
    %2699 = vmatprep.subr.mxu0 0.0
    %2700 = vmatpush1.msra.mxu0 0.0
    %2701 = vmatprep.subr.mxu0 0.0
    %2702 = vmatpush1.msra.mxu0 0.0
    %2703 = vmatprep.subr.mxu0 0.0
    %2704 = vmatpush1.msra.mxu0 0.0
    %2705 = vmatprep.subr.mxu0 0.0
    %2706 = vmatpush1.msra.mxu0 0.0
    %2707 = vmatprep.subr.mxu0 0.0
    %2708 = vmatpush1.msra.mxu0 0.0
    %2709 = vmatprep.subr.mxu0 0.0
    %2710 = vmatpush1.msra.mxu0 0.0
    %2711 = vmatprep.subr.mxu0 0.0
    %2712 = vmatpush1.msra.mxu0 0.0
    %2713 = vmatprep.subr.mxu0 0.0
    %2714 = vmatpush1.msra.mxu0 0.0
    %2715 = vmatprep.subr.mxu0 0.0
    %2716 = vmatpush1.msra.mxu0 0.0
    %2717 = vmatprep.subr.mxu0 0.0
    %2718 = vmatpush1.msra.mxu0 0.0
    %2719 = vmatprep.subr.mxu0 0.0
    %2720 = vmatpush1.msra.mxu0 0.0
    %2721 = vmatprep.subr.mxu0 0.0
    %2722 = vmatpush1.msra.mxu0 0.0
    %2723 = vmatprep.subr.mxu0 0.0
    %2724 = vmatpush1.msra.mxu0 0.0
    %2725 = vmatprep.mubr.f32.mxu0 0.0
    %2726 = vmatmul.mubr.f32.gmra.mrb[0].mxu0 %v2659
    %v2727 = vpop.f32.mrb[0].mxu0
    %v2728 = vadd.f32 0.0, %v2727
    %v2729 = vpop.f32.mrb[0].mxu0
    %2730 = vdwg.mxu0
    %2731 = vst.msk [vmem:[#allocation2] sm:$0xff] %vm557, %v2728
    %2732 = vrot.lane.b32.xlu0 %v2468, 112
    %v2733 = vpop.permute.xlu0 %2732
    %2734 = vrot.lane.b32.xlu0 %v2565, 48
    %v2735 = vpop.permute.xlu0 %2734
    %v2736 = vsel %vm557, %v2733, 0
    %v2738 = vsel %vm557, %v2735, 0
    %2740 = vmatprep.subr.mxu0 0.0
    %2741 = vmatpush1.xpose.msra.mxu0 %v2738
    %2742 = vmatprep.subr.mxu0 0.0
    %2743 = vmatpush1.xpose.msra.mxu0 0.0
    %2744 = vmatprep.subr.mxu0 0.0
    %2745 = vmatpush1.xpose.msra.mxu0 0.0
    %2746 = vmatprep.subr.mxu0 0.0
    %2747 = vmatpush1.xpose.msra.mxu0 0.0
    %2748 = vmatprep.subr.mxu0 0.0
    %2749 = vmatpush1.xpose.msra.mxu0 0.0
    %2750 = vmatprep.subr.mxu0 0.0
    %2751 = vmatpush1.xpose.msra.mxu0 0.0
    %2752 = vmatprep.subr.mxu0 0.0
    %2753 = vmatpush1.xpose.msra.mxu0 0.0
    %2754 = vmatprep.subr.mxu0 0.0
    %2755 = vmatpush1.xpose.msra.mxu0 0.0
    %2756 = vmatprep.subr.mxu0 0.0
    %2757 = vmatpush1.xpose.msra.mxu0 0.0
    %2758 = vmatprep.subr.mxu0 0.0
    %2759 = vmatpush1.xpose.msra.mxu0 0.0
    %2760 = vmatprep.subr.mxu0 0.0
    %2761 = vmatpush1.xpose.msra.mxu0 0.0
    %2762 = vmatprep.subr.mxu0 0.0
    %2763 = vmatpush1.xpose.msra.mxu0 0.0
    %2764 = vmatprep.subr.mxu0 0.0
    %2765 = vmatpush1.xpose.msra.mxu0 0.0
    %2766 = vmatprep.subr.mxu0 0.0
    %2767 = vmatpush1.xpose.msra.mxu0 0.0
    %2768 = vmatprep.subr.mxu0 0.0
    %2769 = vmatpush1.xpose.msra.mxu0 0.0
    %2770 = vmatprep.subr.mxu0 0.0
    %2771 = vmatpush1.xpose.msra.mxu0 0.0
    %2772 = vmatprep.subr.mxu0 0.0
    %2773 = vmatpush1.xpose.msra.mxu0 0.0
    %2774 = vmatprep.subr.mxu0 0.0
    %2775 = vmatpush1.xpose.msra.mxu0 0.0
    %2776 = vmatprep.subr.mxu0 0.0
    %2777 = vmatpush1.xpose.msra.mxu0 0.0
    %2778 = vmatprep.subr.mxu0 0.0
    %2779 = vmatpush1.xpose.msra.mxu0 0.0
    %2780 = vmatprep.subr.mxu0 0.0
    %2781 = vmatpush1.xpose.msra.mxu0 0.0
    %2782 = vmatprep.subr.mxu0 0.0
    %2783 = vmatpush1.xpose.msra.mxu0 0.0
    %2784 = vmatprep.subr.mxu0 0.0
    %2785 = vmatpush1.xpose.msra.mxu0 0.0
    %2786 = vmatprep.subr.mxu0 0.0
    %2787 = vmatpush1.xpose.msra.mxu0 0.0
    %2788 = vmatprep.subr.mxu0 0.0
    %2789 = vmatpush1.xpose.msra.mxu0 0.0
    %2790 = vmatprep.subr.mxu0 0.0
    %2791 = vmatpush1.xpose.msra.mxu0 0.0
    %2792 = vmatprep.subr.mxu0 0.0
    %2793 = vmatpush1.xpose.msra.mxu0 0.0
    %2794 = vmatprep.subr.mxu0 0.0
    %2795 = vmatpush1.xpose.msra.mxu0 0.0
    %2796 = vmatprep.subr.mxu0 0.0
    %2797 = vmatpush1.xpose.msra.mxu0 0.0
    %2798 = vmatprep.subr.mxu0 0.0
    %2799 = vmatpush1.xpose.msra.mxu0 0.0
    %2800 = vmatprep.subr.mxu0 0.0
    %2801 = vmatpush1.xpose.msra.mxu0 0.0
    %2802 = vmatprep.subr.mxu0 0.0
    %2803 = vmatpush1.xpose.msra.mxu0 0.0
    %2804 = vmatprep.mubr.f32.mxu0 0.0
    %2805 = vmatmul.mubr.f32.gmra.mrb[0].mxu0 %v2736
    %v2806 = vpop.f32.mrb[0].mxu0
    %v2807 = vadd.f32 0.0, %v2806
    %v2808 = vpop.f32.mrb[0].mxu0
    %2809 = vdwg.mxu0
    %v2810 = vmul.f32 %v2807, 0.25
    %v2811 = vadd.f32 %v2810, %v553
    %v2812 = vsel %vm635, %v2811, -inf
    %2813 = vmax.xlane.f32.xlu0 %v2812
    %v2814 = vpop.xlane.xlu0 %2813
    %v2815 = vsub.f32 %v2811, %v2814
    %v2816 = vmul.f32 %v2815, 1.442695
    %v2817 = vpow.pop %v2816
    %v2818 = vsel %vm635, %v2817, 0.0
    %2819 = vadd.xlane.f32.xlu0 %v2818
    %v2820 = vpop.xlane.xlu0 %2819
    %v2821 = vrcp.pop %v2820
    %v2822 = vmul.f32 %v2817, %v2821
    %2824 = vrot.lane.b32.xlu0 %v2375, 112
    %v2825 = vpop.permute.xlu0 %2824
    %v2828 = vsel %vm635, %v2822, 0
    %2830 = vmatprep.subr.mxu0 0.0
    %2831 = vmatpush1.msra.mxu0 %v2825
    %2832 = vmatprep.subr.mxu0 0.0
    %2833 = vmatpush1.msra.mxu0 0.0
    %2834 = vmatprep.subr.mxu0 0.0
    %2835 = vmatpush1.msra.mxu0 0.0
    %2836 = vmatprep.subr.mxu0 0.0
    %2837 = vmatpush1.msra.mxu0 0.0
    %2838 = vmatprep.subr.mxu0 0.0
    %2839 = vmatpush1.msra.mxu0 0.0
    %2840 = vmatprep.subr.mxu0 0.0
    %2841 = vmatpush1.msra.mxu0 0.0
    %2842 = vmatprep.subr.mxu0 0.0
    %2843 = vmatpush1.msra.mxu0 0.0
    %2844 = vmatprep.subr.mxu0 0.0
    %2845 = vmatpush1.msra.mxu0 0.0
    %2846 = vmatprep.subr.mxu0 0.0
    %2847 = vmatpush1.msra.mxu0 0.0
    %2848 = vmatprep.subr.mxu0 0.0
    %2849 = vmatpush1.msra.mxu0 0.0
    %2850 = vmatprep.subr.mxu0 0.0
    %2851 = vmatpush1.msra.mxu0 0.0
    %2852 = vmatprep.subr.mxu0 0.0
    %2853 = vmatpush1.msra.mxu0 0.0
    %2854 = vmatprep.subr.mxu0 0.0
    %2855 = vmatpush1.msra.mxu0 0.0
    %2856 = vmatprep.subr.mxu0 0.0
    %2857 = vmatpush1.msra.mxu0 0.0
    %2858 = vmatprep.subr.mxu0 0.0
    %2859 = vmatpush1.msra.mxu0 0.0
    %2860 = vmatprep.subr.mxu0 0.0
    %2861 = vmatpush1.msra.mxu0 0.0
    %2862 = vmatprep.subr.mxu0 0.0
    %2863 = vmatpush1.msra.mxu0 0.0
    %2864 = vmatprep.subr.mxu0 0.0
    %2865 = vmatpush1.msra.mxu0 0.0
    %2866 = vmatprep.subr.mxu0 0.0
    %2867 = vmatpush1.msra.mxu0 0.0
    %2868 = vmatprep.subr.mxu0 0.0
    %2869 = vmatpush1.msra.mxu0 0.0
    %2870 = vmatprep.subr.mxu0 0.0
    %2871 = vmatpush1.msra.mxu0 0.0
    %2872 = vmatprep.subr.mxu0 0.0
    %2873 = vmatpush1.msra.mxu0 0.0
    %2874 = vmatprep.subr.mxu0 0.0
    %2875 = vmatpush1.msra.mxu0 0.0
    %2876 = vmatprep.subr.mxu0 0.0
    %2877 = vmatpush1.msra.mxu0 0.0
    %2878 = vmatprep.subr.mxu0 0.0
    %2879 = vmatpush1.msra.mxu0 0.0
    %2880 = vmatprep.subr.mxu0 0.0
    %2881 = vmatpush1.msra.mxu0 0.0
    %2882 = vmatprep.subr.mxu0 0.0
    %2883 = vmatpush1.msra.mxu0 0.0
    %2884 = vmatprep.subr.mxu0 0.0
    %2885 = vmatpush1.msra.mxu0 0.0
    %2886 = vmatprep.subr.mxu0 0.0
    %2887 = vmatpush1.msra.mxu0 0.0
    %2888 = vmatprep.subr.mxu0 0.0
    %2889 = vmatpush1.msra.mxu0 0.0
    %2890 = vmatprep.subr.mxu0 0.0
    %2891 = vmatpush1.msra.mxu0 0.0
    %2892 = vmatprep.subr.mxu0 0.0
    %2893 = vmatpush1.msra.mxu0 0.0
    %2894 = vmatprep.mubr.f32.mxu0 0.0
    %2895 = vmatmul.mubr.f32.gmra.mrb[0].mxu0 %v2828
    %v2896 = vpop.f32.mrb[0].mxu0
    %v2897 = vadd.f32 0.0, %v2896
    %v2898 = vpop.f32.mrb[0].mxu0
    %2899 = vdwg.mxu0
    %2901 = vrot.lane.b32.xlu0 %v2897, 16
    %v2902 = vpop.permute.xlu0 %2901
    %2904 = vst.msk [vmem:[#allocation2] sm:$0xff] %vm893, %v2902
    %2905 = vrot.lane.b32.xlu0 %v2468, 96
    %v2906 = vpop.permute.xlu0 %2905
    %2907 = vrot.lane.b32.xlu0 %v2565, 32
    %v2908 = vpop.permute.xlu0 %2907
    %v2909 = vsel %vm557, %v2906, 0
    %v2911 = vsel %vm557, %v2908, 0
    %2913 = vmatprep.subr.mxu0 0.0
    %2914 = vmatpush1.xpose.msra.mxu0 %v2911
    %2915 = vmatprep.subr.mxu0 0.0
    %2916 = vmatpush1.xpose.msra.mxu0 0.0
    %2917 = vmatprep.subr.mxu0 0.0
    %2918 = vmatpush1.xpose.msra.mxu0 0.0
    %2919 = vmatprep.subr.mxu0 0.0
    %2920 = vmatpush1.xpose.msra.mxu0 0.0
    %2921 = vmatprep.subr.mxu0 0.0
    %2922 = vmatpush1.xpose.msra.mxu0 0.0
    %2923 = vmatprep.subr.mxu0 0.0
    %2924 = vmatpush1.xpose.msra.mxu0 0.0
    %2925 = vmatprep.subr.mxu0 0.0
    %2926 = vmatpush1.xpose.msra.mxu0 0.0
    %2927 = vmatprep.subr.mxu0 0.0
    %2928 = vmatpush1.xpose.msra.mxu0 0.0
    %2929 = vmatprep.subr.mxu0 0.0
    %2930 = vmatpush1.xpose.msra.mxu0 0.0
    %2931 = vmatprep.subr.mxu0 0.0
    %2932 = vmatpush1.xpose.msra.mxu0 0.0
    %2933 = vmatprep.subr.mxu0 0.0
    %2934 = vmatpush1.xpose.msra.mxu0 0.0
    %2935 = vmatprep.subr.mxu0 0.0
    %2936 = vmatpush1.xpose.msra.mxu0 0.0
    %2937 = vmatprep.subr.mxu0 0.0
    %2938 = vmatpush1.xpose.msra.mxu0 0.0
    %2939 = vmatprep.subr.mxu0 0.0
    %2940 = vmatpush1.xpose.msra.mxu0 0.0
    %2941 = vmatprep.subr.mxu0 0.0
    %2942 = vmatpush1.xpose.msra.mxu0 0.0
    %2943 = vmatprep.subr.mxu0 0.0
    %2944 = vmatpush1.xpose.msra.mxu0 0.0
    %2945 = vmatprep.subr.mxu0 0.0
    %2946 = vmatpush1.xpose.msra.mxu0 0.0
    %2947 = vmatprep.subr.mxu0 0.0
    %2948 = vmatpush1.xpose.msra.mxu0 0.0
    %2949 = vmatprep.subr.mxu0 0.0
    %2950 = vmatpush1.xpose.msra.mxu0 0.0
    %2951 = vmatprep.subr.mxu0 0.0
    %2952 = vmatpush1.xpose.msra.mxu0 0.0
    %2953 = vmatprep.subr.mxu0 0.0
    %2954 = vmatpush1.xpose.msra.mxu0 0.0
    %2955 = vmatprep.subr.mxu0 0.0
    %2956 = vmatpush1.xpose.msra.mxu0 0.0
    %2957 = vmatprep.subr.mxu0 0.0
    %2958 = vmatpush1.xpose.msra.mxu0 0.0
    %2959 = vmatprep.subr.mxu0 0.0
    %2960 = vmatpush1.xpose.msra.mxu0 0.0
    %2961 = vmatprep.subr.mxu0 0.0
    %2962 = vmatpush1.xpose.msra.mxu0 0.0
    %2963 = vmatprep.subr.mxu0 0.0
    %2964 = vmatpush1.xpose.msra.mxu0 0.0
    %2965 = vmatprep.subr.mxu0 0.0
    %2966 = vmatpush1.xpose.msra.mxu0 0.0
    %2967 = vmatprep.subr.mxu0 0.0
    %2968 = vmatpush1.xpose.msra.mxu0 0.0
    %2969 = vmatprep.subr.mxu0 0.0
    %2970 = vmatpush1.xpose.msra.mxu0 0.0
    %2971 = vmatprep.subr.mxu0 0.0
    %2972 = vmatpush1.xpose.msra.mxu0 0.0
    %2973 = vmatprep.subr.mxu0 0.0
    %2974 = vmatpush1.xpose.msra.mxu0 0.0
    %2975 = vmatprep.subr.mxu0 0.0
    %2976 = vmatpush1.xpose.msra.mxu0 0.0
    %2977 = vmatprep.mubr.f32.mxu0 0.0
    %2978 = vmatmul.mubr.f32.gmra.mrb[0].mxu0 %v2909
    %v2979 = vpop.f32.mrb[0].mxu0
    %v2980 = vadd.f32 0.0, %v2979
    %v2981 = vpop.f32.mrb[0].mxu0
    %2982 = vdwg.mxu0
    %v2983 = vmul.f32 %v2980, 0.25
    %v2984 = vadd.f32 %v2983, %v553
    %v2985 = vsel %vm635, %v2984, -inf
    %2986 = vmax.xlane.f32.xlu0 %v2985
    %v2987 = vpop.xlane.xlu0 %2986
    %v2988 = vsub.f32 %v2984, %v2987
    %v2989 = vmul.f32 %v2988, 1.442695
    %v2990 = vpow.pop %v2989
    %v2991 = vsel %vm635, %v2990, 0.0
    %2992 = vadd.xlane.f32.xlu0 %v2991
    %v2993 = vpop.xlane.xlu0 %2992
    %v2994 = vrcp.pop %v2993
    %v2995 = vmul.f32 %v2990, %v2994
    %2996 = vrot.lane.b32.xlu0 %v2375, 96
    %v2997 = vpop.permute.xlu0 %2996
    %v3000 = vsel %vm635, %v2995, 0
    %3002 = vmatprep.subr.mxu0 0.0
    %3003 = vmatpush1.msra.mxu0 %v2997
    %3004 = vmatprep.subr.mxu0 0.0
    %3005 = vmatpush1.msra.mxu0 0.0
    %3006 = vmatprep.subr.mxu0 0.0
    %3007 = vmatpush1.msra.mxu0 0.0
    %3008 = vmatprep.subr.mxu0 0.0
    %3009 = vmatpush1.msra.mxu0 0.0
    %3010 = vmatprep.subr.mxu0 0.0
    %3011 = vmatpush1.msra.mxu0 0.0
    %3012 = vmatprep.subr.mxu0 0.0
    %3013 = vmatpush1.msra.mxu0 0.0
    %3014 = vmatprep.subr.mxu0 0.0
    %3015 = vmatpush1.msra.mxu0 0.0
    %3016 = vmatprep.subr.mxu0 0.0
    %3017 = vmatpush1.msra.mxu0 0.0
    %3018 = vmatprep.subr.mxu0 0.0
    %3019 = vmatpush1.msra.mxu0 0.0
    %3020 = vmatprep.subr.mxu0 0.0
    %3021 = vmatpush1.msra.mxu0 0.0
    %3022 = vmatprep.subr.mxu0 0.0
    %3023 = vmatpush1.msra.mxu0 0.0
    %3024 = vmatprep.subr.mxu0 0.0
    %3025 = vmatpush1.msra.mxu0 0.0
    %3026 = vmatprep.subr.mxu0 0.0
    %3027 = vmatpush1.msra.mxu0 0.0
    %3028 = vmatprep.subr.mxu0 0.0
    %3029 = vmatpush1.msra.mxu0 0.0
    %3030 = vmatprep.subr.mxu0 0.0
    %3031 = vmatpush1.msra.mxu0 0.0
    %3032 = vmatprep.subr.mxu0 0.0
    %3033 = vmatpush1.msra.mxu0 0.0
    %3034 = vmatprep.subr.mxu0 0.0
    %3035 = vmatpush1.msra.mxu0 0.0
    %3036 = vmatprep.subr.mxu0 0.0
    %3037 = vmatpush1.msra.mxu0 0.0
    %3038 = vmatprep.subr.mxu0 0.0
    %3039 = vmatpush1.msra.mxu0 0.0
    %3040 = vmatprep.subr.mxu0 0.0
    %3041 = vmatpush1.msra.mxu0 0.0
    %3042 = vmatprep.subr.mxu0 0.0
    %3043 = vmatpush1.msra.mxu0 0.0
    %3044 = vmatprep.subr.mxu0 0.0
    %3045 = vmatpush1.msra.mxu0 0.0
    %3046 = vmatprep.subr.mxu0 0.0
    %3047 = vmatpush1.msra.mxu0 0.0
    %3048 = vmatprep.subr.mxu0 0.0
    %3049 = vmatpush1.msra.mxu0 0.0
    %3050 = vmatprep.subr.mxu0 0.0
    %3051 = vmatpush1.msra.mxu0 0.0
    %3052 = vmatprep.subr.mxu0 0.0
    %3053 = vmatpush1.msra.mxu0 0.0
    %3054 = vmatprep.subr.mxu0 0.0
    %3055 = vmatpush1.msra.mxu0 0.0
    %3056 = vmatprep.subr.mxu0 0.0
    %3057 = vmatpush1.msra.mxu0 0.0
    %3058 = vmatprep.subr.mxu0 0.0
    %3059 = vmatpush1.msra.mxu0 0.0
    %3060 = vmatprep.subr.mxu0 0.0
    %3061 = vmatpush1.msra.mxu0 0.0
    %3062 = vmatprep.subr.mxu0 0.0
    %3063 = vmatpush1.msra.mxu0 0.0
    %3064 = vmatprep.subr.mxu0 0.0
    %3065 = vmatpush1.msra.mxu0 0.0
    %3066 = vmatprep.mubr.f32.mxu0 0.0
    %3067 = vmatmul.mubr.f32.gmra.mrb[0].mxu0 %v3000
    %v3068 = vpop.f32.mrb[0].mxu0
    %v3069 = vadd.f32 0.0, %v3068
    %v3070 = vpop.f32.mrb[0].mxu0
    %3071 = vdwg.mxu0
    %3073 = vrot.lane.b32.xlu0 %v3069, 32
    %v3074 = vpop.permute.xlu0 %3073
    %3076 = vst.msk [vmem:[#allocation2] sm:$0xff] %vm1066, %v3074
    %3077 = vrot.lane.b32.xlu0 %v2468, 80
    %v3078 = vpop.permute.xlu0 %3077
    %3079 = vrot.lane.b32.xlu0 %v2565, 16
    %v3080 = vpop.permute.xlu0 %3079
    %v3081 = vsel %vm557, %v3078, 0
    %v3083 = vsel %vm557, %v3080, 0
    %3085 = vmatprep.subr.mxu0 0.0
    %3086 = vmatpush1.xpose.msra.mxu0 %v3083
    %3087 = vmatprep.subr.mxu0 0.0
    %3088 = vmatpush1.xpose.msra.mxu0 0.0
    %3089 = vmatprep.subr.mxu0 0.0
    %3090 = vmatpush1.xpose.msra.mxu0 0.0
    %3091 = vmatprep.subr.mxu0 0.0
    %3092 = vmatpush1.xpose.msra.mxu0 0.0
    %3093 = vmatprep.subr.mxu0 0.0
    %3094 = vmatpush1.xpose.msra.mxu0 0.0
    %3095 = vmatprep.subr.mxu0 0.0
    %3096 = vmatpush1.xpose.msra.mxu0 0.0
    %3097 = vmatprep.subr.mxu0 0.0
    %3098 = vmatpush1.xpose.msra.mxu0 0.0
    %3099 = vmatprep.subr.mxu0 0.0
    %3100 = vmatpush1.xpose.msra.mxu0 0.0
    %3101 = vmatprep.subr.mxu0 0.0
    %3102 = vmatpush1.xpose.msra.mxu0 0.0
    %3103 = vmatprep.subr.mxu0 0.0
    %3104 = vmatpush1.xpose.msra.mxu0 0.0
    %3105 = vmatprep.subr.mxu0 0.0
    %3106 = vmatpush1.xpose.msra.mxu0 0.0
    %3107 = vmatprep.subr.mxu0 0.0
    %3108 = vmatpush1.xpose.msra.mxu0 0.0
    %3109 = vmatprep.subr.mxu0 0.0
    %3110 = vmatpush1.xpose.msra.mxu0 0.0
    %3111 = vmatprep.subr.mxu0 0.0
    %3112 = vmatpush1.xpose.msra.mxu0 0.0
    %3113 = vmatprep.subr.mxu0 0.0
    %3114 = vmatpush1.xpose.msra.mxu0 0.0
    %3115 = vmatprep.subr.mxu0 0.0
    %3116 = vmatpush1.xpose.msra.mxu0 0.0
    %3117 = vmatprep.subr.mxu0 0.0
    %3118 = vmatpush1.xpose.msra.mxu0 0.0
    %3119 = vmatprep.subr.mxu0 0.0
    %3120 = vmatpush1.xpose.msra.mxu0 0.0
    %3121 = vmatprep.subr.mxu0 0.0
    %3122 = vmatpush1.xpose.msra.mxu0 0.0
    %3123 = vmatprep.subr.mxu0 0.0
    %3124 = vmatpush1.xpose.msra.mxu0 0.0
    %3125 = vmatprep.subr.mxu0 0.0
    %3126 = vmatpush1.xpose.msra.mxu0 0.0
    %3127 = vmatprep.subr.mxu0 0.0
    %3128 = vmatpush1.xpose.msra.mxu0 0.0
    %3129 = vmatprep.subr.mxu0 0.0
    %3130 = vmatpush1.xpose.msra.mxu0 0.0
    %3131 = vmatprep.subr.mxu0 0.0
    %3132 = vmatpush1.xpose.msra.mxu0 0.0
    %3133 = vmatprep.subr.mxu0 0.0
    %3134 = vmatpush1.xpose.msra.mxu0 0.0
    %3135 = vmatprep.subr.mxu0 0.0
    %3136 = vmatpush1.xpose.msra.mxu0 0.0
    %3137 = vmatprep.subr.mxu0 0.0
    %3138 = vmatpush1.xpose.msra.mxu0 0.0
    %3139 = vmatprep.subr.mxu0 0.0
    %3140 = vmatpush1.xpose.msra.mxu0 0.0
    %3141 = vmatprep.subr.mxu0 0.0
    %3142 = vmatpush1.xpose.msra.mxu0 0.0
    %3143 = vmatprep.subr.mxu0 0.0
    %3144 = vmatpush1.xpose.msra.mxu0 0.0
    %3145 = vmatprep.subr.mxu0 0.0
    %3146 = vmatpush1.xpose.msra.mxu0 0.0
    %3147 = vmatprep.subr.mxu0 0.0
    %3148 = vmatpush1.xpose.msra.mxu0 0.0
    %3149 = vmatprep.mubr.f32.mxu0 0.0
    %3150 = vmatmul.mubr.f32.gmra.mrb[0].mxu0 %v3081
    %v3151 = vpop.f32.mrb[0].mxu0
    %v3152 = vadd.f32 0.0, %v3151
    %v3153 = vpop.f32.mrb[0].mxu0
    %3154 = vdwg.mxu0
    %v3155 = vmul.f32 %v3152, 0.25
    %v3156 = vadd.f32 %v3155, %v553
    %v3157 = vsel %vm635, %v3156, -inf
    %3158 = vmax.xlane.f32.xlu0 %v3157
    %v3159 = vpop.xlane.xlu0 %3158
    %v3160 = vsub.f32 %v3156, %v3159
    %v3161 = vmul.f32 %v3160, 1.442695
    %v3162 = vpow.pop %v3161
    %v3163 = vsel %vm635, %v3162, 0.0
    %3164 = vadd.xlane.f32.xlu0 %v3163
    %v3165 = vpop.xlane.xlu0 %3164
    %v3166 = vrcp.pop %v3165
    %v3167 = vmul.f32 %v3162, %v3166
    %3168 = vrot.lane.b32.xlu0 %v2375, 80
    %v3169 = vpop.permute.xlu0 %3168
    %v3172 = vsel %vm635, %v3167, 0
    %3174 = vmatprep.subr.mxu0 0.0
    %3175 = vmatpush1.msra.mxu0 %v3169
    %3176 = vmatprep.subr.mxu0 0.0
    %3177 = vmatpush1.msra.mxu0 0.0
    %3178 = vmatprep.subr.mxu0 0.0
    %3179 = vmatpush1.msra.mxu0 0.0
    %3180 = vmatprep.subr.mxu0 0.0
    %3181 = vmatpush1.msra.mxu0 0.0
    %3182 = vmatprep.subr.mxu0 0.0
    %3183 = vmatpush1.msra.mxu0 0.0
    %3184 = vmatprep.subr.mxu0 0.0
    %3185 = vmatpush1.msra.mxu0 0.0
    %3186 = vmatprep.subr.mxu0 0.0
    %3187 = vmatpush1.msra.mxu0 0.0
    %3188 = vmatprep.subr.mxu0 0.0
    %3189 = vmatpush1.msra.mxu0 0.0
    %3190 = vmatprep.subr.mxu0 0.0
    %3191 = vmatpush1.msra.mxu0 0.0
    %3192 = vmatprep.subr.mxu0 0.0
    %3193 = vmatpush1.msra.mxu0 0.0
    %3194 = vmatprep.subr.mxu0 0.0
    %3195 = vmatpush1.msra.mxu0 0.0
    %3196 = vmatprep.subr.mxu0 0.0
    %3197 = vmatpush1.msra.mxu0 0.0
    %3198 = vmatprep.subr.mxu0 0.0
    %3199 = vmatpush1.msra.mxu0 0.0
    %3200 = vmatprep.subr.mxu0 0.0
    %3201 = vmatpush1.msra.mxu0 0.0
    %3202 = vmatprep.subr.mxu0 0.0
    %3203 = vmatpush1.msra.mxu0 0.0
    %3204 = vmatprep.subr.mxu0 0.0
    %3205 = vmatpush1.msra.mxu0 0.0
    %3206 = vmatprep.subr.mxu0 0.0
    %3207 = vmatpush1.msra.mxu0 0.0
    %3208 = vmatprep.subr.mxu0 0.0
    %3209 = vmatpush1.msra.mxu0 0.0
    %3210 = vmatprep.subr.mxu0 0.0
    %3211 = vmatpush1.msra.mxu0 0.0
    %3212 = vmatprep.subr.mxu0 0.0
    %3213 = vmatpush1.msra.mxu0 0.0
    %3214 = vmatprep.subr.mxu0 0.0
    %3215 = vmatpush1.msra.mxu0 0.0
    %3216 = vmatprep.subr.mxu0 0.0
    %3217 = vmatpush1.msra.mxu0 0.0
    %3218 = vmatprep.subr.mxu0 0.0
    %3219 = vmatpush1.msra.mxu0 0.0
    %3220 = vmatprep.subr.mxu0 0.0
    %3221 = vmatpush1.msra.mxu0 0.0
    %3222 = vmatprep.subr.mxu0 0.0
    %3223 = vmatpush1.msra.mxu0 0.0
    %3224 = vmatprep.subr.mxu0 0.0
    %3225 = vmatpush1.msra.mxu0 0.0
    %3226 = vmatprep.subr.mxu0 0.0
    %3227 = vmatpush1.msra.mxu0 0.0
    %3228 = vmatprep.subr.mxu0 0.0
    %3229 = vmatpush1.msra.mxu0 0.0
    %3230 = vmatprep.subr.mxu0 0.0
    %3231 = vmatpush1.msra.mxu0 0.0
    %3232 = vmatprep.subr.mxu0 0.0
    %3233 = vmatpush1.msra.mxu0 0.0
    %3234 = vmatprep.subr.mxu0 0.0
    %3235 = vmatpush1.msra.mxu0 0.0
    %3236 = vmatprep.subr.mxu0 0.0
    %3237 = vmatpush1.msra.mxu0 0.0
    %3238 = vmatprep.mubr.f32.mxu0 0.0
    %3239 = vmatmul.mubr.f32.gmra.mrb[0].mxu0 %v3172
    %v3240 = vpop.f32.mrb[0].mxu0
    %v3241 = vadd.f32 0.0, %v3240
    %v3242 = vpop.f32.mrb[0].mxu0
    %3243 = vdwg.mxu0
    %3245 = vrot.lane.b32.xlu0 %v3241, 48
    %v3246 = vpop.permute.xlu0 %3245
    %3248 = vst.msk [vmem:[#allocation2] sm:$0xff] %vm1239, %v3246
    %3250 = vrot.lane.b32.xlu0 %v2566, 64
    %v3251 = vpop.permute.xlu0 %3250
    %v3253 = vsel %vm557, %v2469, 0
    %v3255 = vsel %vm557, %v3251, 0
    %3257 = vmatprep.subr.mxu0 0.0
    %3258 = vmatpush1.xpose.msra.mxu0 %v3255
    %3259 = vmatprep.subr.mxu0 0.0
    %3260 = vmatpush1.xpose.msra.mxu0 0.0
    %3261 = vmatprep.subr.mxu0 0.0
    %3262 = vmatpush1.xpose.msra.mxu0 0.0
    %3263 = vmatprep.subr.mxu0 0.0
    %3264 = vmatpush1.xpose.msra.mxu0 0.0
    %3265 = vmatprep.subr.mxu0 0.0
    %3266 = vmatpush1.xpose.msra.mxu0 0.0
    %3267 = vmatprep.subr.mxu0 0.0
    %3268 = vmatpush1.xpose.msra.mxu0 0.0
    %3269 = vmatprep.subr.mxu0 0.0
    %3270 = vmatpush1.xpose.msra.mxu0 0.0
    %3271 = vmatprep.subr.mxu0 0.0
    %3272 = vmatpush1.xpose.msra.mxu0 0.0
    %3273 = vmatprep.subr.mxu0 0.0
    %3274 = vmatpush1.xpose.msra.mxu0 0.0
    %3275 = vmatprep.subr.mxu0 0.0
    %3276 = vmatpush1.xpose.msra.mxu0 0.0
    %3277 = vmatprep.subr.mxu0 0.0
    %3278 = vmatpush1.xpose.msra.mxu0 0.0
    %3279 = vmatprep.subr.mxu0 0.0
    %3280 = vmatpush1.xpose.msra.mxu0 0.0
    %3281 = vmatprep.subr.mxu0 0.0
    %3282 = vmatpush1.xpose.msra.mxu0 0.0
    %3283 = vmatprep.subr.mxu0 0.0
    %3284 = vmatpush1.xpose.msra.mxu0 0.0
    %3285 = vmatprep.subr.mxu0 0.0
    %3286 = vmatpush1.xpose.msra.mxu0 0.0
    %3287 = vmatprep.subr.mxu0 0.0
    %3288 = vmatpush1.xpose.msra.mxu0 0.0
    %3289 = vmatprep.subr.mxu0 0.0
    %3290 = vmatpush1.xpose.msra.mxu0 0.0
    %3291 = vmatprep.subr.mxu0 0.0
    %3292 = vmatpush1.xpose.msra.mxu0 0.0
    %3293 = vmatprep.subr.mxu0 0.0
    %3294 = vmatpush1.xpose.msra.mxu0 0.0
    %3295 = vmatprep.subr.mxu0 0.0
    %3296 = vmatpush1.xpose.msra.mxu0 0.0
    %3297 = vmatprep.subr.mxu0 0.0
    %3298 = vmatpush1.xpose.msra.mxu0 0.0
    %3299 = vmatprep.subr.mxu0 0.0
    %3300 = vmatpush1.xpose.msra.mxu0 0.0
    %3301 = vmatprep.subr.mxu0 0.0
    %3302 = vmatpush1.xpose.msra.mxu0 0.0
    %3303 = vmatprep.subr.mxu0 0.0
    %3304 = vmatpush1.xpose.msra.mxu0 0.0
    %3305 = vmatprep.subr.mxu0 0.0
    %3306 = vmatpush1.xpose.msra.mxu0 0.0
    %3307 = vmatprep.subr.mxu0 0.0
    %3308 = vmatpush1.xpose.msra.mxu0 0.0
    %3309 = vmatprep.subr.mxu0 0.0
    %3310 = vmatpush1.xpose.msra.mxu0 0.0
    %3311 = vmatprep.subr.mxu0 0.0
    %3312 = vmatpush1.xpose.msra.mxu0 0.0
    %3313 = vmatprep.subr.mxu0 0.0
    %3314 = vmatpush1.xpose.msra.mxu0 0.0
    %3315 = vmatprep.subr.mxu0 0.0
    %3316 = vmatpush1.xpose.msra.mxu0 0.0
    %3317 = vmatprep.subr.mxu0 0.0
    %3318 = vmatpush1.xpose.msra.mxu0 0.0
    %3319 = vmatprep.subr.mxu0 0.0
    %3320 = vmatpush1.xpose.msra.mxu0 0.0
    %3321 = vmatprep.mubr.f32.mxu0 0.0
    %3322 = vmatmul.mubr.f32.gmra.mrb[0].mxu0 %v3253
    %v3323 = vpop.f32.mrb[0].mxu0
    %v3324 = vadd.f32 0.0, %v3323
    %v3325 = vpop.f32.mrb[0].mxu0
    %3326 = vdwg.mxu0
    %v3327 = vmul.f32 %v3324, 0.25
    %v3328 = vadd.f32 %v3327, %v1247
    %v3329 = vsel %vm635, %v3328, -inf
    %3330 = vmax.xlane.f32.xlu0 %v3329
    %v3331 = vpop.xlane.xlu0 %3330
    %v3332 = vsub.f32 %v3328, %v3331
    %v3333 = vmul.f32 %v3332, 1.442695
    %v3334 = vpow.pop %v3333
    %v3335 = vsel %vm635, %v3334, 0.0
    %3336 = vadd.xlane.f32.xlu0 %v3335
    %v3337 = vpop.xlane.xlu0 %3336
    %v3338 = vrcp.pop %v3337
    %v3339 = vmul.f32 %v3334, %v3338
    %v3341 = vsel %vm635, %v3339, 0
    %3343 = vmatprep.subr.mxu0 0.0
    %3344 = vmatpush1.msra.mxu0 %v2381
    %3345 = vmatprep.subr.mxu0 0.0
    %3346 = vmatpush1.msra.mxu0 0.0
    %3347 = vmatprep.subr.mxu0 0.0
    %3348 = vmatpush1.msra.mxu0 0.0
    %3349 = vmatprep.subr.mxu0 0.0
    %3350 = vmatpush1.msra.mxu0 0.0
    %3351 = vmatprep.subr.mxu0 0.0
    %3352 = vmatpush1.msra.mxu0 0.0
    %3353 = vmatprep.subr.mxu0 0.0
    %3354 = vmatpush1.msra.mxu0 0.0
    %3355 = vmatprep.subr.mxu0 0.0
    %3356 = vmatpush1.msra.mxu0 0.0
    %3357 = vmatprep.subr.mxu0 0.0
    %3358 = vmatpush1.msra.mxu0 0.0
    %3359 = vmatprep.subr.mxu0 0.0
    %3360 = vmatpush1.msra.mxu0 0.0
    %3361 = vmatprep.subr.mxu0 0.0
    %3362 = vmatpush1.msra.mxu0 0.0
    %3363 = vmatprep.subr.mxu0 0.0
    %3364 = vmatpush1.msra.mxu0 0.0
    %3365 = vmatprep.subr.mxu0 0.0
    %3366 = vmatpush1.msra.mxu0 0.0
    %3367 = vmatprep.subr.mxu0 0.0
    %3368 = vmatpush1.msra.mxu0 0.0
    %3369 = vmatprep.subr.mxu0 0.0
    %3370 = vmatpush1.msra.mxu0 0.0
    %3371 = vmatprep.subr.mxu0 0.0
    %3372 = vmatpush1.msra.mxu0 0.0
    %3373 = vmatprep.subr.mxu0 0.0
    %3374 = vmatpush1.msra.mxu0 0.0
    %3375 = vmatprep.subr.mxu0 0.0
    %3376 = vmatpush1.msra.mxu0 0.0
    %3377 = vmatprep.subr.mxu0 0.0
    %3378 = vmatpush1.msra.mxu0 0.0
    %3379 = vmatprep.subr.mxu0 0.0
    %3380 = vmatpush1.msra.mxu0 0.0
    %3381 = vmatprep.subr.mxu0 0.0
    %3382 = vmatpush1.msra.mxu0 0.0
    %3383 = vmatprep.subr.mxu0 0.0
    %3384 = vmatpush1.msra.mxu0 0.0
    %3385 = vmatprep.subr.mxu0 0.0
    %3386 = vmatpush1.msra.mxu0 0.0
    %3387 = vmatprep.subr.mxu0 0.0
    %3388 = vmatpush1.msra.mxu0 0.0
    %3389 = vmatprep.subr.mxu0 0.0
    %3390 = vmatpush1.msra.mxu0 0.0
    %3391 = vmatprep.subr.mxu0 0.0
    %3392 = vmatpush1.msra.mxu0 0.0
    %3393 = vmatprep.subr.mxu0 0.0
    %3394 = vmatpush1.msra.mxu0 0.0
    %3395 = vmatprep.subr.mxu0 0.0
    %3396 = vmatpush1.msra.mxu0 0.0
    %3397 = vmatprep.subr.mxu0 0.0
    %3398 = vmatpush1.msra.mxu0 0.0
    %3399 = vmatprep.subr.mxu0 0.0
    %3400 = vmatpush1.msra.mxu0 0.0
    %3401 = vmatprep.subr.mxu0 0.0
    %3402 = vmatpush1.msra.mxu0 0.0
    %3403 = vmatprep.subr.mxu0 0.0
    %3404 = vmatpush1.msra.mxu0 0.0
    %3405 = vmatprep.subr.mxu0 0.0
    %3406 = vmatpush1.msra.mxu0 0.0
    %3407 = vmatprep.mubr.f32.mxu0 0.0
    %3408 = vmatmul.mubr.f32.gmra.mrb[0].mxu0 %v3341
    %v3409 = vpop.f32.mrb[0].mxu0
    %v3410 = vadd.f32 0.0, %v3409
    %v3411 = vpop.f32.mrb[0].mxu0
    %3412 = vdwg.mxu0
    %3413 = vst.msk [vmem:[#allocation2 + $0x8] sm:$0xff] %vm557, %v3410
    %3414 = vrot.lane.b32.xlu0 %v2469, 112
    %v3415 = vpop.permute.xlu0 %3414
    %3416 = vrot.lane.b32.xlu0 %v2566, 48
    %v3417 = vpop.permute.xlu0 %3416
    %v3418 = vsel %vm557, %v3415, 0
    %v3420 = vsel %vm557, %v3417, 0
    %3422 = vmatprep.subr.mxu0 0.0
    %3423 = vmatpush1.xpose.msra.mxu0 %v3420
    %3424 = vmatprep.subr.mxu0 0.0
    %3425 = vmatpush1.xpose.msra.mxu0 0.0
    %3426 = vmatprep.subr.mxu0 0.0
    %3427 = vmatpush1.xpose.msra.mxu0 0.0
    %3428 = vmatprep.subr.mxu0 0.0
    %3429 = vmatpush1.xpose.msra.mxu0 0.0
    %3430 = vmatprep.subr.mxu0 0.0
    %3431 = vmatpush1.xpose.msra.mxu0 0.0
    %3432 = vmatprep.subr.mxu0 0.0
    %3433 = vmatpush1.xpose.msra.mxu0 0.0
    %3434 = vmatprep.subr.mxu0 0.0
    %3435 = vmatpush1.xpose.msra.mxu0 0.0
    %3436 = vmatprep.subr.mxu0 0.0
    %3437 = vmatpush1.xpose.msra.mxu0 0.0
    %3438 = vmatprep.subr.mxu0 0.0
    %3439 = vmatpush1.xpose.msra.mxu0 0.0
    %3440 = vmatprep.subr.mxu0 0.0
    %3441 = vmatpush1.xpose.msra.mxu0 0.0
    %3442 = vmatprep.subr.mxu0 0.0
    %3443 = vmatpush1.xpose.msra.mxu0 0.0
    %3444 = vmatprep.subr.mxu0 0.0
    %3445 = vmatpush1.xpose.msra.mxu0 0.0
    %3446 = vmatprep.subr.mxu0 0.0
    %3447 = vmatpush1.xpose.msra.mxu0 0.0
    %3448 = vmatprep.subr.mxu0 0.0
    %3449 = vmatpush1.xpose.msra.mxu0 0.0
    %3450 = vmatprep.subr.mxu0 0.0
    %3451 = vmatpush1.xpose.msra.mxu0 0.0
    %3452 = vmatprep.subr.mxu0 0.0
    %3453 = vmatpush1.xpose.msra.mxu0 0.0
    %3454 = vmatprep.subr.mxu0 0.0
    %3455 = vmatpush1.xpose.msra.mxu0 0.0
    %3456 = vmatprep.subr.mxu0 0.0
    %3457 = vmatpush1.xpose.msra.mxu0 0.0
    %3458 = vmatprep.subr.mxu0 0.0
    %3459 = vmatpush1.xpose.msra.mxu0 0.0
    %3460 = vmatprep.subr.mxu0 0.0
    %3461 = vmatpush1.xpose.msra.mxu0 0.0
    %3462 = vmatprep.subr.mxu0 0.0
    %3463 = vmatpush1.xpose.msra.mxu0 0.0
    %3464 = vmatprep.subr.mxu0 0.0
    %3465 = vmatpush1.xpose.msra.mxu0 0.0
    %3466 = vmatprep.subr.mxu0 0.0
    %3467 = vmatpush1.xpose.msra.mxu0 0.0
    %3468 = vmatprep.subr.mxu0 0.0
    %3469 = vmatpush1.xpose.msra.mxu0 0.0
    %3470 = vmatprep.subr.mxu0 0.0
    %3471 = vmatpush1.xpose.msra.mxu0 0.0
    %3472 = vmatprep.subr.mxu0 0.0
    %3473 = vmatpush1.xpose.msra.mxu0 0.0
    %3474 = vmatprep.subr.mxu0 0.0
    %3475 = vmatpush1.xpose.msra.mxu0 0.0
    %3476 = vmatprep.subr.mxu0 0.0
    %3477 = vmatpush1.xpose.msra.mxu0 0.0
    %3478 = vmatprep.subr.mxu0 0.0
    %3479 = vmatpush1.xpose.msra.mxu0 0.0
    %3480 = vmatprep.subr.mxu0 0.0
    %3481 = vmatpush1.xpose.msra.mxu0 0.0
    %3482 = vmatprep.subr.mxu0 0.0
    %3483 = vmatpush1.xpose.msra.mxu0 0.0
    %3484 = vmatprep.subr.mxu0 0.0
    %3485 = vmatpush1.xpose.msra.mxu0 0.0
    %3486 = vmatprep.mubr.f32.mxu0 0.0
    %3487 = vmatmul.mubr.f32.gmra.mrb[0].mxu0 %v3418
    %v3488 = vpop.f32.mrb[0].mxu0
    %v3489 = vadd.f32 0.0, %v3488
    %v3490 = vpop.f32.mrb[0].mxu0
    %3491 = vdwg.mxu0
    %v3492 = vmul.f32 %v3489, 0.25
    %v3493 = vadd.f32 %v3492, %v1247
    %v3494 = vsel %vm635, %v3493, -inf
    %3495 = vmax.xlane.f32.xlu0 %v3494
    %v3496 = vpop.xlane.xlu0 %3495
    %v3497 = vsub.f32 %v3493, %v3496
    %v3498 = vmul.f32 %v3497, 1.442695
    %v3499 = vpow.pop %v3498
    %v3500 = vsel %vm635, %v3499, 0.0
    %3501 = vadd.xlane.f32.xlu0 %v3500
    %v3502 = vpop.xlane.xlu0 %3501
    %v3503 = vrcp.pop %v3502
    %v3504 = vmul.f32 %v3499, %v3503
    %3506 = vrot.lane.b32.xlu0 %v2381, 112
    %v3507 = vpop.permute.xlu0 %3506
    %v3510 = vsel %vm635, %v3504, 0
    %3512 = vmatprep.subr.mxu0 0.0
    %3513 = vmatpush1.msra.mxu0 %v3507
    %3514 = vmatprep.subr.mxu0 0.0
    %3515 = vmatpush1.msra.mxu0 0.0
    %3516 = vmatprep.subr.mxu0 0.0
    %3517 = vmatpush1.msra.mxu0 0.0
    %3518 = vmatprep.subr.mxu0 0.0
    %3519 = vmatpush1.msra.mxu0 0.0
    %3520 = vmatprep.subr.mxu0 0.0
    %3521 = vmatpush1.msra.mxu0 0.0
    %3522 = vmatprep.subr.mxu0 0.0
    %3523 = vmatpush1.msra.mxu0 0.0
    %3524 = vmatprep.subr.mxu0 0.0
    %3525 = vmatpush1.msra.mxu0 0.0
    %3526 = vmatprep.subr.mxu0 0.0
    %3527 = vmatpush1.msra.mxu0 0.0
    %3528 = vmatprep.subr.mxu0 0.0
    %3529 = vmatpush1.msra.mxu0 0.0
    %3530 = vmatprep.subr.mxu0 0.0
    %3531 = vmatpush1.msra.mxu0 0.0
    %3532 = vmatprep.subr.mxu0 0.0
    %3533 = vmatpush1.msra.mxu0 0.0
    %3534 = vmatprep.subr.mxu0 0.0
    %3535 = vmatpush1.msra.mxu0 0.0
    %3536 = vmatprep.subr.mxu0 0.0
    %3537 = vmatpush1.msra.mxu0 0.0
    %3538 = vmatprep.subr.mxu0 0.0
    %3539 = vmatpush1.msra.mxu0 0.0
    %3540 = vmatprep.subr.mxu0 0.0
    %3541 = vmatpush1.msra.mxu0 0.0
    %3542 = vmatprep.subr.mxu0 0.0
    %3543 = vmatpush1.msra.mxu0 0.0
    %3544 = vmatprep.subr.mxu0 0.0
    %3545 = vmatpush1.msra.mxu0 0.0
    %3546 = vmatprep.subr.mxu0 0.0
    %3547 = vmatpush1.msra.mxu0 0.0
    %3548 = vmatprep.subr.mxu0 0.0
    %3549 = vmatpush1.msra.mxu0 0.0
    %3550 = vmatprep.subr.mxu0 0.0
    %3551 = vmatpush1.msra.mxu0 0.0
    %3552 = vmatprep.subr.mxu0 0.0
    %3553 = vmatpush1.msra.mxu0 0.0
    %3554 = vmatprep.subr.mxu0 0.0
    %3555 = vmatpush1.msra.mxu0 0.0
    %3556 = vmatprep.subr.mxu0 0.0
    %3557 = vmatpush1.msra.mxu0 0.0
    %3558 = vmatprep.subr.mxu0 0.0
    %3559 = vmatpush1.msra.mxu0 0.0
    %3560 = vmatprep.subr.mxu0 0.0
    %3561 = vmatpush1.msra.mxu0 0.0
    %3562 = vmatprep.subr.mxu0 0.0
    %3563 = vmatpush1.msra.mxu0 0.0
    %3564 = vmatprep.subr.mxu0 0.0
    %3565 = vmatpush1.msra.mxu0 0.0
    %3566 = vmatprep.subr.mxu0 0.0
    %3567 = vmatpush1.msra.mxu0 0.0
    %3568 = vmatprep.subr.mxu0 0.0
    %3569 = vmatpush1.msra.mxu0 0.0
    %3570 = vmatprep.subr.mxu0 0.0
    %3571 = vmatpush1.msra.mxu0 0.0
    %3572 = vmatprep.subr.mxu0 0.0
    %3573 = vmatpush1.msra.mxu0 0.0
    %3574 = vmatprep.subr.mxu0 0.0
    %3575 = vmatpush1.msra.mxu0 0.0
    %3576 = vmatprep.mubr.f32.mxu0 0.0
    %3577 = vmatmul.mubr.f32.gmra.mrb[0].mxu0 %v3510
    %v3578 = vpop.f32.mrb[0].mxu0
    %v3579 = vadd.f32 0.0, %v3578
    %v3580 = vpop.f32.mrb[0].mxu0
    %3581 = vdwg.mxu0
    %3583 = vrot.lane.b32.xlu0 %v3579, 16
    %v3584 = vpop.permute.xlu0 %3583
    %3586 = vst.msk [vmem:[#allocation2 + $0x8] sm:$0xff] %vm893, %v3584
    %3587 = vrot.lane.b32.xlu0 %v2469, 96
    %v3588 = vpop.permute.xlu0 %3587
    %3589 = vrot.lane.b32.xlu0 %v2566, 32
    %v3590 = vpop.permute.xlu0 %3589
    %v3591 = vsel %vm557, %v3588, 0
    %v3593 = vsel %vm557, %v3590, 0
    %3595 = vmatprep.subr.mxu0 0.0
    %3596 = vmatpush1.xpose.msra.mxu0 %v3593
    %3597 = vmatprep.subr.mxu0 0.0
    %3598 = vmatpush1.xpose.msra.mxu0 0.0
    %3599 = vmatprep.subr.mxu0 0.0
    %3600 = vmatpush1.xpose.msra.mxu0 0.0
    %3601 = vmatprep.subr.mxu0 0.0
    %3602 = vmatpush1.xpose.msra.mxu0 0.0
    %3603 = vmatprep.subr.mxu0 0.0
    %3604 = vmatpush1.xpose.msra.mxu0 0.0
    %3605 = vmatprep.subr.mxu0 0.0
    %3606 = vmatpush1.xpose.msra.mxu0 0.0
    %3607 = vmatprep.subr.mxu0 0.0
    %3608 = vmatpush1.xpose.msra.mxu0 0.0
    %3609 = vmatprep.subr.mxu0 0.0
    %3610 = vmatpush1.xpose.msra.mxu0 0.0
    %3611 = vmatprep.subr.mxu0 0.0
    %3612 = vmatpush1.xpose.msra.mxu0 0.0
    %3613 = vmatprep.subr.mxu0 0.0
    %3614 = vmatpush1.xpose.msra.mxu0 0.0
    %3615 = vmatprep.subr.mxu0 0.0
    %3616 = vmatpush1.xpose.msra.mxu0 0.0
    %3617 = vmatprep.subr.mxu0 0.0
    %3618 = vmatpush1.xpose.msra.mxu0 0.0
    %3619 = vmatprep.subr.mxu0 0.0
    %3620 = vmatpush1.xpose.msra.mxu0 0.0
    %3621 = vmatprep.subr.mxu0 0.0
    %3622 = vmatpush1.xpose.msra.mxu0 0.0
    %3623 = vmatprep.subr.mxu0 0.0
    %3624 = vmatpush1.xpose.msra.mxu0 0.0
    %3625 = vmatprep.subr.mxu0 0.0
    %3626 = vmatpush1.xpose.msra.mxu0 0.0
    %3627 = vmatprep.subr.mxu0 0.0
    %3628 = vmatpush1.xpose.msra.mxu0 0.0
    %3629 = vmatprep.subr.mxu0 0.0
    %3630 = vmatpush1.xpose.msra.mxu0 0.0
    %3631 = vmatprep.subr.mxu0 0.0
    %3632 = vmatpush1.xpose.msra.mxu0 0.0
    %3633 = vmatprep.subr.mxu0 0.0
    %3634 = vmatpush1.xpose.msra.mxu0 0.0
    %3635 = vmatprep.subr.mxu0 0.0
    %3636 = vmatpush1.xpose.msra.mxu0 0.0
    %3637 = vmatprep.subr.mxu0 0.0
    %3638 = vmatpush1.xpose.msra.mxu0 0.0
    %3639 = vmatprep.subr.mxu0 0.0
    %3640 = vmatpush1.xpose.msra.mxu0 0.0
    %3641 = vmatprep.subr.mxu0 0.0
    %3642 = vmatpush1.xpose.msra.mxu0 0.0
    %3643 = vmatprep.subr.mxu0 0.0
    %3644 = vmatpush1.xpose.msra.mxu0 0.0
    %3645 = vmatprep.subr.mxu0 0.0
    %3646 = vmatpush1.xpose.msra.mxu0 0.0
    %3647 = vmatprep.subr.mxu0 0.0
    %3648 = vmatpush1.xpose.msra.mxu0 0.0
    %3649 = vmatprep.subr.mxu0 0.0
    %3650 = vmatpush1.xpose.msra.mxu0 0.0
    %3651 = vmatprep.subr.mxu0 0.0
    %3652 = vmatpush1.xpose.msra.mxu0 0.0
    %3653 = vmatprep.subr.mxu0 0.0
    %3654 = vmatpush1.xpose.msra.mxu0 0.0
    %3655 = vmatprep.subr.mxu0 0.0
    %3656 = vmatpush1.xpose.msra.mxu0 0.0
    %3657 = vmatprep.subr.mxu0 0.0
    %3658 = vmatpush1.xpose.msra.mxu0 0.0
    %3659 = vmatprep.mubr.f32.mxu0 0.0
    %3660 = vmatmul.mubr.f32.gmra.mrb[0].mxu0 %v3591
    %v3661 = vpop.f32.mrb[0].mxu0
    %v3662 = vadd.f32 0.0, %v3661
    %v3663 = vpop.f32.mrb[0].mxu0
    %3664 = vdwg.mxu0
    %v3665 = vmul.f32 %v3662, 0.25
    %v3666 = vadd.f32 %v3665, %v1247
    %v3667 = vsel %vm635, %v3666, -inf
    %3668 = vmax.xlane.f32.xlu0 %v3667
    %v3669 = vpop.xlane.xlu0 %3668
    %v3670 = vsub.f32 %v3666, %v3669
    %v3671 = vmul.f32 %v3670, 1.442695
    %v3672 = vpow.pop %v3671
    %v3673 = vsel %vm635, %v3672, 0.0
    %3674 = vadd.xlane.f32.xlu0 %v3673
    %v3675 = vpop.xlane.xlu0 %3674
    %v3676 = vrcp.pop %v3675
    %v3677 = vmul.f32 %v3672, %v3676
    %3678 = vrot.lane.b32.xlu0 %v2381, 96
    %v3679 = vpop.permute.xlu0 %3678
    %v3682 = vsel %vm635, %v3677, 0
    %3684 = vmatprep.subr.mxu0 0.0
    %3685 = vmatpush1.msra.mxu0 %v3679
    %3686 = vmatprep.subr.mxu0 0.0
    %3687 = vmatpush1.msra.mxu0 0.0
    %3688 = vmatprep.subr.mxu0 0.0
    %3689 = vmatpush1.msra.mxu0 0.0
    %3690 = vmatprep.subr.mxu0 0.0
    %3691 = vmatpush1.msra.mxu0 0.0
    %3692 = vmatprep.subr.mxu0 0.0
    %3693 = vmatpush1.msra.mxu0 0.0
    %3694 = vmatprep.subr.mxu0 0.0
    %3695 = vmatpush1.msra.mxu0 0.0
    %3696 = vmatprep.subr.mxu0 0.0
    %3697 = vmatpush1.msra.mxu0 0.0
    %3698 = vmatprep.subr.mxu0 0.0
    %3699 = vmatpush1.msra.mxu0 0.0
    %3700 = vmatprep.subr.mxu0 0.0
    %3701 = vmatpush1.msra.mxu0 0.0
    %3702 = vmatprep.subr.mxu0 0.0
    %3703 = vmatpush1.msra.mxu0 0.0
    %3704 = vmatprep.subr.mxu0 0.0
    %3705 = vmatpush1.msra.mxu0 0.0
    %3706 = vmatprep.subr.mxu0 0.0
    %3707 = vmatpush1.msra.mxu0 0.0
    %3708 = vmatprep.subr.mxu0 0.0
    %3709 = vmatpush1.msra.mxu0 0.0
    %3710 = vmatprep.subr.mxu0 0.0
    %3711 = vmatpush1.msra.mxu0 0.0
    %3712 = vmatprep.subr.mxu0 0.0
    %3713 = vmatpush1.msra.mxu0 0.0
    %3714 = vmatprep.subr.mxu0 0.0
    %3715 = vmatpush1.msra.mxu0 0.0
    %3716 = vmatprep.subr.mxu0 0.0
    %3717 = vmatpush1.msra.mxu0 0.0
    %3718 = vmatprep.subr.mxu0 0.0
    %3719 = vmatpush1.msra.mxu0 0.0
    %3720 = vmatprep.subr.mxu0 0.0
    %3721 = vmatpush1.msra.mxu0 0.0
    %3722 = vmatprep.subr.mxu0 0.0
    %3723 = vmatpush1.msra.mxu0 0.0
    %3724 = vmatprep.subr.mxu0 0.0
    %3725 = vmatpush1.msra.mxu0 0.0
    %3726 = vmatprep.subr.mxu0 0.0
    %3727 = vmatpush1.msra.mxu0 0.0
    %3728 = vmatprep.subr.mxu0 0.0
    %3729 = vmatpush1.msra.mxu0 0.0
    %3730 = vmatprep.subr.mxu0 0.0
    %3731 = vmatpush1.msra.mxu0 0.0
    %3732 = vmatprep.subr.mxu0 0.0
    %3733 = vmatpush1.msra.mxu0 0.0
    %3734 = vmatprep.subr.mxu0 0.0
    %3735 = vmatpush1.msra.mxu0 0.0
    %3736 = vmatprep.subr.mxu0 0.0
    %3737 = vmatpush1.msra.mxu0 0.0
    %3738 = vmatprep.subr.mxu0 0.0
    %3739 = vmatpush1.msra.mxu0 0.0
    %3740 = vmatprep.subr.mxu0 0.0
    %3741 = vmatpush1.msra.mxu0 0.0
    %3742 = vmatprep.subr.mxu0 0.0
    %3743 = vmatpush1.msra.mxu0 0.0
    %3744 = vmatprep.subr.mxu0 0.0
    %3745 = vmatpush1.msra.mxu0 0.0
    %3746 = vmatprep.subr.mxu0 0.0
    %3747 = vmatpush1.msra.mxu0 0.0
    %3748 = vmatprep.mubr.f32.mxu0 0.0
    %3749 = vmatmul.mubr.f32.gmra.mrb[0].mxu0 %v3682
    %v3750 = vpop.f32.mrb[0].mxu0
    %v3751 = vadd.f32 0.0, %v3750
    %v3752 = vpop.f32.mrb[0].mxu0
    %3753 = vdwg.mxu0
    %3755 = vrot.lane.b32.xlu0 %v3751, 32
    %v3756 = vpop.permute.xlu0 %3755
    %3758 = vst.msk [vmem:[#allocation2 + $0x8] sm:$0xff] %vm1066, %v3756
    %3759 = vrot.lane.b32.xlu0 %v2469, 80
    %v3760 = vpop.permute.xlu0 %3759
    %3761 = vrot.lane.b32.xlu0 %v2566, 16
    %v3762 = vpop.permute.xlu0 %3761
    %v3763 = vsel %vm557, %v3760, 0
    %v3765 = vsel %vm557, %v3762, 0
    %3767 = vmatprep.subr.mxu0 0.0
    %3768 = vmatpush1.xpose.msra.mxu0 %v3765
    %3769 = vmatprep.subr.mxu0 0.0
    %3770 = vmatpush1.xpose.msra.mxu0 0.0
    %3771 = vmatprep.subr.mxu0 0.0
    %3772 = vmatpush1.xpose.msra.mxu0 0.0
    %3773 = vmatprep.subr.mxu0 0.0
    %3774 = vmatpush1.xpose.msra.mxu0 0.0
    %3775 = vmatprep.subr.mxu0 0.0
    %3776 = vmatpush1.xpose.msra.mxu0 0.0
    %3777 = vmatprep.subr.mxu0 0.0
    %3778 = vmatpush1.xpose.msra.mxu0 0.0
    %3779 = vmatprep.subr.mxu0 0.0
    %3780 = vmatpush1.xpose.msra.mxu0 0.0
    %3781 = vmatprep.subr.mxu0 0.0
    %3782 = vmatpush1.xpose.msra.mxu0 0.0
    %3783 = vmatprep.subr.mxu0 0.0
    %3784 = vmatpush1.xpose.msra.mxu0 0.0
    %3785 = vmatprep.subr.mxu0 0.0
    %3786 = vmatpush1.xpose.msra.mxu0 0.0
    %3787 = vmatprep.subr.mxu0 0.0
    %3788 = vmatpush1.xpose.msra.mxu0 0.0
    %3789 = vmatprep.subr.mxu0 0.0
    %3790 = vmatpush1.xpose.msra.mxu0 0.0
    %3791 = vmatprep.subr.mxu0 0.0
    %3792 = vmatpush1.xpose.msra.mxu0 0.0
    %3793 = vmatprep.subr.mxu0 0.0
    %3794 = vmatpush1.xpose.msra.mxu0 0.0
    %3795 = vmatprep.subr.mxu0 0.0
    %3796 = vmatpush1.xpose.msra.mxu0 0.0
    %3797 = vmatprep.subr.mxu0 0.0
    %3798 = vmatpush1.xpose.msra.mxu0 0.0
    %3799 = vmatprep.subr.mxu0 0.0
    %3800 = vmatpush1.xpose.msra.mxu0 0.0
    %3801 = vmatprep.subr.mxu0 0.0
    %3802 = vmatpush1.xpose.msra.mxu0 0.0
    %3803 = vmatprep.subr.mxu0 0.0
    %3804 = vmatpush1.xpose.msra.mxu0 0.0
    %3805 = vmatprep.subr.mxu0 0.0
    %3806 = vmatpush1.xpose.msra.mxu0 0.0
    %3807 = vmatprep.subr.mxu0 0.0
    %3808 = vmatpush1.xpose.msra.mxu0 0.0
    %3809 = vmatprep.subr.mxu0 0.0
    %3810 = vmatpush1.xpose.msra.mxu0 0.0
    %3811 = vmatprep.subr.mxu0 0.0
    %3812 = vmatpush1.xpose.msra.mxu0 0.0
    %3813 = vmatprep.subr.mxu0 0.0
    %3814 = vmatpush1.xpose.msra.mxu0 0.0
    %3815 = vmatprep.subr.mxu0 0.0
    %3816 = vmatpush1.xpose.msra.mxu0 0.0
    %3817 = vmatprep.subr.mxu0 0.0
    %3818 = vmatpush1.xpose.msra.mxu0 0.0
    %3819 = vmatprep.subr.mxu0 0.0
    %3820 = vmatpush1.xpose.msra.mxu0 0.0
    %3821 = vmatprep.subr.mxu0 0.0
    %3822 = vmatpush1.xpose.msra.mxu0 0.0
    %3823 = vmatprep.subr.mxu0 0.0
    %3824 = vmatpush1.xpose.msra.mxu0 0.0
    %3825 = vmatprep.subr.mxu0 0.0
    %3826 = vmatpush1.xpose.msra.mxu0 0.0
    %3827 = vmatprep.subr.mxu0 0.0
    %3828 = vmatpush1.xpose.msra.mxu0 0.0
    %3829 = vmatprep.subr.mxu0 0.0
    %3830 = vmatpush1.xpose.msra.mxu0 0.0
    %3831 = vmatprep.mubr.f32.mxu0 0.0
    %3832 = vmatmul.mubr.f32.gmra.mrb[0].mxu0 %v3763
    %v3833 = vpop.f32.mrb[0].mxu0
    %v3834 = vadd.f32 0.0, %v3833
    %v3835 = vpop.f32.mrb[0].mxu0
    %3836 = vdwg.mxu0
    %v3837 = vmul.f32 %v3834, 0.25
    %v3838 = vadd.f32 %v3837, %v1247
    %v3839 = vsel %vm635, %v3838, -inf
    %3840 = vmax.xlane.f32.xlu0 %v3839
    %v3841 = vpop.xlane.xlu0 %3840
    %v3842 = vsub.f32 %v3838, %v3841
    %v3843 = vmul.f32 %v3842, 1.442695
    %v3844 = vpow.pop %v3843
    %v3845 = vsel %vm635, %v3844, 0.0
    %3846 = vadd.xlane.f32.xlu0 %v3845
    %v3847 = vpop.xlane.xlu0 %3846
    %v3848 = vrcp.pop %v3847
    %v3849 = vmul.f32 %v3844, %v3848
    %3850 = vrot.lane.b32.xlu0 %v2381, 80
    %v3851 = vpop.permute.xlu0 %3850
    %v3854 = vsel %vm635, %v3849, 0
    %3856 = vmatprep.subr.mxu0 0.0
    %3857 = vmatpush1.msra.mxu0 %v3851
    %3858 = vmatprep.subr.mxu0 0.0
    %3859 = vmatpush1.msra.mxu0 0.0
    %3860 = vmatprep.subr.mxu0 0.0
    %3861 = vmatpush1.msra.mxu0 0.0
    %3862 = vmatprep.subr.mxu0 0.0
    %3863 = vmatpush1.msra.mxu0 0.0
    %3864 = vmatprep.subr.mxu0 0.0
    %3865 = vmatpush1.msra.mxu0 0.0
    %3866 = vmatprep.subr.mxu0 0.0
    %3867 = vmatpush1.msra.mxu0 0.0
    %3868 = vmatprep.subr.mxu0 0.0
    %3869 = vmatpush1.msra.mxu0 0.0
    %3870 = vmatprep.subr.mxu0 0.0
    %3871 = vmatpush1.msra.mxu0 0.0
    %3872 = vmatprep.subr.mxu0 0.0
    %3873 = vmatpush1.msra.mxu0 0.0
    %3874 = vmatprep.subr.mxu0 0.0
    %3875 = vmatpush1.msra.mxu0 0.0
    %3876 = vmatprep.subr.mxu0 0.0
    %3877 = vmatpush1.msra.mxu0 0.0
    %3878 = vmatprep.subr.mxu0 0.0
    %3879 = vmatpush1.msra.mxu0 0.0
    %3880 = vmatprep.subr.mxu0 0.0
    %3881 = vmatpush1.msra.mxu0 0.0
    %3882 = vmatprep.subr.mxu0 0.0
    %3883 = vmatpush1.msra.mxu0 0.0
    %3884 = vmatprep.subr.mxu0 0.0
    %3885 = vmatpush1.msra.mxu0 0.0
    %3886 = vmatprep.subr.mxu0 0.0
    %3887 = vmatpush1.msra.mxu0 0.0
    %3888 = vmatprep.subr.mxu0 0.0
    %3889 = vmatpush1.msra.mxu0 0.0
    %3890 = vmatprep.subr.mxu0 0.0
    %3891 = vmatpush1.msra.mxu0 0.0
    %3892 = vmatprep.subr.mxu0 0.0
    %3893 = vmatpush1.msra.mxu0 0.0
    %3894 = vmatprep.subr.mxu0 0.0
    %3895 = vmatpush1.msra.mxu0 0.0
    %3896 = vmatprep.subr.mxu0 0.0
    %3897 = vmatpush1.msra.mxu0 0.0
    %3898 = vmatprep.subr.mxu0 0.0
    %3899 = vmatpush1.msra.mxu0 0.0
    %3900 = vmatprep.subr.mxu0 0.0
    %3901 = vmatpush1.msra.mxu0 0.0
    %3902 = vmatprep.subr.mxu0 0.0
    %3903 = vmatpush1.msra.mxu0 0.0
    %3904 = vmatprep.subr.mxu0 0.0
    %3905 = vmatpush1.msra.mxu0 0.0
    %3906 = vmatprep.subr.mxu0 0.0
    %3907 = vmatpush1.msra.mxu0 0.0
    %3908 = vmatprep.subr.mxu0 0.0
    %3909 = vmatpush1.msra.mxu0 0.0
    %3910 = vmatprep.subr.mxu0 0.0
    %3911 = vmatpush1.msra.mxu0 0.0
    %3912 = vmatprep.subr.mxu0 0.0
    %3913 = vmatpush1.msra.mxu0 0.0
    %3914 = vmatprep.subr.mxu0 0.0
    %3915 = vmatpush1.msra.mxu0 0.0
    %3916 = vmatprep.subr.mxu0 0.0
    %3917 = vmatpush1.msra.mxu0 0.0
    %3918 = vmatprep.subr.mxu0 0.0
    %3919 = vmatpush1.msra.mxu0 0.0
    %3920 = vmatprep.mubr.f32.mxu0 0.0
    %3921 = vmatmul.mubr.f32.gmra.mrb[0].mxu0 %v3854
    %v3922 = vpop.f32.mrb[0].mxu0
    %v3923 = vadd.f32 0.0, %v3922
    %v3924 = vpop.f32.mrb[0].mxu0
    %3925 = vdwg.mxu0
    %3927 = vrot.lane.b32.xlu0 %v3923, 48
    %v3928 = vpop.permute.xlu0 %3927
    %3930 = vst.msk [vmem:[#allocation2 + $0x8] sm:$0xff] %vm1239, %v3928
    %v3931 = vld [vmem:[#allocation2] sm:$0xff]
    %v3932 = vld [vmem:[#allocation2 + $0x8] sm:$0xff]
    %s3933 = scalar_lea.vmem [#allocation3], 64
    %v3934 = vld [vmem:[%s3933] sm:$0xff]
    %v3935 = vld [vmem:[%s3933 + $0x8] sm:$0xff]
    %v3936 = vld [vmem:[%s3933 + $0x10] sm:$0xff]
    %v3937 = vld [vmem:[%s3933 + $0x18] sm:$0xff]
    %v3938 = vld [vmem:[%s3933 + $0x20] sm:$0xff]
    %v3939 = vld [vmem:[%s3933 + $0x28] sm:$0xff]
    %v3940 = vld [vmem:[%s3933 + $0x30] sm:$0xff]
    %v3941 = vld [vmem:[%s3933 + $0x38] sm:$0xff]
    %v3943 = vsel %vm226, %v3931, 0
    %v3946 = vsel %vm226, %v3932, 0
    %3948 = vmatprep.subr.mxu0 0.0
    %3949 = vmatpush1.msra.mxu0 %v3934
    %3950 = vmatprep.subr.mxu0 0.0
    %3951 = vmatpush1.msra.mxu0 %v3935
    %3952 = vmatprep.subr.mxu0 0.0
    %3953 = vmatpush1.msra.mxu0 %v3936
    %3954 = vmatprep.subr.mxu0 0.0
    %3955 = vmatpush1.msra.mxu0 %v3937
    %3956 = vmatprep.subr.mxu0 0.0
    %3957 = vmatpush1.msra.mxu0 %v3938
    %3958 = vmatprep.subr.mxu0 0.0
    %3959 = vmatpush1.msra.mxu0 %v3939
    %3960 = vmatprep.subr.mxu0 0.0
    %3961 = vmatpush1.msra.mxu0 %v3940
    %3962 = vmatprep.subr.mxu0 0.0
    %3963 = vmatpush1.msra.mxu0 %v3941
    %3964 = vmatprep.subr.mxu0 0.0
    %3965 = vmatpush1.msra.mxu0 0.0
    %3966 = vmatprep.subr.mxu0 0.0
    %3967 = vmatpush1.msra.mxu0 0.0
    %3968 = vmatprep.subr.mxu0 0.0
    %3969 = vmatpush1.msra.mxu0 0.0
    %3970 = vmatprep.subr.mxu0 0.0
    %3971 = vmatpush1.msra.mxu0 0.0
    %3972 = vmatprep.subr.mxu0 0.0
    %3973 = vmatpush1.msra.mxu0 0.0
    %3974 = vmatprep.subr.mxu0 0.0
    %3975 = vmatpush1.msra.mxu0 0.0
    %3976 = vmatprep.subr.mxu0 0.0
    %3977 = vmatpush1.msra.mxu0 0.0
    %3978 = vmatprep.subr.mxu0 0.0
    %3979 = vmatpush1.msra.mxu0 0.0
    %3980 = vmatprep.subr.mxu0 0.0
    %3981 = vmatpush1.msra.mxu0 0.0
    %3982 = vmatprep.subr.mxu0 0.0
    %3983 = vmatpush1.msra.mxu0 0.0
    %3984 = vmatprep.subr.mxu0 0.0
    %3985 = vmatpush1.msra.mxu0 0.0
    %3986 = vmatprep.subr.mxu0 0.0
    %3987 = vmatpush1.msra.mxu0 0.0
    %3988 = vmatprep.subr.mxu0 0.0
    %3989 = vmatpush1.msra.mxu0 0.0
    %3990 = vmatprep.subr.mxu0 0.0
    %3991 = vmatpush1.msra.mxu0 0.0
    %3992 = vmatprep.subr.mxu0 0.0
    %3993 = vmatpush1.msra.mxu0 0.0
    %3994 = vmatprep.subr.mxu0 0.0
    %3995 = vmatpush1.msra.mxu0 0.0
    %3996 = vmatprep.subr.mxu0 0.0
    %3997 = vmatpush1.msra.mxu0 0.0
    %3998 = vmatprep.subr.mxu0 0.0
    %3999 = vmatpush1.msra.mxu0 0.0
    %4000 = vmatprep.subr.mxu0 0.0
    %4001 = vmatpush1.msra.mxu0 0.0
    %4002 = vmatprep.subr.mxu0 0.0
    %4003 = vmatpush1.msra.mxu0 0.0
    %4004 = vmatprep.subr.mxu0 0.0
    %4005 = vmatpush1.msra.mxu0 0.0
    %4006 = vmatprep.subr.mxu0 0.0
    %4007 = vmatpush1.msra.mxu0 0.0
    %4008 = vmatprep.subr.mxu0 0.0
    %4009 = vmatpush1.msra.mxu0 0.0
    %4010 = vmatprep.subr.mxu0 0.0
    %4011 = vmatpush1.msra.mxu0 0.0
    %4012 = vmatprep.mubr.f32.mxu0 0.0
    %4013 = vmatmul.mubr.f32.gmra.mrb[0].mxu0 %v3943
    %v4014 = vpop.f32.mrb[0].mxu0
    %v4015 = vadd.f32 0.0, %v4014
    %v4016 = vpop.f32.mrb[0].mxu0
    %4017 = vmatprep.mubr.f32.mxu0 0.0
    %4018 = vmatmul.mubr.f32.gmra.mrb[0].mxu0 %v3946
    %v4019 = vpop.f32.mrb[0].mxu0
    %v4020 = vadd.f32 0.0, %v4019
    %v4021 = vpop.f32.mrb[0].mxu0
    %4022 = vdwg.mxu0
    %v4023 = vadd.f32 %v2255, %v4015
    %v4024 = vadd.f32 %v2256, %v4020
    %v4025 = vsel %vm226, %v4023, 0.0
    %4026 = vadd.xlane.f32.xlu0 %v4025
    %v4027 = vpop.xlane.xlu0 %4026
    %v4028 = vsel %vm226, %v4024, 0.0
    %4029 = vadd.xlane.f32.xlu0 %v4028
    %v4030 = vpop.xlane.xlu0 %4029
    %v4031 = vmul.f32 %v4027, %v233
    %v4032 = vmul.f32 %v4030, %v233
    %v4033 = vsub.f32 %v4023, %v4031
    %v4034 = vsub.f32 %v4024, %v4032
    %v4035 = vmul.f32 %v4033, %v4033
    %v4036 = vmul.f32 %v4034, %v4034
    %v4037 = vsel %vm226, %v4035, 0.0
    %4038 = vadd.xlane.f32.xlu0 %v4037
    %v4039 = vpop.xlane.xlu0 %4038
    %v4040 = vsel %vm226, %v4036, 0.0
    %4041 = vadd.xlane.f32.xlu0 %v4040
    %v4042 = vpop.xlane.xlu0 %4041
    %v4043 = vmul.f32 %v4039, %v233
    %v4044 = vmul.f32 %v4042, %v233
    %v4045 = vadd.f32 %v4043, 1e-05
    %v4046 = vadd.f32 %v4044, 1e-05
    %v4047 = vrsqrt.pop %v4045
    %v4048 = vrsqrt.pop %v4046
    %v4049 = vmul.f32 %v4033, %v4047
    %v4050 = vmul.f32 %v4034, %v4048
    %s4051 = scalar_lea.vmem %s7, 128
    %v4052 = vld [vmem:[%s4051] sm:$0xff]
    %v4053 = vld [vmem:[%s4051 + $0x8] sm:$0xff]
    %v4054 = vld [vmem:[%s4051 + $0x10] sm:$0xff]
    %v4055 = vld [vmem:[%s4051 + $0x18] sm:$0xff]
    %v4056 = vld [vmem:[%s4051 + $0x20] sm:$0xff]
    %v4057 = vld [vmem:[%s4051 + $0x28] sm:$0xff]
    %v4058 = vld [vmem:[%s4051 + $0x30] sm:$0xff]
    %v4059 = vld [vmem:[%s4051 + $0x38] sm:$0xff]
    %v4060 = vld [vmem:[%s4051 + $0x40] sm:$0xff]
    %v4061 = vld [vmem:[%s4051 + $0x48] sm:$0xff]
    %v4062 = vld [vmem:[%s4051 + $0x50] sm:$0xff]
    %v4063 = vld [vmem:[%s4051 + $0x58] sm:$0xff]
    %v4064 = vld [vmem:[%s4051 + $0x60] sm:$0xff]
    %v4065 = vld [vmem:[%s4051 + $0x68] sm:$0xff]
    %v4066 = vld [vmem:[%s4051 + $0x70] sm:$0xff]
    %v4067 = vld [vmem:[%s4051 + $0x78] sm:$0xff]
    %v4069 = vsel %vm226, %v4049, 0
    %v4072 = vsel %vm226, %v4050, 0
    %4074 = vmatprep.subr.mxu0 %v4053
    %4075 = vmatpush1.msra.mxu0 %v4052
    %4076 = vmatprep.subr.mxu0 %v4055
    %4077 = vmatpush1.msra.mxu0 %v4054
    %4078 = vmatprep.subr.mxu0 %v4057
    %4079 = vmatpush1.msra.mxu0 %v4056
    %4080 = vmatprep.subr.mxu0 %v4059
    %4081 = vmatpush1.msra.mxu0 %v4058
    %4082 = vmatprep.subr.mxu0 %v4061
    %4083 = vmatpush1.msra.mxu0 %v4060
    %4084 = vmatprep.subr.mxu0 %v4063
    %4085 = vmatpush1.msra.mxu0 %v4062
    %4086 = vmatprep.subr.mxu0 %v4065
    %4087 = vmatpush1.msra.mxu0 %v4064
    %4088 = vmatprep.subr.mxu0 %v4067
    %4089 = vmatpush1.msra.mxu0 %v4066
    %4090 = vmatprep.subr.mxu0 0.0
    %4091 = vmatpush1.msra.mxu0 0.0
    %4092 = vmatprep.subr.mxu0 0.0
    %4093 = vmatpush1.msra.mxu0 0.0
    %4094 = vmatprep.subr.mxu0 0.0
    %4095 = vmatpush1.msra.mxu0 0.0
    %4096 = vmatprep.subr.mxu0 0.0
    %4097 = vmatpush1.msra.mxu0 0.0
    %4098 = vmatprep.subr.mxu0 0.0
    %4099 = vmatpush1.msra.mxu0 0.0
    %4100 = vmatprep.subr.mxu0 0.0
    %4101 = vmatpush1.msra.mxu0 0.0
    %4102 = vmatprep.subr.mxu0 0.0
    %4103 = vmatpush1.msra.mxu0 0.0
    %4104 = vmatprep.subr.mxu0 0.0
    %4105 = vmatpush1.msra.mxu0 0.0
    %4106 = vmatprep.subr.mxu0 0.0
    %4107 = vmatpush1.msra.mxu0 0.0
    %4108 = vmatprep.subr.mxu0 0.0
    %4109 = vmatpush1.msra.mxu0 0.0
    %4110 = vmatprep.subr.mxu0 0.0
    %4111 = vmatpush1.msra.mxu0 0.0
    %4112 = vmatprep.subr.mxu0 0.0
    %4113 = vmatpush1.msra.mxu0 0.0
    %4114 = vmatprep.subr.mxu0 0.0
    %4115 = vmatpush1.msra.mxu0 0.0
    %4116 = vmatprep.subr.mxu0 0.0
    %4117 = vmatpush1.msra.mxu0 0.0
    %4118 = vmatprep.subr.mxu0 0.0
    %4119 = vmatpush1.msra.mxu0 0.0
    %4120 = vmatprep.subr.mxu0 0.0
    %4121 = vmatpush1.msra.mxu0 0.0
    %4122 = vmatprep.subr.mxu0 0.0
    %4123 = vmatpush1.msra.mxu0 0.0
    %4124 = vmatprep.subr.mxu0 0.0
    %4125 = vmatpush1.msra.mxu0 0.0
    %4126 = vmatprep.subr.mxu0 0.0
    %4127 = vmatpush1.msra.mxu0 0.0
    %4128 = vmatprep.subr.mxu0 0.0
    %4129 = vmatpush1.msra.mxu0 0.0
    %4130 = vmatprep.subr.mxu0 0.0
    %4131 = vmatpush1.msra.mxu0 0.0
    %4132 = vmatprep.subr.mxu0 0.0
    %4133 = vmatpush1.msra.mxu0 0.0
    %4134 = vmatprep.subr.mxu0 0.0
    %4135 = vmatpush1.msra.mxu0 0.0
    %4136 = vmatprep.subr.mxu0 0.0
    %4137 = vmatpush1.msra.mxu0 0.0
    %4138 = vmatprep.mubr.f32.mxu0 0.0
    %4139 = vmatmul.mubr.f32.gmra.mrb[0].mxu0 %v4069
    %v4140 = vpop.f32.mrb[0].mxu0
    %v4141 = vadd.f32 0.0, %v4140
    %v4142 = vpop.f32.mrb[0].mxu0
    %v4143 = vadd.f32 0.0, %v4142
    %4144 = vmatprep.mubr.f32.mxu0 0.0
    %4145 = vmatmul.mubr.f32.gmra.mrb[0].mxu0 %v4072
    %v4146 = vpop.f32.mrb[0].mxu0
    %v4147 = vadd.f32 0.0, %v4146
    %v4148 = vpop.f32.mrb[0].mxu0
    %v4149 = vadd.f32 0.0, %v4148
    %4150 = vdwg.mxu0
    %v4151 = vxor.u32 %v4141, 2147483648
    %v4152 = vxor.u32 %v4147, 2147483648
    %v4153 = vmul.f32 %v4151, 1.442695
    %v4154 = vpow.pop %v4153
    %v4155 = vmul.f32 %v4152, 1.442695
    %v4156 = vpow.pop %v4155
    %v4157 = vadd.f32 %v4154, 1.0
    %v4158 = vadd.f32 %v4156, 1.0
    %v4159 = vrcp.pop %v4157
    %v4160 = vmul.f32 1.0, %v4159
    %v4161 = vrcp.pop %v4158
    %v4162 = vmul.f32 1.0, %v4161
    %v4163 = vmul.f32 %v4141, %v4160
    %v4164 = vmul.f32 %v4147, %v4162
    %v4165 = vmul.f32 %v4163, %v4143
    %v4166 = vmul.f32 %v4164, %v4149
    %s4167 = scalar_lea.vmem %s8, 128
    %v4168 = vld [vmem:[%s4167] sm:$0xff]
    %v4169 = vld [vmem:[%s4167 + $0x8] sm:$0xff]
    %v4170 = vld [vmem:[%s4167 + $0x10] sm:$0xff]
    %v4171 = vld [vmem:[%s4167 + $0x18] sm:$0xff]
    %v4172 = vld [vmem:[%s4167 + $0x20] sm:$0xff]
    %v4173 = vld [vmem:[%s4167 + $0x28] sm:$0xff]
    %v4174 = vld [vmem:[%s4167 + $0x30] sm:$0xff]
    %v4175 = vld [vmem:[%s4167 + $0x38] sm:$0xff]
    %v4176 = vld [vmem:[%s4167 + $0x40] sm:$0xff]
    %v4177 = vld [vmem:[%s4167 + $0x48] sm:$0xff]
    %v4178 = vld [vmem:[%s4167 + $0x50] sm:$0xff]
    %v4179 = vld [vmem:[%s4167 + $0x58] sm:$0xff]
    %v4180 = vld [vmem:[%s4167 + $0x60] sm:$0xff]
    %v4181 = vld [vmem:[%s4167 + $0x68] sm:$0xff]
    %v4182 = vld [vmem:[%s4167 + $0x70] sm:$0xff]
    %v4183 = vld [vmem:[%s4167 + $0x78] sm:$0xff]
    %4184 = vmatprep.subr.mxu0 0.0
    %4185 = vmatpush1.msra.mxu0 %v4168
    %4186 = vmatprep.subr.mxu0 0.0
    %4187 = vmatpush1.msra.mxu0 %v4169
    %4188 = vmatprep.subr.mxu0 0.0
    %4189 = vmatpush1.msra.mxu0 %v4170
    %4190 = vmatprep.subr.mxu0 0.0
    %4191 = vmatpush1.msra.mxu0 %v4171
    %4192 = vmatprep.subr.mxu0 0.0
    %4193 = vmatpush1.msra.mxu0 %v4172
    %4194 = vmatprep.subr.mxu0 0.0
    %4195 = vmatpush1.msra.mxu0 %v4173
    %4196 = vmatprep.subr.mxu0 0.0
    %4197 = vmatpush1.msra.mxu0 %v4174
    %4198 = vmatprep.subr.mxu0 0.0
    %4199 = vmatpush1.msra.mxu0 %v4175
    %4200 = vmatprep.subr.mxu0 0.0
    %4201 = vmatpush1.msra.mxu0 %v4176
    %4202 = vmatprep.subr.mxu0 0.0
    %4203 = vmatpush1.msra.mxu0 %v4177
    %4204 = vmatprep.subr.mxu0 0.0
    %4205 = vmatpush1.msra.mxu0 %v4178
    %4206 = vmatprep.subr.mxu0 0.0
    %4207 = vmatpush1.msra.mxu0 %v4179
    %4208 = vmatprep.subr.mxu0 0.0
    %4209 = vmatpush1.msra.mxu0 %v4180
    %4210 = vmatprep.subr.mxu0 0.0
    %4211 = vmatpush1.msra.mxu0 %v4181
    %4212 = vmatprep.subr.mxu0 0.0
    %4213 = vmatpush1.msra.mxu0 %v4182
    %4214 = vmatprep.subr.mxu0 0.0
    %4215 = vmatpush1.msra.mxu0 %v4183
    %4216 = vmatprep.subr.mxu0 0.0
    %4217 = vmatpush1.msra.mxu0 0.0
    %4218 = vmatprep.subr.mxu0 0.0
    %4219 = vmatpush1.msra.mxu0 0.0
    %4220 = vmatprep.subr.mxu0 0.0
    %4221 = vmatpush1.msra.mxu0 0.0
    %4222 = vmatprep.subr.mxu0 0.0
    %4223 = vmatpush1.msra.mxu0 0.0
    %4224 = vmatprep.subr.mxu0 0.0
    %4225 = vmatpush1.msra.mxu0 0.0
    %4226 = vmatprep.subr.mxu0 0.0
    %4227 = vmatpush1.msra.mxu0 0.0
    %4228 = vmatprep.subr.mxu0 0.0
    %4229 = vmatpush1.msra.mxu0 0.0
    %4230 = vmatprep.subr.mxu0 0.0
    %4231 = vmatpush1.msra.mxu0 0.0
    %4232 = vmatprep.subr.mxu0 0.0
    %4233 = vmatpush1.msra.mxu0 0.0
    %4234 = vmatprep.subr.mxu0 0.0
    %4235 = vmatpush1.msra.mxu0 0.0
    %4236 = vmatprep.subr.mxu0 0.0
    %4237 = vmatpush1.msra.mxu0 0.0
    %4238 = vmatprep.subr.mxu0 0.0
    %4239 = vmatpush1.msra.mxu0 0.0
    %4240 = vmatprep.subr.mxu0 0.0
    %4241 = vmatpush1.msra.mxu0 0.0
    %4242 = vmatprep.subr.mxu0 0.0
    %4243 = vmatpush1.msra.mxu0 0.0
    %4244 = vmatprep.subr.mxu0 0.0
    %4245 = vmatpush1.msra.mxu0 0.0
    %4246 = vmatprep.subr.mxu0 0.0
    %4247 = vmatpush1.msra.mxu0 0.0
    %4248 = vmatprep.mubr.f32.mxu0 0.0
    %4249 = vmatmul.mubr.f32.gmra.mrb[0].mxu0 %v4165
    %v4250 = vpop.f32.mrb[0].mxu0
    %v4251 = vadd.f32 0.0, %v4250
    %v4252 = vpop.f32.mrb[0].mxu0
    %4253 = vmatprep.mubr.f32.mxu0 0.0
    %4254 = vmatmul.mubr.f32.gmra.mrb[0].mxu0 %v4166
    %v4255 = vpop.f32.mrb[0].mxu0
    %v4256 = vadd.f32 0.0, %v4255
    %v4257 = vpop.f32.mrb[0].mxu0
    %4258 = vdwg.mxu0
    %v4259 = vadd.f32 %v4023, %v4251
    %v4260 = vadd.f32 %v4024, %v4256
    %v4261 = vld [vmem:[#allocation9] sm:$0x3]
    %v4263 = vsel %vm557, %v4261, 0
    %4265 = vmatprep.subr.mxu0 0.0
    %4266 = vmatpush1.msra.mxu0 %v4259
    %4267 = vmatprep.subr.mxu0 0.0
    %4268 = vmatpush1.msra.mxu0 %v4260
    %4269 = vmatprep.subr.mxu0 0.0
    %4270 = vmatpush1.msra.mxu0 0.0
    %4271 = vmatprep.subr.mxu0 0.0
    %4272 = vmatpush1.msra.mxu0 0.0
    %4273 = vmatprep.subr.mxu0 0.0
    %4274 = vmatpush1.msra.mxu0 0.0
    %4275 = vmatprep.subr.mxu0 0.0
    %4276 = vmatpush1.msra.mxu0 0.0
    %4277 = vmatprep.subr.mxu0 0.0
    %4278 = vmatpush1.msra.mxu0 0.0
    %4279 = vmatprep.subr.mxu0 0.0
    %4280 = vmatpush1.msra.mxu0 0.0
    %4281 = vmatprep.subr.mxu0 0.0
    %4282 = vmatpush1.msra.mxu0 0.0
    %4283 = vmatprep.subr.mxu0 0.0
    %4284 = vmatpush1.msra.mxu0 0.0
    %4285 = vmatprep.subr.mxu0 0.0
    %4286 = vmatpush1.msra.mxu0 0.0
    %4287 = vmatprep.subr.mxu0 0.0
    %4288 = vmatpush1.msra.mxu0 0.0
    %4289 = vmatprep.subr.mxu0 0.0
    %4290 = vmatpush1.msra.mxu0 0.0
    %4291 = vmatprep.subr.mxu0 0.0
    %4292 = vmatpush1.msra.mxu0 0.0
    %4293 = vmatprep.subr.mxu0 0.0
    %4294 = vmatpush1.msra.mxu0 0.0
    %4295 = vmatprep.subr.mxu0 0.0
    %4296 = vmatpush1.msra.mxu0 0.0
    %4297 = vmatprep.subr.mxu0 0.0
    %4298 = vmatpush1.msra.mxu0 0.0
    %4299 = vmatprep.subr.mxu0 0.0
    %4300 = vmatpush1.msra.mxu0 0.0
    %4301 = vmatprep.subr.mxu0 0.0
    %4302 = vmatpush1.msra.mxu0 0.0
    %4303 = vmatprep.subr.mxu0 0.0
    %4304 = vmatpush1.msra.mxu0 0.0
    %4305 = vmatprep.subr.mxu0 0.0
    %4306 = vmatpush1.msra.mxu0 0.0
    %4307 = vmatprep.subr.mxu0 0.0
    %4308 = vmatpush1.msra.mxu0 0.0
    %4309 = vmatprep.subr.mxu0 0.0
    %4310 = vmatpush1.msra.mxu0 0.0
    %4311 = vmatprep.subr.mxu0 0.0
    %4312 = vmatpush1.msra.mxu0 0.0
    %4313 = vmatprep.subr.mxu0 0.0
    %4314 = vmatpush1.msra.mxu0 0.0
    %4315 = vmatprep.subr.mxu0 0.0
    %4316 = vmatpush1.msra.mxu0 0.0
    %4317 = vmatprep.subr.mxu0 0.0
    %4318 = vmatpush1.msra.mxu0 0.0
    %4319 = vmatprep.subr.mxu0 0.0
    %4320 = vmatpush1.msra.mxu0 0.0
    %4321 = vmatprep.subr.mxu0 0.0
    %4322 = vmatpush1.msra.mxu0 0.0
    %4323 = vmatprep.subr.mxu0 0.0
    %4324 = vmatpush1.msra.mxu0 0.0
    %4325 = vmatprep.subr.mxu0 0.0
    %4326 = vmatpush1.msra.mxu0 0.0
    %4327 = vmatprep.subr.mxu0 0.0
    %4328 = vmatpush1.msra.mxu0 0.0
    %4329 = vmatprep.mubr.f32.mxu0 0.0
    %4330 = vmatmul.mubr.f32.gmra.mrb[0].mxu0 %v4263
    %v4331 = vpop.f32.mrb[0].mxu0
    %v4332 = vadd.f32 0.0, %v4331
    %v4333 = vpop.f32.mrb[0].mxu0
    %4334 = vdwg.mxu0
    %vm4335 = vcmask 517120
    %v4336 = vsel %vm4335, %v4332, 0.0
    %4337 = vadd.xlane.f32.xlu0 %v4336
    %v4338 = vpop.xlane.xlu0 %4337
    %v4339 = vmul.f32 %v4338, %v233
    %v4340 = vsub.f32 %v4332, %v4339
    %v4341 = vmul.f32 %v4340, %v4340
    %v4342 = vsel %vm4335, %v4341, 0.0
    %4343 = vadd.xlane.f32.xlu0 %v4342
    %v4344 = vpop.xlane.xlu0 %4343
    %v4345 = vmul.f32 %v4344, %v233
    %v4346 = vadd.f32 %v4345, 1e-05
    %v4347 = vrsqrt.pop %v4346
    %v4348 = vmul.f32 %v4340, %v4347
    %v4349 = vld [vmem:[%s4] sm:$0xff]
    %v4350 = vld [vmem:[%s4 + $0x8] sm:$0xff]
    %v4351 = vld [vmem:[%s4 + $0x10] sm:$0xff]
    %v4352 = vld [vmem:[%s4 + $0x18] sm:$0xff]
    %v4353 = vld [vmem:[%s4 + $0x20] sm:$0xff]
    %v4354 = vld [vmem:[%s4 + $0x28] sm:$0xff]
    %v4355 = vld [vmem:[%s4 + $0x30] sm:$0xff]
    %v4356 = vld [vmem:[%s4 + $0x38] sm:$0xff]
    %v4358 = vsel %vm226, %v4348, 0
    %4360 = vmatprep.subr.mxu0 0.0
    %4361 = vmatpush1.msra.mxu0 %v4349
    %4362 = vmatprep.subr.mxu0 0.0
    %4363 = vmatpush1.msra.mxu0 %v4350
    %4364 = vmatprep.subr.mxu0 0.0
    %4365 = vmatpush1.msra.mxu0 %v4351
    %4366 = vmatprep.subr.mxu0 0.0
    %4367 = vmatpush1.msra.mxu0 %v4352
    %4368 = vmatprep.subr.mxu0 0.0
    %4369 = vmatpush1.msra.mxu0 %v4353
    %4370 = vmatprep.subr.mxu0 0.0
    %4371 = vmatpush1.msra.mxu0 %v4354
    %4372 = vmatprep.subr.mxu0 0.0
    %4373 = vmatpush1.msra.mxu0 %v4355
    %4374 = vmatprep.subr.mxu0 0.0
    %4375 = vmatpush1.msra.mxu0 %v4356
    %4376 = vmatprep.subr.mxu0 0.0
    %4377 = vmatpush1.msra.mxu0 0.0
    %4378 = vmatprep.subr.mxu0 0.0
    %4379 = vmatpush1.msra.mxu0 0.0
    %4380 = vmatprep.subr.mxu0 0.0
    %4381 = vmatpush1.msra.mxu0 0.0
    %4382 = vmatprep.subr.mxu0 0.0
    %4383 = vmatpush1.msra.mxu0 0.0
    %4384 = vmatprep.subr.mxu0 0.0
    %4385 = vmatpush1.msra.mxu0 0.0
    %4386 = vmatprep.subr.mxu0 0.0
    %4387 = vmatpush1.msra.mxu0 0.0
    %4388 = vmatprep.subr.mxu0 0.0
    %4389 = vmatpush1.msra.mxu0 0.0
    %4390 = vmatprep.subr.mxu0 0.0
    %4391 = vmatpush1.msra.mxu0 0.0
    %4392 = vmatprep.subr.mxu0 0.0
    %4393 = vmatpush1.msra.mxu0 0.0
    %4394 = vmatprep.subr.mxu0 0.0
    %4395 = vmatpush1.msra.mxu0 0.0
    %4396 = vmatprep.subr.mxu0 0.0
    %4397 = vmatpush1.msra.mxu0 0.0
    %4398 = vmatprep.subr.mxu0 0.0
    %4399 = vmatpush1.msra.mxu0 0.0
    %4400 = vmatprep.subr.mxu0 0.0
    %4401 = vmatpush1.msra.mxu0 0.0
    %4402 = vmatprep.subr.mxu0 0.0
    %4403 = vmatpush1.msra.mxu0 0.0
    %4404 = vmatprep.subr.mxu0 0.0
    %4405 = vmatpush1.msra.mxu0 0.0
    %4406 = vmatprep.subr.mxu0 0.0
    %4407 = vmatpush1.msra.mxu0 0.0
    %4408 = vmatprep.subr.mxu0 0.0
    %4409 = vmatpush1.msra.mxu0 0.0
    %4410 = vmatprep.subr.mxu0 0.0
    %4411 = vmatpush1.msra.mxu0 0.0
    %4412 = vmatprep.subr.mxu0 0.0
    %4413 = vmatpush1.msra.mxu0 0.0
    %4414 = vmatprep.subr.mxu0 0.0
    %4415 = vmatpush1.msra.mxu0 0.0
    %4416 = vmatprep.subr.mxu0 0.0
    %4417 = vmatpush1.msra.mxu0 0.0
    %4418 = vmatprep.subr.mxu0 0.0
    %4419 = vmatpush1.msra.mxu0 0.0
    %4420 = vmatprep.subr.mxu0 0.0
    %4421 = vmatpush1.msra.mxu0 0.0
    %4422 = vmatprep.subr.mxu0 0.0
    %4423 = vmatpush1.msra.mxu0 0.0
    %4424 = vmatprep.mubr.f32.mxu0 0.0
    %4425 = vmatmul.mubr.f32.gmra.mrb[0].mxu0 %v4358
    %v4426 = vpop.f32.mrb[0].mxu0
    %v4427 = vadd.f32 0.0, %v4426
    %v4428 = vpop.f32.mrb[0].mxu0
    %4429 = vdwg.mxu0
    %vm4430 = vcmask 1041408
    %v4431 = vsel %vm4430, %v4427, -inf
    %4432 = vmax.xlane.f32.xlu0 %v4431
    %v4433 = vpop.xlane.xlu0 %4432
    %v4434 = vsub.f32 %v4427, %v4433
    %v4435 = vmul.f32 %v4434, 1.442695
    %v4436 = vpow.pop %v4435
    %v4437 = vsel %vm4430, %v4436, 0.0
    %4438 = vadd.xlane.f32.xlu0 %v4437
    %v4439 = vpop.xlane.xlu0 %4438
    %v4440 = vlog2.pop %v4439
    %v4441 = vmul.f32 %v4440, 0.6931472
    %v4442 = vadd.f32 %v4433, %v4441
    %v4443 = vld [vmem:[%s2] sm:$0x3]
    %4444 = vset.pattern.permute.xlu0 0
    %4445 = vperm.xlu0 %4444, %v4443
    %v4446 = vpop.permute.xlu0 %4445
    %vm4447 = vcmp.eq.s32.totalorder %v106, %v4446
    %v4448 = vsel %vm4447, %v4427, 0.0
    %v4449 = vsel %vm4430, %v4448, 0.0
    %4450 = vadd.xlane.f32.xlu0 %v4449
    %v4451 = vpop.xlane.xlu0 %4450
    %v4452 = vsub.f32 %v4442, %v4451
    %vm4453 = vcmask 1024
    %4454 = vst.msk [vmem:[%s14] sm:$0x3] %vm4453, %v4452
    %v4455 = vld [vmem:[%s13] sm:$0xff]
    %v4456 = vld [vmem:[%s13 + $0x8] sm:$0xff]
    %v4457 = vld [vmem:[%s13 + $0x10] sm:$0xff]
    %v4458 = vld [vmem:[%s13 + $0x18] sm:$0xff]
    %v4459 = vld [vmem:[%s13 + $0x20] sm:$0xff]
    %v4460 = vld [vmem:[%s13 + $0x28] sm:$0xff]
    %v4461 = vld [vmem:[%s13 + $0x30] sm:$0xff]
    %v4462 = vld [vmem:[%s13 + $0x38] sm:$0xff]
    %v4463 = vld [vmem:[%s13 + $0x40] sm:$0xff]
    %v4464 = vld [vmem:[%s13 + $0x48] sm:$0xff]
    %v4465 = vld [vmem:[%s13 + $0x50] sm:$0xff]
    %v4466 = vld [vmem:[%s13 + $0x58] sm:$0xff]
    %v4467 = vld [vmem:[%s13 + $0x60] sm:$0xff]
    %v4468 = vld [vmem:[%s13 + $0x68] sm:$0xff]
    %v4469 = vld [vmem:[%s13 + $0x70] sm:$0xff]
    %v4470 = vld [vmem:[%s13 + $0x78] sm:$0xff]
    %4471 = vmatprep.subr.mxu0 0.0
    %4472 = vmatpush1.msra.mxu0 %v4455
    %4473 = vmatprep.subr.mxu0 0.0
    %4474 = vmatpush1.msra.mxu0 %v4456
    %4475 = vmatprep.subr.mxu0 0.0
    %4476 = vmatpush1.msra.mxu0 %v4457
    %4477 = vmatprep.subr.mxu0 0.0
    %4478 = vmatpush1.msra.mxu0 %v4458
    %4479 = vmatprep.subr.mxu0 0.0
    %4480 = vmatpush1.msra.mxu0 %v4459
    %4481 = vmatprep.subr.mxu0 0.0
    %4482 = vmatpush1.msra.mxu0 %v4460
    %4483 = vmatprep.subr.mxu0 0.0
    %4484 = vmatpush1.msra.mxu0 %v4461
    %4485 = vmatprep.subr.mxu0 0.0
    %4486 = vmatpush1.msra.mxu0 %v4462
    %4487 = vmatprep.subr.mxu0 0.0
    %4488 = vmatpush1.msra.mxu0 %v4463
    %4489 = vmatprep.subr.mxu0 0.0
    %4490 = vmatpush1.msra.mxu0 %v4464
    %4491 = vmatprep.subr.mxu0 0.0
    %4492 = vmatpush1.msra.mxu0 %v4465
    %4493 = vmatprep.subr.mxu0 0.0
    %4494 = vmatpush1.msra.mxu0 %v4466
    %4495 = vmatprep.subr.mxu0 0.0
    %4496 = vmatpush1.msra.mxu0 %v4467
    %4497 = vmatprep.subr.mxu0 0.0
    %4498 = vmatpush1.msra.mxu0 %v4468
    %4499 = vmatprep.subr.mxu0 0.0
    %4500 = vmatpush1.msra.mxu0 %v4469
    %4501 = vmatprep.subr.mxu0 0.0
    %4502 = vmatpush1.msra.mxu0 %v4470
    %4503 = vmatprep.subr.mxu0 0.0
    %4504 = vmatpush1.msra.mxu0 0.0
    %4505 = vmatprep.subr.mxu0 0.0
    %4506 = vmatpush1.msra.mxu0 0.0
    %4507 = vmatprep.subr.mxu0 0.0
    %4508 = vmatpush1.msra.mxu0 0.0
    %4509 = vmatprep.subr.mxu0 0.0
    %4510 = vmatpush1.msra.mxu0 0.0
    %4511 = vmatprep.subr.mxu0 0.0
    %4512 = vmatpush1.msra.mxu0 0.0
    %4513 = vmatprep.subr.mxu0 0.0
    %4514 = vmatpush1.msra.mxu0 0.0
    %4515 = vmatprep.subr.mxu0 0.0
    %4516 = vmatpush1.msra.mxu0 0.0
    %4517 = vmatprep.subr.mxu0 0.0
    %4518 = vmatpush1.msra.mxu0 0.0
    %4519 = vmatprep.subr.mxu0 0.0
    %4520 = vmatpush1.msra.mxu0 0.0
    %4521 = vmatprep.subr.mxu0 0.0
    %4522 = vmatpush1.msra.mxu0 0.0
    %4523 = vmatprep.subr.mxu0 0.0
    %4524 = vmatpush1.msra.mxu0 0.0
    %4525 = vmatprep.subr.mxu0 0.0
    %4526 = vmatpush1.msra.mxu0 0.0
    %4527 = vmatprep.subr.mxu0 0.0
    %4528 = vmatpush1.msra.mxu0 0.0
    %4529 = vmatprep.subr.mxu0 0.0
    %4530 = vmatpush1.msra.mxu0 0.0
    %4531 = vmatprep.subr.mxu0 0.0
    %4532 = vmatpush1.msra.mxu0 0.0
    %4533 = vmatprep.subr.mxu0 0.0
    %4534 = vmatpush1.msra.mxu0 0.0
    %4535 = vmatprep.mubr.f32.mxu0 0.0
    %4536 = vmatmul.mubr.f32.gmra.mrb[0].mxu0 %v4427
    %v4537 = vpop.f32.mrb[0].mxu0
    %v4538 = vadd.f32 0.0, %v4537
    %v4539 = vpop.f32.mrb[0].mxu0
    %4540 = vdwg.mxu0
    %vm4541 = vcmask 17408
    %4542 = vst.msk [vmem:[#allocation11] sm:$0x3] %vm4541, %v4538
    // Predicated region
    $region74: #{tpu_custom_call.1} parent=1 // pred_check
      _
    $region75: #{tpu_custom_call.1} parent=1 // pred_check_branch
      %4544 = sbr.rel (0) target = $region77
    $region76: #{tpu_custom_call.1} parent=1 // pred_region
      _
    $region77: #{tpu_custom_call.1} parent=1 // pred_fallthru
      _
    // Predicated region
    $region78: #{tpu_custom_call.1} parent=1 // pred_check
      _
    $region79: #{tpu_custom_call.1} parent=1 // pred_check_branch
      %4546 = sbr.rel (0) target = $region81
    $region80: #{tpu_custom_call.1} parent=1 // pred_region
      %s4548 = ssub.s32 32, 32
      %4549 = vsyncadd [#allocation5], %s4548
      %s4551 = sshll.u32 [#allocation11], 4
      %s4552 = int_to_ptr.vmem [resolvable:$true] %s4551
      %4554 = dma.vmem_to_hbm [thread:$0]  %s4552, 32, %s15, [#allocation5]
    $region81: #{tpu_custom_call.1} parent=1 // pred_fallthru
      _
    // Predicated region
    $region82: #{tpu_custom_call.1} parent=1 // pred_check
      _
    $region83: #{tpu_custom_call.1} parent=1 // pred_check_branch
      %4556 = sbr.rel (0) target = $region85
    $region84: #{tpu_custom_call.1} parent=1 // pred_region
      _
    $region85: #{tpu_custom_call.1} parent=1 // pred_fallthru
      _
    // Predicated region
    $region86: #{tpu_custom_call.1} parent=1 // pred_check
      _
    $region87: #{tpu_custom_call.1} parent=1 // pred_check_branch
      %4558 = sbr.rel (0) target = $region89
    $region88: #{tpu_custom_call.1} parent=1 // pred_region
      %4559 = dma.done [#allocation5], 32
    $region89: #{tpu_custom_call.1} parent=1 // pred_fallthru
      _
    %4560 = vsyncpa [#allocation4], 1
    %4561 = vsyncpa [#allocation7], 1
    %4562 = vsyncpa [#allocation10], 1
    %4563 = vsyncpa [#allocation5], 1

</llo_original>
